<compile_context>
chip_gen: v7x
topology: tpu7x:2x2x1
jax: 0.10.0
libtpu: 0.0.40
codegen_flags: <defaults>
</compile_context>

<pallas_src>
import numpy as np
import jax
import jax.numpy as jnp
from jax.experimental import pallas as pl
from jax.experimental.pallas import tpu as pltpu


def _round_up(x, m):
    return (x + m - 1) // m * m


# ----------------------------------------------------------------------------
# Pallas kernel: hoisted input projection + fused bi-directional recurrence
#                + batched tanh/linear output head
# ----------------------------------------------------------------------------
def bilstm_kernel(x_ref,        # [T*Bp, Ep]   embedded tokens (time-major, flat)
                  mask_ref,     # [T, Bp, 1]   1.0 where t < length[b]
                  wih_ref,      # [Ep, 8H]     fwd gates | bwd gates (i|f|g|o)
                  b_ref,        # [1, 8H]      combined biases, both directions
                  whh_f_ref,    # [H, 4H]
                  whh_b_ref,    # [H, 4H]
                  wlin_f_ref,   # [H, Lp]      output head, forward half
                  wlin_b_ref,   # [H, Lp]      output head, backward half
                  blin_ref,     # [1, Lp]
                  out_ref,      # [T*Bp, Lp]
                  gi_ref,       # scratch [T*Bp, 8H]
                  hsf_ref,      # scratch [T*Bp, H]  masked forward hidden states
                  hsb_ref):     # scratch [T*Bp, H]  masked backward hidden states
    T = mask_ref.shape[0]
    Bp = mask_ref.shape[1]
    H = whh_f_ref.shape[0]
    G = 4 * H

    # ---- hoisted input projection (bias folded in): one big MXU matmul -----
    gi_ref[...] = (jnp.dot(x_ref[...], wih_ref[...],
                           preferred_element_type=jnp.float32) + b_ref[...])

    whh_f = whh_f_ref[...]
    whh_b = whh_b_ref[...]

    # NOTE: with H=32 the per-gate slices below are 32-lane sub-slices of one
    # 128-lane vreg (XLU shifts).  Acceptable at this toy size; for production
    # H >= 128 they become lane-aligned for free.
    def gates(g, c):
        i = jax.nn.sigmoid(g[:, 0:H])
        f = jax.nn.sigmoid(g[:, H:2 * H])
        gg = jnp.tanh(g[:, 2 * H:3 * H])
        o = jax.nn.sigmoid(g[:, 3 * H:4 * H])
        c_new = f * c + i * gg
        h_new = o * jnp.tanh(c_new)
        return h_new, c_new

    zeros = jnp.zeros((Bp, H), jnp.float32)

    # ---- fused fwd/bwd recurrence: two independent chains per iteration ----
    def step(s, carry):
        h_f, c_f, h_b, c_b = carry
        t_f = s
        t_b = T - 1 - s
        r_f = pl.multiple_of(t_f * Bp, 8)
        r_b = pl.multiple_of(t_b * Bp, 8)

        g_f = (gi_ref[pl.ds(r_f, Bp), pl.ds(0, G)]
               + jnp.dot(h_f, whh_f, preferred_element_type=jnp.float32))
        g_b = (gi_ref[pl.ds(r_b, Bp), pl.ds(G, G)]
               + jnp.dot(h_b, whh_b, preferred_element_type=jnp.float32))

        hf_new, cf_new = gates(g_f, c_f)
        hb_new, cb_new = gates(g_b, c_b)

        m_f = mask_ref[t_f]          # [Bp, 1]
        m_b = mask_ref[t_b]

        # pad_packed semantics: padded positions contribute zero hidden state
        hsf_ref[pl.ds(r_f, Bp), :] = m_f * hf_new
        hsb_ref[pl.ds(r_b, Bp), :] = m_b * hb_new

        # packed-sequence carry: padded steps never update (h, c)
        h_f = m_f * hf_new + (1.0 - m_f) * h_f
        c_f = m_f * cf_new + (1.0 - m_f) * c_f
        h_b = m_b * hb_new + (1.0 - m_b) * h_b
        c_b = m_b * cb_new + (1.0 - m_b) * c_b
        return (h_f, c_f, h_b, c_b)

    jax.lax.fori_loop(0, T, step, (zeros, zeros, zeros, zeros), unroll=True)

    # ---- batched output head: tanh + linear, one lane-dense store ----------
    act_f = jnp.tanh(hsf_ref[...])   # [T*Bp, H]
    act_b = jnp.tanh(hsb_ref[...])
    out_ref[...] = (
        jnp.dot(act_f, wlin_f_ref[...], preferred_element_type=jnp.float32)
        + jnp.dot(act_b, wlin_b_ref[...], preferred_element_type=jnp.float32)
        + blin_ref[...]
    ).astype(out_ref.dtype)


# ----------------------------------------------------------------------------
# Wrapper (glue): embedding lookup, padding/packing to tile boundaries,
#                 layout, pallas_call
# ----------------------------------------------------------------------------
def lstm_forward(x_ids, lengths, params):
    emb = params["emb"]
    x = emb[x_ids].astype(jnp.float32)                 # [B, T, E] (dropout = identity)
    B, T, E = x.shape
    H = params["whh_f"].shape[0]
    L = params["wlin"].shape[1]

    Bp = _round_up(B, 8)        # sublane-aligned batch
    Ep = _round_up(E, 128)      # lane-aligned embedding dim
    Lp = _round_up(L, 128)      # lane-aligned output head

    # pad batch rows (mask=0 -> they never update state) and feature lanes
    x_p = jnp.zeros((Bp, T, Ep), jnp.float32).at[:B, :, :E].set(x)
    lengths_p = jnp.zeros((Bp,), jnp.int32).at[:B].set(lengths.astype(jnp.int32))

    mask = (jnp.arange(T)[None, :] < lengths_p[:, None]).astype(jnp.float32)  # [Bp, T]
    mask_tb = jnp.transpose(mask, (1, 0))[:, :, None]                         # [T, Bp, 1]

    x_tb = jnp.transpose(x_p, (1, 0, 2)).reshape(T * Bp, Ep)  # time-major, flat

    # pack both directions' input weights / biases: [Ep, 8H], [1, 8H]
    wih_cat = jnp.zeros((Ep, 8 * H), jnp.float32)
    wih_cat = wih_cat.at[:E, :4 * H].set(params["wih_f"])
    wih_cat = wih_cat.at[:E, 4 * H:].set(params["wih_b"])
    b_cat = jnp.concatenate([params["b_f"], params["b_b"]], axis=-1)          # [1, 8H]

    # output head split per direction, lane-padded to Lp
    wlin_f = jnp.zeros((H, Lp), jnp.float32).at[:, :L].set(params["wlin"][:H])
    wlin_b = jnp.zeros((H, Lp), jnp.float32).at[:, :L].set(params["wlin"][H:])
    blin_p = jnp.zeros((1, Lp), jnp.float32).at[:, :L].set(params["blin"])

    inputs = (x_tb, mask_tb, wih_cat, b_cat,
              params["whh_f"], params["whh_b"],
              wlin_f, wlin_b, blin_p)

    def full_spec(shape):
        nd = len(shape)
        return pl.BlockSpec(shape, lambda i, nd=nd: (0,) * nd)

    out_flat = pl.pallas_call(
        bilstm_kernel,
        out_shape=jax.ShapeDtypeStruct((T * Bp, Lp), jnp.float32),
        grid=(1,),
        in_specs=[full_spec(a.shape) for a in inputs],
        out_specs=full_spec((T * Bp, Lp)),
        scratch_shapes=[pltpu.VMEM((T * Bp, 8 * H), jnp.float32),   # gi (both dirs)
                        pltpu.VMEM((T * Bp, H), jnp.float32),       # fwd hidden states
                        pltpu.VMEM((T * Bp, H), jnp.float32)],      # bwd hidden states
        compiler_params=pltpu.CompilerParams(
            dimension_semantics=("arbitrary",),
            vmem_limit_bytes=32 * 1024 * 1024),
    )(*inputs)

    out = out_flat.reshape(T, Bp, Lp)
    return jnp.transpose(out[:, :B, :L], (1, 0, 2))                 # [B, T, L]


# ----------------------------------------------------------------------------
# Pure-JAX reference (for correctness check)
# ----------------------------------------------------------------------------
def reference_forward(x_ids, lengths, p):
    x = p["emb"][x_ids]
    B, T, E = x.shape
    H = p["whh_f"].shape[0]
    mask = (jnp.arange(T)[None, :] < lengths[:, None]).astype(jnp.float32)

    def run_dir(wih, whh, b, reverse):
        def step(carry, t):
            h, c = carry
            x_t = x[:, t, :]
            m = mask[:, t][:, None]
            g = x_t @ wih + h @ whh + b
            i = jax.nn.sigmoid(g[:, :H]); f = jax.nn.sigmoid(g[:, H:2 * H])
            gg = jnp.tanh(g[:, 2 * H:3 * H]); o = jax.nn.sigmoid(g[:, 3 * H:])
            c_new = f * c + i * gg
            h_new = o * jnp.tanh(c_new)
            out = m * h_new
            h = m * h_new + (1.0 - m) * h
            c = m * c_new + (1.0 - m) * c
            return (h, c), out

        ts = jnp.arange(T)
        if reverse:
            ts = ts[::-1]
        init = (jnp.zeros((B, H), jnp.float32), jnp.zeros((B, H), jnp.float32))
        _, outs = jax.lax.scan(step, init, ts)   # [T, B, H]
        if reverse:
            outs = outs[::-1]
        return jnp.transpose(outs, (1, 0, 2))    # [B, T, H]

    hf = run_dir(p["wih_f"], p["whh_f"], p["b_f"], False)
    hb = run_dir(p["wih_b"], p["whh_b"], p["b_b"], True)
    h = jnp.concatenate([hf, hb], axis=-1)
    return jnp.tanh(h) @ p["wlin"] + p["blin"]


# ----------------------------------------------------------------------------
# Deterministic parameter init (shapes implied by the module __init__)
# ----------------------------------------------------------------------------
def init_params(key, vocab, emb_dim, hidden, labels):
    ks = jax.random.split(key, 12)
    k_lstm = 1.0 / np.sqrt(hidden)
    k_lin = 1.0 / np.sqrt(2 * hidden)

    emb = jax.random.normal(ks[0], (vocab, emb_dim), jnp.float32)
    emb = emb.at[0].set(0.0)  # padding_idx=0

    def uni(k, shape, lim):
        return jax.random.uniform(k, shape, jnp.float32, -lim, lim)

    params = dict(
        emb=emb,
        # forward direction (weights stored transposed: [in, 4H], gate order i|f|g|o)
        wih_f=uni(ks[1], (emb_dim, 4 * hidden), k_lstm),
        whh_f=uni(ks[2], (hidden, 4 * hidden), k_lstm),
        b_f=(uni(ks[3], (1, 4 * hidden), k_lstm)
             + uni(ks[4], (1, 4 * hidden), k_lstm)),   # b_ih + b_hh
        # backward direction
        wih_b=uni(ks[5], (emb_dim, 4 * hidden), k_lstm),
        whh_b=uni(ks[6], (hidden, 4 * hidden), k_lstm),
        b_b=(uni(ks[7], (1, 4 * hidden), k_lstm)
             + uni(ks[8], (1, 4 * hidden), k_lstm)),
        # output head: Linear(2H -> label_size)
        wlin=uni(ks[9], (2 * hidden, labels), k_lin),
        blin=uni(ks[10], (1, labels), k_lin),
    )
    return params


# TODO(synk): CRF submodule is constructed in __init__ but never used in forward(); omitted.

if __name__ == "__main__":
    VOCAB, EMB, HIDDEN, LABELS = 50, 100, 32, 5
    B, T = 2, 8

    key = jax.random.PRNGKey(0)
    k_par, k_ids = jax.random.split(key)

    params = init_params(k_par, VOCAB, EMB, HIDDEN, LABELS)

    lengths = jnp.array([8, 5], dtype=jnp.int32)          # sorted descending (pack_padded)
    ids = jax.random.randint(k_ids, (B, T), 1, VOCAB, dtype=jnp.int32)
    valid = jnp.arange(T)[None, :] < lengths[:, None]
    ids = jnp.where(valid, ids, 0)                        # padding index 0

    logits = jax.block_until_ready(lstm_forward(ids, lengths, params))
    ref = jax.block_until_ready(reference_forward(ids, lengths, params))

    assert logits.shape == (B, T, LABELS), logits.shape
    np.testing.assert_allclose(np.asarray(logits), np.asarray(ref),
                               rtol=2e-2, atol=2e-2)
    print("KERNEL_OK")
</pallas_src>

<mosaic_0001>
module attributes {stable_mosaic.version = 11 : i64} {
  func.func @bilstm_kernel(%arg0: i32, %arg1: memref<64x128xf32, #tpu.memory_space<vmem>>, %arg2: memref<8x8x1xf32, #tpu.memory_space<vmem>>, %arg3: memref<128x256xf32, #tpu.memory_space<vmem>>, %arg4: memref<1x256xf32, #tpu.memory_space<vmem>>, %arg5: memref<32x128xf32, #tpu.memory_space<vmem>>, %arg6: memref<32x128xf32, #tpu.memory_space<vmem>>, %arg7: memref<32x128xf32, #tpu.memory_space<vmem>>, %arg8: memref<32x128xf32, #tpu.memory_space<vmem>>, %arg9: memref<1x128xf32, #tpu.memory_space<vmem>>, %arg10: memref<64x128xf32, #tpu.memory_space<vmem>>, %arg11: memref<64x256xf32, #tpu.memory_space<vmem>>, %arg12: memref<64x32xf32, #tpu.memory_space<vmem>>, %arg13: memref<64x32xf32, #tpu.memory_space<vmem>>) attributes {dimension_semantics = [#tpu.dimension_semantics<arbitrary>], iteration_bounds = array<i64: 1>, scalar_prefetch = 0 : i64, scratch_operands = 3 : i64, tpu.core_type = #tpu.core_type<tc>, window_params = [{pipeline_mode = #tpu.pipeline_mode<synchronous>, transform_indices = @transform_0, window_bounds = array<i64: 64, 128>}, {pipeline_mode = #tpu.pipeline_mode<synchronous>, transform_indices = @transform_1, window_bounds = array<i64: 8, 8, 1>}, {pipeline_mode = #tpu.pipeline_mode<synchronous>, transform_indices = @transform_2, window_bounds = array<i64: 128, 256>}, {pipeline_mode = #tpu.pipeline_mode<synchronous>, transform_indices = @transform_3, window_bounds = array<i64: 1, 256>}, {pipeline_mode = #tpu.pipeline_mode<synchronous>, transform_indices = @transform_4, window_bounds = array<i64: 32, 128>}, {pipeline_mode = #tpu.pipeline_mode<synchronous>, transform_indices = @transform_5, window_bounds = array<i64: 32, 128>}, {pipeline_mode = #tpu.pipeline_mode<synchronous>, transform_indices = @transform_6, window_bounds = array<i64: 32, 128>}, {pipeline_mode = #tpu.pipeline_mode<synchronous>, transform_indices = @transform_7, window_bounds = array<i64: 32, 128>}, {pipeline_mode = #tpu.pipeline_mode<synchronous>, transform_indices = @transform_8, window_bounds = array<i64: 1, 128>}, {pipeline_mode = #tpu.pipeline_mode<synchronous>, transform_indices = @transform_9, window_bounds = array<i64: 64, 128>}]} {
    %c0 = arith.constant 0 : index
    %c0_0 = arith.constant 0 : index
    %0 = vector.load %arg1[%c0, %c0_0] : memref<64x128xf32, #tpu.memory_space<vmem>>, vector<64x128xf32>
    %c0_1 = arith.constant 0 : index
    %c0_2 = arith.constant 0 : index
    %1 = vector.load %arg3[%c0_1, %c0_2] : memref<128x256xf32, #tpu.memory_space<vmem>>, vector<128x256xf32>
    %cst = arith.constant dense<0.000000e+00> : vector<64x256xf32>
    %2 = tpu.matmul %0, %1, %cst {dimension_numbers = #tpu.dot_dimension_numbers<[1], [0], [0], [1], [0, 0, 1, 1], [], []>} : vector<64x128xf32>, vector<128x256xf32>, vector<64x256xf32> -> vector<64x256xf32>
    %c0_3 = arith.constant 0 : index
    %c0_4 = arith.constant 0 : index
    %3 = vector.load %arg4[%c0_3, %c0_4] : memref<1x256xf32, #tpu.memory_space<vmem>>, vector<1x256xf32>
    %4 = vector.broadcast %3 : vector<1x256xf32> to vector<64x256xf32>
    %5 = arith.addf %2, %4 : vector<64x256xf32>
    %c0_5 = arith.constant 0 : index
    %c0_6 = arith.constant 0 : index
    %6 = vector.load %arg11[%c0_5, %c0_6] : memref<64x256xf32, #tpu.memory_space<vmem>>, vector<64x256xf32>
    tpu.vector_store %arg11[%c0_5, %c0_6], %5 {strides = array<i32>} : memref<64x256xf32, #tpu.memory_space<vmem>>, vector<64x256xf32>,
    %c0_7 = arith.constant 0 : index
    %c0_8 = arith.constant 0 : index
    %7 = vector.load %arg5[%c0_7, %c0_8] : memref<32x128xf32, #tpu.memory_space<vmem>>, vector<32x128xf32>
    %c0_9 = arith.constant 0 : index
    %c0_10 = arith.constant 0 : index
    %8 = vector.load %arg6[%c0_9, %c0_10] : memref<32x128xf32, #tpu.memory_space<vmem>>, vector<32x128xf32>
    %cst_11 = arith.constant 0.000000e+00 : f32
    %9 = vector.broadcast %cst_11 : f32 to vector<8x32xf32>
    %c0_i32 = arith.constant 0 : i32
    %c7_i32 = arith.constant 7 : i32
    %10 = arith.subi %c7_i32, %c0_i32 : i32
    %c8_i32 = arith.constant 8 : i32
    %11 = arith.muli %c0_i32, %c8_i32 : i32
    %12 = tpu.assume_multiple %11, 8 : i32
    %c8_i32_12 = arith.constant 8 : i32
    %13 = arith.muli %10, %c8_i32_12 : i32
    %14 = tpu.assume_multiple %13, 8 : i32
    %15 = arith.index_cast %12 : i32 to index
    %c0_13 = arith.constant 0 : index
    %16 = vector.load %arg11[%15, %c0_13] : memref<64x256xf32, #tpu.memory_space<vmem>>, vector<8x128xf32>
    %cst_14 = arith.constant dense<0.000000e+00> : vector<8x128xf32>
    %17 = tpu.matmul %9, %7, %cst_14 {dimension_numbers = #tpu.dot_dimension_numbers<[1], [0], [0], [1], [0, 0, 1, 1], [], []>} : vector<8x32xf32>, vector<32x128xf32>, vector<8x128xf32> -> vector<8x128xf32>
    %18 = arith.addf %16, %17 : vector<8x128xf32>
    %19 = arith.index_cast %14 : i32 to index
    %c128 = arith.constant 128 : index
    %20 = vector.load %arg11[%19, %c128] : memref<64x256xf32, #tpu.memory_space<vmem>>, vector<8x128xf32>
    %cst_15 = arith.constant dense<0.000000e+00> : vector<8x128xf32>
    %21 = tpu.matmul %9, %8, %cst_15 {dimension_numbers = #tpu.dot_dimension_numbers<[1], [0], [0], [1], [0, 0, 1, 1], [], []>} : vector<8x32xf32>, vector<32x128xf32>, vector<8x128xf32> -> vector<8x128xf32>
    %22 = arith.addf %20, %21 : vector<8x128xf32>
    %23 = vector.extract_strided_slice %18 {offsets = [0, 0], sizes = [8, 32], strides = [1, 1]} : vector<8x128xf32> to vector<8x32xf32>
    %24 = arith.negf %23 : vector<8x32xf32>
    %25 = math.exp %24 : vector<8x32xf32>
    %cst_16 = arith.constant 1.000000e+00 : f32
    %26 = vector.broadcast %cst_16 : f32 to vector<8x32xf32>
    %27 = arith.addf %26, %25 : vector<8x32xf32>
    %28 = arith.divf %26, %27 : vector<8x32xf32>
    %29 = vector.extract_strided_slice %18 {offsets = [0, 32], sizes = [8, 32], strides = [1, 1]} : vector<8x128xf32> to vector<8x32xf32>
    %30 = arith.negf %29 : vector<8x32xf32>
    %31 = math.exp %30 : vector<8x32xf32>
    %cst_17 = arith.constant 1.000000e+00 : f32
    %32 = vector.broadcast %cst_17 : f32 to vector<8x32xf32>
    %33 = arith.addf %32, %31 : vector<8x32xf32>
    %34 = arith.divf %32, %33 : vector<8x32xf32>
    %35 = vector.extract_strided_slice %18 {offsets = [0, 64], sizes = [8, 32], strides = [1, 1]} : vector<8x128xf32> to vector<8x32xf32>
    %36 = math.tanh %35 : vector<8x32xf32>
    %37 = vector.extract_strided_slice %18 {offsets = [0, 96], sizes = [8, 32], strides = [1, 1]} : vector<8x128xf32> to vector<8x32xf32>
    %38 = arith.negf %37 : vector<8x32xf32>
    %39 = math.exp %38 : vector<8x32xf32>
    %cst_18 = arith.constant 1.000000e+00 : f32
    %40 = vector.broadcast %cst_18 : f32 to vector<8x32xf32>
    %41 = arith.addf %40, %39 : vector<8x32xf32>
    %42 = arith.divf %40, %41 : vector<8x32xf32>
    %43 = arith.mulf %34, %9 : vector<8x32xf32>
    %44 = arith.mulf %28, %36 : vector<8x32xf32>
    %45 = arith.addf %43, %44 : vector<8x32xf32>
    %46 = math.tanh %45 : vector<8x32xf32>
    %47 = arith.mulf %42, %46 : vector<8x32xf32>
    %48 = vector.extract_strided_slice %22 {offsets = [0, 0], sizes = [8, 32], strides = [1, 1]} : vector<8x128xf32> to vector<8x32xf32>
    %49 = arith.negf %48 : vector<8x32xf32>
    %50 = math.exp %49 : vector<8x32xf32>
    %cst_19 = arith.constant 1.000000e+00 : f32
    %51 = vector.broadcast %cst_19 : f32 to vector<8x32xf32>
    %52 = arith.addf %51, %50 : vector<8x32xf32>
    %53 = arith.divf %51, %52 : vector<8x32xf32>
    %54 = vector.extract_strided_slice %22 {offsets = [0, 32], sizes = [8, 32], strides = [1, 1]} : vector<8x128xf32> to vector<8x32xf32>
    %55 = arith.negf %54 : vector<8x32xf32>
    %56 = math.exp %55 : vector<8x32xf32>
    %cst_20 = arith.constant 1.000000e+00 : f32
    %57 = vector.broadcast %cst_20 : f32 to vector<8x32xf32>
    %58 = arith.addf %57, %56 : vector<8x32xf32>
    %59 = arith.divf %57, %58 : vector<8x32xf32>
    %60 = vector.extract_strided_slice %22 {offsets = [0, 64], sizes = [8, 32], strides = [1, 1]} : vector<8x128xf32> to vector<8x32xf32>
    %61 = math.tanh %60 : vector<8x32xf32>
    %62 = vector.extract_strided_slice %22 {offsets = [0, 96], sizes = [8, 32], strides = [1, 1]} : vector<8x128xf32> to vector<8x32xf32>
    %63 = arith.negf %62 : vector<8x32xf32>
    %64 = math.exp %63 : vector<8x32xf32>
    %cst_21 = arith.constant 1.000000e+00 : f32
    %65 = vector.broadcast %cst_21 : f32 to vector<8x32xf32>
    %66 = arith.addf %65, %64 : vector<8x32xf32>
    %67 = arith.divf %65, %66 : vector<8x32xf32>
    %68 = arith.mulf %59, %9 : vector<8x32xf32>
    %69 = arith.mulf %53, %61 : vector<8x32xf32>
    %70 = arith.addf %68, %69 : vector<8x32xf32>
    %71 = math.tanh %70 : vector<8x32xf32>
    %72 = arith.mulf %67, %71 : vector<8x32xf32>
    %73 = arith.index_cast %c0_i32 : i32 to index
    %c0_22 = arith.constant 0 : index
    %c0_23 = arith.constant 0 : index
    %74 = vector.load %arg2[%73, %c0_22, %c0_23] : memref<8x8x1xf32, #tpu.memory_space<vmem>>, vector<1x8x1xf32>
    %75 = vector.shape_cast %74 : vector<1x8x1xf32> to vector<8x1xf32>
    %76 = arith.index_cast %10 : i32 to index
    %c0_24 = arith.constant 0 : index
    %c0_25 = arith.constant 0 : index
    %77 = vector.load %arg2[%76, %c0_24, %c0_25] : memref<8x8x1xf32, #tpu.memory_space<vmem>>, vector<1x8x1xf32>
    %78 = vector.shape_cast %77 : vector<1x8x1xf32> to vector<8x1xf32>
    %79 = vector.broadcast %75 : vector<8x1xf32> to vector<8x32xf32>
    %80 = arith.mulf %79, %47 : vector<8x32xf32>
    %81 = arith.index_cast %12 : i32 to index
    %c0_26 = arith.constant 0 : index
    %82 = vector.load %arg12[%81, %c0_26] : memref<64x32xf32, #tpu.memory_space<vmem>>, vector<8x32xf32>
    tpu.vector_store %arg12[%81, %c0_26], %80 {strides = array<i32>} : memref<64x32xf32, #tpu.memory_space<vmem>>, vector<8x32xf32>,
    %83 = vector.broadcast %78 : vector<8x1xf32> to vector<8x32xf32>
    %84 = arith.mulf %83, %72 : vector<8x32xf32>
    %85 = arith.index_cast %14 : i32 to index
    %c0_27 = arith.constant 0 : index
    %86 = vector.load %arg13[%85, %c0_27] : memref<64x32xf32, #tpu.memory_space<vmem>>, vector<8x32xf32>
    tpu.vector_store %arg13[%85, %c0_27], %84 {strides = array<i32>} : memref<64x32xf32, #tpu.memory_space<vmem>>, vector<8x32xf32>,
    %87 = vector.broadcast %75 : vector<8x1xf32> to vector<8x32xf32>
    %88 = arith.mulf %87, %47 : vector<8x32xf32>
    %cst_28 = arith.constant 1.000000e+00 : f32
    %89 = vector.broadcast %cst_28 : f32 to vector<8x1xf32>
    %90 = arith.subf %89, %75 : vector<8x1xf32>
    %91 = vector.broadcast %90 : vector<8x1xf32> to vector<8x32xf32>
    %92 = arith.mulf %91, %9 : vector<8x32xf32>
    %93 = arith.addf %88, %92 : vector<8x32xf32>
    %94 = vector.broadcast %75 : vector<8x1xf32> to vector<8x32xf32>
    %95 = arith.mulf %94, %45 : vector<8x32xf32>
    %cst_29 = arith.constant 1.000000e+00 : f32
    %96 = vector.broadcast %cst_29 : f32 to vector<8x1xf32>
    %97 = arith.subf %96, %75 : vector<8x1xf32>
    %98 = vector.broadcast %97 : vector<8x1xf32> to vector<8x32xf32>
    %99 = arith.mulf %98, %9 : vector<8x32xf32>
    %100 = arith.addf %95, %99 : vector<8x32xf32>
    %101 = vector.broadcast %78 : vector<8x1xf32> to vector<8x32xf32>
    %102 = arith.mulf %101, %72 : vector<8x32xf32>
    %cst_30 = arith.constant 1.000000e+00 : f32
    %103 = vector.broadcast %cst_30 : f32 to vector<8x1xf32>
    %104 = arith.subf %103, %78 : vector<8x1xf32>
    %105 = vector.broadcast %104 : vector<8x1xf32> to vector<8x32xf32>
    %106 = arith.mulf %105, %9 : vector<8x32xf32>
    %107 = arith.addf %102, %106 : vector<8x32xf32>
    %108 = vector.broadcast %78 : vector<8x1xf32> to vector<8x32xf32>
    %109 = arith.mulf %108, %70 : vector<8x32xf32>
    %cst_31 = arith.constant 1.000000e+00 : f32
    %110 = vector.broadcast %cst_31 : f32 to vector<8x1xf32>
    %111 = arith.subf %110, %78 : vector<8x1xf32>
    %112 = vector.broadcast %111 : vector<8x1xf32> to vector<8x32xf32>
    %113 = arith.mulf %112, %9 : vector<8x32xf32>
    %114 = arith.addf %109, %113 : vector<8x32xf32>
    %c1_i32 = arith.constant 1 : i32
    %c7_i32_32 = arith.constant 7 : i32
    %115 = arith.subi %c7_i32_32, %c1_i32 : i32
    %c8_i32_33 = arith.constant 8 : i32
    %116 = arith.muli %c1_i32, %c8_i32_33 : i32
    %117 = tpu.assume_multiple %116, 8 : i32
    %c8_i32_34 = arith.constant 8 : i32
    %118 = arith.muli %115, %c8_i32_34 : i32
    %119 = tpu.assume_multiple %118, 8 : i32
    %120 = arith.index_cast %117 : i32 to index
    %c0_35 = arith.constant 0 : index
    %121 = vector.load %arg11[%120, %c0_35] : memref<64x256xf32, #tpu.memory_space<vmem>>, vector<8x128xf32>
    %cst_36 = arith.constant dense<0.000000e+00> : vector<8x128xf32>
    %122 = tpu.matmul %93, %7, %cst_36 {dimension_numbers = #tpu.dot_dimension_numbers<[1], [0], [0], [1], [0, 0, 1, 1], [], []>} : vector<8x32xf32>, vector<32x128xf32>, vector<8x128xf32> -> vector<8x128xf32>
    %123 = arith.addf %121, %122 : vector<8x128xf32>
    %124 = arith.index_cast %119 : i32 to index
    %c128_37 = arith.constant 128 : index
    %125 = vector.load %arg11[%124, %c128_37] : memref<64x256xf32, #tpu.memory_space<vmem>>, vector<8x128xf32>
    %cst_38 = arith.constant dense<0.000000e+00> : vector<8x128xf32>
    %126 = tpu.matmul %107, %8, %cst_38 {dimension_numbers = #tpu.dot_dimension_numbers<[1], [0], [0], [1], [0, 0, 1, 1], [], []>} : vector<8x32xf32>, vector<32x128xf32>, vector<8x128xf32> -> vector<8x128xf32>
    %127 = arith.addf %125, %126 : vector<8x128xf32>
    %128 = vector.extract_strided_slice %123 {offsets = [0, 0], sizes = [8, 32], strides = [1, 1]} : vector<8x128xf32> to vector<8x32xf32>
    %129 = arith.negf %128 : vector<8x32xf32>
    %130 = math.exp %129 : vector<8x32xf32>
    %cst_39 = arith.constant 1.000000e+00 : f32
    %131 = vector.broadcast %cst_39 : f32 to vector<8x32xf32>
    %132 = arith.addf %131, %130 : vector<8x32xf32>
    %133 = arith.divf %131, %132 : vector<8x32xf32>
    %134 = vector.extract_strided_slice %123 {offsets = [0, 32], sizes = [8, 32], strides = [1, 1]} : vector<8x128xf32> to vector<8x32xf32>
    %135 = arith.negf %134 : vector<8x32xf32>
    %136 = math.exp %135 : vector<8x32xf32>
    %cst_40 = arith.constant 1.000000e+00 : f32
    %137 = vector.broadcast %cst_40 : f32 to vector<8x32xf32>
    %138 = arith.addf %137, %136 : vector<8x32xf32>
    %139 = arith.divf %137, %138 : vector<8x32xf32>
    %140 = vector.extract_strided_slice %123 {offsets = [0, 64], sizes = [8, 32], strides = [1, 1]} : vector<8x128xf32> to vector<8x32xf32>
    %141 = math.tanh %140 : vector<8x32xf32>
    %142 = vector.extract_strided_slice %123 {offsets = [0, 96], sizes = [8, 32], strides = [1, 1]} : vector<8x128xf32> to vector<8x32xf32>
    %143 = arith.negf %142 : vector<8x32xf32>
    %144 = math.exp %143 : vector<8x32xf32>
    %cst_41 = arith.constant 1.000000e+00 : f32
    %145 = vector.broadcast %cst_41 : f32 to vector<8x32xf32>
    %146 = arith.addf %145, %144 : vector<8x32xf32>
    %147 = arith.divf %145, %146 : vector<8x32xf32>
    %148 = arith.mulf %139, %100 : vector<8x32xf32>
    %149 = arith.mulf %133, %141 : vector<8x32xf32>
    %150 = arith.addf %148, %149 : vector<8x32xf32>
    %151 = math.tanh %150 : vector<8x32xf32>
    %152 = arith.mulf %147, %151 : vector<8x32xf32>
    %153 = vector.extract_strided_slice %127 {offsets = [0, 0], sizes = [8, 32], strides = [1, 1]} : vector<8x128xf32> to vector<8x32xf32>
    %154 = arith.negf %153 : vector<8x32xf32>
    %155 = math.exp %154 : vector<8x32xf32>
    %cst_42 = arith.constant 1.000000e+00 : f32
    %156 = vector.broadcast %cst_42 : f32 to vector<8x32xf32>
    %157 = arith.addf %156, %155 : vector<8x32xf32>
    %158 = arith.divf %156, %157 : vector<8x32xf32>
    %159 = vector.extract_strided_slice %127 {offsets = [0, 32], sizes = [8, 32], strides = [1, 1]} : vector<8x128xf32> to vector<8x32xf32>
    %160 = arith.negf %159 : vector<8x32xf32>
    %161 = math.exp %160 : vector<8x32xf32>
    %cst_43 = arith.constant 1.000000e+00 : f32
    %162 = vector.broadcast %cst_43 : f32 to vector<8x32xf32>
    %163 = arith.addf %162, %161 : vector<8x32xf32>
    %164 = arith.divf %162, %163 : vector<8x32xf32>
    %165 = vector.extract_strided_slice %127 {offsets = [0, 64], sizes = [8, 32], strides = [1, 1]} : vector<8x128xf32> to vector<8x32xf32>
    %166 = math.tanh %165 : vector<8x32xf32>
    %167 = vector.extract_strided_slice %127 {offsets = [0, 96], sizes = [8, 32], strides = [1, 1]} : vector<8x128xf32> to vector<8x32xf32>
    %168 = arith.negf %167 : vector<8x32xf32>
    %169 = math.exp %168 : vector<8x32xf32>
    %cst_44 = arith.constant 1.000000e+00 : f32
    %170 = vector.broadcast %cst_44 : f32 to vector<8x32xf32>
    %171 = arith.addf %170, %169 : vector<8x32xf32>
    %172 = arith.divf %170, %171 : vector<8x32xf32>
    %173 = arith.mulf %164, %114 : vector<8x32xf32>
    %174 = arith.mulf %158, %166 : vector<8x32xf32>
    %175 = arith.addf %173, %174 : vector<8x32xf32>
    %176 = math.tanh %175 : vector<8x32xf32>
    %177 = arith.mulf %172, %176 : vector<8x32xf32>
    %178 = arith.index_cast %c1_i32 : i32 to index
    %c0_45 = arith.constant 0 : index
    %c0_46 = arith.constant 0 : index
    %179 = vector.load %arg2[%178, %c0_45, %c0_46] : memref<8x8x1xf32, #tpu.memory_space<vmem>>, vector<1x8x1xf32>
    %180 = vector.shape_cast %179 : vector<1x8x1xf32> to vector<8x1xf32>
    %181 = arith.index_cast %115 : i32 to index
    %c0_47 = arith.constant 0 : index
    %c0_48 = arith.constant 0 : index
    %182 = vector.load %arg2[%181, %c0_47, %c0_48] : memref<8x8x1xf32, #tpu.memory_space<vmem>>, vector<1x8x1xf32>
    %183 = vector.shape_cast %182 : vector<1x8x1xf32> to vector<8x1xf32>
    %184 = vector.broadcast %180 : vector<8x1xf32> to vector<8x32xf32>
    %185 = arith.mulf %184, %152 : vector<8x32xf32>
    %186 = arith.index_cast %117 : i32 to index
    %c0_49 = arith.constant 0 : index
    %187 = vector.load %arg12[%186, %c0_49] : memref<64x32xf32, #tpu.memory_space<vmem>>, vector<8x32xf32>
    tpu.vector_store %arg12[%186, %c0_49], %185 {strides = array<i32>} : memref<64x32xf32, #tpu.memory_space<vmem>>, vector<8x32xf32>,
    %188 = vector.broadcast %183 : vector<8x1xf32> to vector<8x32xf32>
    %189 = arith.mulf %188, %177 : vector<8x32xf32>
    %190 = arith.index_cast %119 : i32 to index
    %c0_50 = arith.constant 0 : index
    %191 = vector.load %arg13[%190, %c0_50] : memref<64x32xf32, #tpu.memory_space<vmem>>, vector<8x32xf32>
    tpu.vector_store %arg13[%190, %c0_50], %189 {strides = array<i32>} : memref<64x32xf32, #tpu.memory_space<vmem>>, vector<8x32xf32>,
    %192 = vector.broadcast %180 : vector<8x1xf32> to vector<8x32xf32>
    %193 = arith.mulf %192, %152 : vector<8x32xf32>
    %cst_51 = arith.constant 1.000000e+00 : f32
    %194 = vector.broadcast %cst_51 : f32 to vector<8x1xf32>
    %195 = arith.subf %194, %180 : vector<8x1xf32>
    %196 = vector.broadcast %195 : vector<8x1xf32> to vector<8x32xf32>
    %197 = arith.mulf %196, %93 : vector<8x32xf32>
    %198 = arith.addf %193, %197 : vector<8x32xf32>
    %199 = vector.broadcast %180 : vector<8x1xf32> to vector<8x32xf32>
    %200 = arith.mulf %199, %150 : vector<8x32xf32>
    %cst_52 = arith.constant 1.000000e+00 : f32
    %201 = vector.broadcast %cst_52 : f32 to vector<8x1xf32>
    %202 = arith.subf %201, %180 : vector<8x1xf32>
    %203 = vector.broadcast %202 : vector<8x1xf32> to vector<8x32xf32>
    %204 = arith.mulf %203, %100 : vector<8x32xf32>
    %205 = arith.addf %200, %204 : vector<8x32xf32>
    %206 = vector.broadcast %183 : vector<8x1xf32> to vector<8x32xf32>
    %207 = arith.mulf %206, %177 : vector<8x32xf32>
    %cst_53 = arith.constant 1.000000e+00 : f32
    %208 = vector.broadcast %cst_53 : f32 to vector<8x1xf32>
    %209 = arith.subf %208, %183 : vector<8x1xf32>
    %210 = vector.broadcast %209 : vector<8x1xf32> to vector<8x32xf32>
    %211 = arith.mulf %210, %107 : vector<8x32xf32>
    %212 = arith.addf %207, %211 : vector<8x32xf32>
    %213 = vector.broadcast %183 : vector<8x1xf32> to vector<8x32xf32>
    %214 = arith.mulf %213, %175 : vector<8x32xf32>
    %cst_54 = arith.constant 1.000000e+00 : f32
    %215 = vector.broadcast %cst_54 : f32 to vector<8x1xf32>
    %216 = arith.subf %215, %183 : vector<8x1xf32>
    %217 = vector.broadcast %216 : vector<8x1xf32> to vector<8x32xf32>
    %218 = arith.mulf %217, %114 : vector<8x32xf32>
    %219 = arith.addf %214, %218 : vector<8x32xf32>
    %c2_i32 = arith.constant 2 : i32
    %c7_i32_55 = arith.constant 7 : i32
    %220 = arith.subi %c7_i32_55, %c2_i32 : i32
    %c8_i32_56 = arith.constant 8 : i32
    %221 = arith.muli %c2_i32, %c8_i32_56 : i32
    %222 = tpu.assume_multiple %221, 8 : i32
    %c8_i32_57 = arith.constant 8 : i32
    %223 = arith.muli %220, %c8_i32_57 : i32
    %224 = tpu.assume_multiple %223, 8 : i32
    %225 = arith.index_cast %222 : i32 to index
    %c0_58 = arith.constant 0 : index
    %226 = vector.load %arg11[%225, %c0_58] : memref<64x256xf32, #tpu.memory_space<vmem>>, vector<8x128xf32>
    %cst_59 = arith.constant dense<0.000000e+00> : vector<8x128xf32>
    %227 = tpu.matmul %198, %7, %cst_59 {dimension_numbers = #tpu.dot_dimension_numbers<[1], [0], [0], [1], [0, 0, 1, 1], [], []>} : vector<8x32xf32>, vector<32x128xf32>, vector<8x128xf32> -> vector<8x128xf32>
    %228 = arith.addf %226, %227 : vector<8x128xf32>
    %229 = arith.index_cast %224 : i32 to index
    %c128_60 = arith.constant 128 : index
    %230 = vector.load %arg11[%229, %c128_60] : memref<64x256xf32, #tpu.memory_space<vmem>>, vector<8x128xf32>
    %cst_61 = arith.constant dense<0.000000e+00> : vector<8x128xf32>
    %231 = tpu.matmul %212, %8, %cst_61 {dimension_numbers = #tpu.dot_dimension_numbers<[1], [0], [0], [1], [0, 0, 1, 1], [], []>} : vector<8x32xf32>, vector<32x128xf32>, vector<8x128xf32> -> vector<8x128xf32>
    %232 = arith.addf %230, %231 : vector<8x128xf32>
    %233 = vector.extract_strided_slice %228 {offsets = [0, 0], sizes = [8, 32], strides = [1, 1]} : vector<8x128xf32> to vector<8x32xf32>
    %234 = arith.negf %233 : vector<8x32xf32>
    %235 = math.exp %234 : vector<8x32xf32>
    %cst_62 = arith.constant 1.000000e+00 : f32
    %236 = vector.broadcast %cst_62 : f32 to vector<8x32xf32>
    %237 = arith.addf %236, %235 : vector<8x32xf32>
    %238 = arith.divf %236, %237 : vector<8x32xf32>
    %239 = vector.extract_strided_slice %228 {offsets = [0, 32], sizes = [8, 32], strides = [1, 1]} : vector<8x128xf32> to vector<8x32xf32>
    %240 = arith.negf %239 : vector<8x32xf32>
    %241 = math.exp %240 : vector<8x32xf32>
    %cst_63 = arith.constant 1.000000e+00 : f32
    %242 = vector.broadcast %cst_63 : f32 to vector<8x32xf32>
    %243 = arith.addf %242, %241 : vector<8x32xf32>
    %244 = arith.divf %242, %243 : vector<8x32xf32>
    %245 = vector.extract_strided_slice %228 {offsets = [0, 64], sizes = [8, 32], strides = [1, 1]} : vector<8x128xf32> to vector<8x32xf32>
    %246 = math.tanh %245 : vector<8x32xf32>
    %247 = vector.extract_strided_slice %228 {offsets = [0, 96], sizes = [8, 32], strides = [1, 1]} : vector<8x128xf32> to vector<8x32xf32>
    %248 = arith.negf %247 : vector<8x32xf32>
    %249 = math.exp %248 : vector<8x32xf32>
    %cst_64 = arith.constant 1.000000e+00 : f32
    %250 = vector.broadcast %cst_64 : f32 to vector<8x32xf32>
    %251 = arith.addf %250, %249 : vector<8x32xf32>
    %252 = arith.divf %250, %251 : vector<8x32xf32>
    %253 = arith.mulf %244, %205 : vector<8x32xf32>
    %254 = arith.mulf %238, %246 : vector<8x32xf32>
    %255 = arith.addf %253, %254 : vector<8x32xf32>
    %256 = math.tanh %255 : vector<8x32xf32>
    %257 = arith.mulf %252, %256 : vector<8x32xf32>
    %258 = vector.extract_strided_slice %232 {offsets = [0, 0], sizes = [8, 32], strides = [1, 1]} : vector<8x128xf32> to vector<8x32xf32>
    %259 = arith.negf %258 : vector<8x32xf32>
    %260 = math.exp %259 : vector<8x32xf32>
    %cst_65 = arith.constant 1.000000e+00 : f32
    %261 = vector.broadcast %cst_65 : f32 to vector<8x32xf32>
    %262 = arith.addf %261, %260 : vector<8x32xf32>
    %263 = arith.divf %261, %262 : vector<8x32xf32>
    %264 = vector.extract_strided_slice %232 {offsets = [0, 32], sizes = [8, 32], strides = [1, 1]} : vector<8x128xf32> to vector<8x32xf32>
    %265 = arith.negf %264 : vector<8x32xf32>
    %266 = math.exp %265 : vector<8x32xf32>
    %cst_66 = arith.constant 1.000000e+00 : f32
    %267 = vector.broadcast %cst_66 : f32 to vector<8x32xf32>
    %268 = arith.addf %267, %266 : vector<8x32xf32>
    %269 = arith.divf %267, %268 : vector<8x32xf32>
    %270 = vector.extract_strided_slice %232 {offsets = [0, 64], sizes = [8, 32], strides = [1, 1]} : vector<8x128xf32> to vector<8x32xf32>
    %271 = math.tanh %270 : vector<8x32xf32>
    %272 = vector.extract_strided_slice %232 {offsets = [0, 96], sizes = [8, 32], strides = [1, 1]} : vector<8x128xf32> to vector<8x32xf32>
    %273 = arith.negf %272 : vector<8x32xf32>
    %274 = math.exp %273 : vector<8x32xf32>
    %cst_67 = arith.constant 1.000000e+00 : f32
    %275 = vector.broadcast %cst_67 : f32 to vector<8x32xf32>
    %276 = arith.addf %275, %274 : vector<8x32xf32>
    %277 = arith.divf %275, %276 : vector<8x32xf32>
    %278 = arith.mulf %269, %219 : vector<8x32xf32>
    %279 = arith.mulf %263, %271 : vector<8x32xf32>
    %280 = arith.addf %278, %279 : vector<8x32xf32>
    %281 = math.tanh %280 : vector<8x32xf32>
    %282 = arith.mulf %277, %281 : vector<8x32xf32>
    %283 = arith.index_cast %c2_i32 : i32 to index
    %c0_68 = arith.constant 0 : index
    %c0_69 = arith.constant 0 : index
    %284 = vector.load %arg2[%283, %c0_68, %c0_69] : memref<8x8x1xf32, #tpu.memory_space<vmem>>, vector<1x8x1xf32>
    %285 = vector.shape_cast %284 : vector<1x8x1xf32> to vector<8x1xf32>
    %286 = arith.index_cast %220 : i32 to index
    %c0_70 = arith.constant 0 : index
    %c0_71 = arith.constant 0 : index
    %287 = vector.load %arg2[%286, %c0_70, %c0_71] : memref<8x8x1xf32, #tpu.memory_space<vmem>>, vector<1x8x1xf32>
    %288 = vector.shape_cast %287 : vector<1x8x1xf32> to vector<8x1xf32>
    %289 = vector.broadcast %285 : vector<8x1xf32> to vector<8x32xf32>
    %290 = arith.mulf %289, %257 : vector<8x32xf32>
    %291 = arith.index_cast %222 : i32 to index
    %c0_72 = arith.constant 0 : index
    %292 = vector.load %arg12[%291, %c0_72] : memref<64x32xf32, #tpu.memory_space<vmem>>, vector<8x32xf32>
    tpu.vector_store %arg12[%291, %c0_72], %290 {strides = array<i32>} : memref<64x32xf32, #tpu.memory_space<vmem>>, vector<8x32xf32>,
    %293 = vector.broadcast %288 : vector<8x1xf32> to vector<8x32xf32>
    %294 = arith.mulf %293, %282 : vector<8x32xf32>
    %295 = arith.index_cast %224 : i32 to index
    %c0_73 = arith.constant 0 : index
    %296 = vector.load %arg13[%295, %c0_73] : memref<64x32xf32, #tpu.memory_space<vmem>>, vector<8x32xf32>
    tpu.vector_store %arg13[%295, %c0_73], %294 {strides = array<i32>} : memref<64x32xf32, #tpu.memory_space<vmem>>, vector<8x32xf32>,
    %297 = vector.broadcast %285 : vector<8x1xf32> to vector<8x32xf32>
    %298 = arith.mulf %297, %257 : vector<8x32xf32>
    %cst_74 = arith.constant 1.000000e+00 : f32
    %299 = vector.broadcast %cst_74 : f32 to vector<8x1xf32>
    %300 = arith.subf %299, %285 : vector<8x1xf32>
    %301 = vector.broadcast %300 : vector<8x1xf32> to vector<8x32xf32>
    %302 = arith.mulf %301, %198 : vector<8x32xf32>
    %303 = arith.addf %298, %302 : vector<8x32xf32>
    %304 = vector.broadcast %285 : vector<8x1xf32> to vector<8x32xf32>
    %305 = arith.mulf %304, %255 : vector<8x32xf32>
    %cst_75 = arith.constant 1.000000e+00 : f32
    %306 = vector.broadcast %cst_75 : f32 to vector<8x1xf32>
    %307 = arith.subf %306, %285 : vector<8x1xf32>
    %308 = vector.broadcast %307 : vector<8x1xf32> to vector<8x32xf32>
    %309 = arith.mulf %308, %205 : vector<8x32xf32>
    %310 = arith.addf %305, %309 : vector<8x32xf32>
    %311 = vector.broadcast %288 : vector<8x1xf32> to vector<8x32xf32>
    %312 = arith.mulf %311, %282 : vector<8x32xf32>
    %cst_76 = arith.constant 1.000000e+00 : f32
    %313 = vector.broadcast %cst_76 : f32 to vector<8x1xf32>
    %314 = arith.subf %313, %288 : vector<8x1xf32>
    %315 = vector.broadcast %314 : vector<8x1xf32> to vector<8x32xf32>
    %316 = arith.mulf %315, %212 : vector<8x32xf32>
    %317 = arith.addf %312, %316 : vector<8x32xf32>
    %318 = vector.broadcast %288 : vector<8x1xf32> to vector<8x32xf32>
    %319 = arith.mulf %318, %280 : vector<8x32xf32>
    %cst_77 = arith.constant 1.000000e+00 : f32
    %320 = vector.broadcast %cst_77 : f32 to vector<8x1xf32>
    %321 = arith.subf %320, %288 : vector<8x1xf32>
    %322 = vector.broadcast %321 : vector<8x1xf32> to vector<8x32xf32>
    %323 = arith.mulf %322, %219 : vector<8x32xf32>
    %324 = arith.addf %319, %323 : vector<8x32xf32>
    %c3_i32 = arith.constant 3 : i32
    %c7_i32_78 = arith.constant 7 : i32
    %325 = arith.subi %c7_i32_78, %c3_i32 : i32
    %c8_i32_79 = arith.constant 8 : i32
    %326 = arith.muli %c3_i32, %c8_i32_79 : i32
    %327 = tpu.assume_multiple %326, 8 : i32
    %c8_i32_80 = arith.constant 8 : i32
    %328 = arith.muli %325, %c8_i32_80 : i32
    %329 = tpu.assume_multiple %328, 8 : i32
    %330 = arith.index_cast %327 : i32 to index
    %c0_81 = arith.constant 0 : index
    %331 = vector.load %arg11[%330, %c0_81] : memref<64x256xf32, #tpu.memory_space<vmem>>, vector<8x128xf32>
    %cst_82 = arith.constant dense<0.000000e+00> : vector<8x128xf32>
    %332 = tpu.matmul %303, %7, %cst_82 {dimension_numbers = #tpu.dot_dimension_numbers<[1], [0], [0], [1], [0, 0, 1, 1], [], []>} : vector<8x32xf32>, vector<32x128xf32>, vector<8x128xf32> -> vector<8x128xf32>
    %333 = arith.addf %331, %332 : vector<8x128xf32>
    %334 = arith.index_cast %329 : i32 to index
    %c128_83 = arith.constant 128 : index
    %335 = vector.load %arg11[%334, %c128_83] : memref<64x256xf32, #tpu.memory_space<vmem>>, vector<8x128xf32>
    %cst_84 = arith.constant dense<0.000000e+00> : vector<8x128xf32>
    %336 = tpu.matmul %317, %8, %cst_84 {dimension_numbers = #tpu.dot_dimension_numbers<[1], [0], [0], [1], [0, 0, 1, 1], [], []>} : vector<8x32xf32>, vector<32x128xf32>, vector<8x128xf32> -> vector<8x128xf32>
    %337 = arith.addf %335, %336 : vector<8x128xf32>
    %338 = vector.extract_strided_slice %333 {offsets = [0, 0], sizes = [8, 32], strides = [1, 1]} : vector<8x128xf32> to vector<8x32xf32>
    %339 = arith.negf %338 : vector<8x32xf32>
    %340 = math.exp %339 : vector<8x32xf32>
    %cst_85 = arith.constant 1.000000e+00 : f32
    %341 = vector.broadcast %cst_85 : f32 to vector<8x32xf32>
    %342 = arith.addf %341, %340 : vector<8x32xf32>
    %343 = arith.divf %341, %342 : vector<8x32xf32>
    %344 = vector.extract_strided_slice %333 {offsets = [0, 32], sizes = [8, 32], strides = [1, 1]} : vector<8x128xf32> to vector<8x32xf32>
    %345 = arith.negf %344 : vector<8x32xf32>
    %346 = math.exp %345 : vector<8x32xf32>
    %cst_86 = arith.constant 1.000000e+00 : f32
    %347 = vector.broadcast %cst_86 : f32 to vector<8x32xf32>
    %348 = arith.addf %347, %346 : vector<8x32xf32>
    %349 = arith.divf %347, %348 : vector<8x32xf32>
    %350 = vector.extract_strided_slice %333 {offsets = [0, 64], sizes = [8, 32], strides = [1, 1]} : vector<8x128xf32> to vector<8x32xf32>
    %351 = math.tanh %350 : vector<8x32xf32>
    %352 = vector.extract_strided_slice %333 {offsets = [0, 96], sizes = [8, 32], strides = [1, 1]} : vector<8x128xf32> to vector<8x32xf32>
    %353 = arith.negf %352 : vector<8x32xf32>
    %354 = math.exp %353 : vector<8x32xf32>
    %cst_87 = arith.constant 1.000000e+00 : f32
    %355 = vector.broadcast %cst_87 : f32 to vector<8x32xf32>
    %356 = arith.addf %355, %354 : vector<8x32xf32>
    %357 = arith.divf %355, %356 : vector<8x32xf32>
    %358 = arith.mulf %349, %310 : vector<8x32xf32>
    %359 = arith.mulf %343, %351 : vector<8x32xf32>
    %360 = arith.addf %358, %359 : vector<8x32xf32>
    %361 = math.tanh %360 : vector<8x32xf32>
    %362 = arith.mulf %357, %361 : vector<8x32xf32>
    %363 = vector.extract_strided_slice %337 {offsets = [0, 0], sizes = [8, 32], strides = [1, 1]} : vector<8x128xf32> to vector<8x32xf32>
    %364 = arith.negf %363 : vector<8x32xf32>
    %365 = math.exp %364 : vector<8x32xf32>
    %cst_88 = arith.constant 1.000000e+00 : f32
    %366 = vector.broadcast %cst_88 : f32 to vector<8x32xf32>
    %367 = arith.addf %366, %365 : vector<8x32xf32>
    %368 = arith.divf %366, %367 : vector<8x32xf32>
    %369 = vector.extract_strided_slice %337 {offsets = [0, 32], sizes = [8, 32], strides = [1, 1]} : vector<8x128xf32> to vector<8x32xf32>
    %370 = arith.negf %369 : vector<8x32xf32>
    %371 = math.exp %370 : vector<8x32xf32>
    %cst_89 = arith.constant 1.000000e+00 : f32
    %372 = vector.broadcast %cst_89 : f32 to vector<8x32xf32>
    %373 = arith.addf %372, %371 : vector<8x32xf32>
    %374 = arith.divf %372, %373 : vector<8x32xf32>
    %375 = vector.extract_strided_slice %337 {offsets = [0, 64], sizes = [8, 32], strides = [1, 1]} : vector<8x128xf32> to vector<8x32xf32>
    %376 = math.tanh %375 : vector<8x32xf32>
    %377 = vector.extract_strided_slice %337 {offsets = [0, 96], sizes = [8, 32], strides = [1, 1]} : vector<8x128xf32> to vector<8x32xf32>
    %378 = arith.negf %377 : vector<8x32xf32>
    %379 = math.exp %378 : vector<8x32xf32>
    %cst_90 = arith.constant 1.000000e+00 : f32
    %380 = vector.broadcast %cst_90 : f32 to vector<8x32xf32>
    %381 = arith.addf %380, %379 : vector<8x32xf32>
    %382 = arith.divf %380, %381 : vector<8x32xf32>
    %383 = arith.mulf %374, %324 : vector<8x32xf32>
    %384 = arith.mulf %368, %376 : vector<8x32xf32>
    %385 = arith.addf %383, %384 : vector<8x32xf32>
    %386 = math.tanh %385 : vector<8x32xf32>
    %387 = arith.mulf %382, %386 : vector<8x32xf32>
    %388 = arith.index_cast %c3_i32 : i32 to index
    %c0_91 = arith.constant 0 : index
    %c0_92 = arith.constant 0 : index
    %389 = vector.load %arg2[%388, %c0_91, %c0_92] : memref<8x8x1xf32, #tpu.memory_space<vmem>>, vector<1x8x1xf32>
    %390 = vector.shape_cast %389 : vector<1x8x1xf32> to vector<8x1xf32>
    %391 = arith.index_cast %325 : i32 to index
    %c0_93 = arith.constant 0 : index
    %c0_94 = arith.constant 0 : index
    %392 = vector.load %arg2[%391, %c0_93, %c0_94] : memref<8x8x1xf32, #tpu.memory_space<vmem>>, vector<1x8x1xf32>
    %393 = vector.shape_cast %392 : vector<1x8x1xf32> to vector<8x1xf32>
    %394 = vector.broadcast %390 : vector<8x1xf32> to vector<8x32xf32>
    %395 = arith.mulf %394, %362 : vector<8x32xf32>
    %396 = arith.index_cast %327 : i32 to index
    %c0_95 = arith.constant 0 : index
    %397 = vector.load %arg12[%396, %c0_95] : memref<64x32xf32, #tpu.memory_space<vmem>>, vector<8x32xf32>
    tpu.vector_store %arg12[%396, %c0_95], %395 {strides = array<i32>} : memref<64x32xf32, #tpu.memory_space<vmem>>, vector<8x32xf32>,
    %398 = vector.broadcast %393 : vector<8x1xf32> to vector<8x32xf32>
    %399 = arith.mulf %398, %387 : vector<8x32xf32>
    %400 = arith.index_cast %329 : i32 to index
    %c0_96 = arith.constant 0 : index
    %401 = vector.load %arg13[%400, %c0_96] : memref<64x32xf32, #tpu.memory_space<vmem>>, vector<8x32xf32>
    tpu.vector_store %arg13[%400, %c0_96], %399 {strides = array<i32>} : memref<64x32xf32, #tpu.memory_space<vmem>>, vector<8x32xf32>,
    %402 = vector.broadcast %390 : vector<8x1xf32> to vector<8x32xf32>
    %403 = arith.mulf %402, %362 : vector<8x32xf32>
    %cst_97 = arith.constant 1.000000e+00 : f32
    %404 = vector.broadcast %cst_97 : f32 to vector<8x1xf32>
    %405 = arith.subf %404, %390 : vector<8x1xf32>
    %406 = vector.broadcast %405 : vector<8x1xf32> to vector<8x32xf32>
    %407 = arith.mulf %406, %303 : vector<8x32xf32>
    %408 = arith.addf %403, %407 : vector<8x32xf32>
    %409 = vector.broadcast %390 : vector<8x1xf32> to vector<8x32xf32>
    %410 = arith.mulf %409, %360 : vector<8x32xf32>
    %cst_98 = arith.constant 1.000000e+00 : f32
    %411 = vector.broadcast %cst_98 : f32 to vector<8x1xf32>
    %412 = arith.subf %411, %390 : vector<8x1xf32>
    %413 = vector.broadcast %412 : vector<8x1xf32> to vector<8x32xf32>
    %414 = arith.mulf %413, %310 : vector<8x32xf32>
    %415 = arith.addf %410, %414 : vector<8x32xf32>
    %416 = vector.broadcast %393 : vector<8x1xf32> to vector<8x32xf32>
    %417 = arith.mulf %416, %387 : vector<8x32xf32>
    %cst_99 = arith.constant 1.000000e+00 : f32
    %418 = vector.broadcast %cst_99 : f32 to vector<8x1xf32>
    %419 = arith.subf %418, %393 : vector<8x1xf32>
    %420 = vector.broadcast %419 : vector<8x1xf32> to vector<8x32xf32>
    %421 = arith.mulf %420, %317 : vector<8x32xf32>
    %422 = arith.addf %417, %421 : vector<8x32xf32>
    %423 = vector.broadcast %393 : vector<8x1xf32> to vector<8x32xf32>
    %424 = arith.mulf %423, %385 : vector<8x32xf32>
    %cst_100 = arith.constant 1.000000e+00 : f32
    %425 = vector.broadcast %cst_100 : f32 to vector<8x1xf32>
    %426 = arith.subf %425, %393 : vector<8x1xf32>
    %427 = vector.broadcast %426 : vector<8x1xf32> to vector<8x32xf32>
    %428 = arith.mulf %427, %324 : vector<8x32xf32>
    %429 = arith.addf %424, %428 : vector<8x32xf32>
    %c4_i32 = arith.constant 4 : i32
    %c7_i32_101 = arith.constant 7 : i32
    %430 = arith.subi %c7_i32_101, %c4_i32 : i32
    %c8_i32_102 = arith.constant 8 : i32
    %431 = arith.muli %c4_i32, %c8_i32_102 : i32
    %432 = tpu.assume_multiple %431, 8 : i32
    %c8_i32_103 = arith.constant 8 : i32
    %433 = arith.muli %430, %c8_i32_103 : i32
    %434 = tpu.assume_multiple %433, 8 : i32
    %435 = arith.index_cast %432 : i32 to index
    %c0_104 = arith.constant 0 : index
    %436 = vector.load %arg11[%435, %c0_104] : memref<64x256xf32, #tpu.memory_space<vmem>>, vector<8x128xf32>
    %cst_105 = arith.constant dense<0.000000e+00> : vector<8x128xf32>
    %437 = tpu.matmul %408, %7, %cst_105 {dimension_numbers = #tpu.dot_dimension_numbers<[1], [0], [0], [1], [0, 0, 1, 1], [], []>} : vector<8x32xf32>, vector<32x128xf32>, vector<8x128xf32> -> vector<8x128xf32>
    %438 = arith.addf %436, %437 : vector<8x128xf32>
    %439 = arith.index_cast %434 : i32 to index
    %c128_106 = arith.constant 128 : index
    %440 = vector.load %arg11[%439, %c128_106] : memref<64x256xf32, #tpu.memory_space<vmem>>, vector<8x128xf32>
    %cst_107 = arith.constant dense<0.000000e+00> : vector<8x128xf32>
    %441 = tpu.matmul %422, %8, %cst_107 {dimension_numbers = #tpu.dot_dimension_numbers<[1], [0], [0], [1], [0, 0, 1, 1], [], []>} : vector<8x32xf32>, vector<32x128xf32>, vector<8x128xf32> -> vector<8x128xf32>
    %442 = arith.addf %440, %441 : vector<8x128xf32>
    %443 = vector.extract_strided_slice %438 {offsets = [0, 0], sizes = [8, 32], strides = [1, 1]} : vector<8x128xf32> to vector<8x32xf32>
    %444 = arith.negf %443 : vector<8x32xf32>
    %445 = math.exp %444 : vector<8x32xf32>
    %cst_108 = arith.constant 1.000000e+00 : f32
    %446 = vector.broadcast %cst_108 : f32 to vector<8x32xf32>
    %447 = arith.addf %446, %445 : vector<8x32xf32>
    %448 = arith.divf %446, %447 : vector<8x32xf32>
    %449 = vector.extract_strided_slice %438 {offsets = [0, 32], sizes = [8, 32], strides = [1, 1]} : vector<8x128xf32> to vector<8x32xf32>
    %450 = arith.negf %449 : vector<8x32xf32>
    %451 = math.exp %450 : vector<8x32xf32>
    %cst_109 = arith.constant 1.000000e+00 : f32
    %452 = vector.broadcast %cst_109 : f32 to vector<8x32xf32>
    %453 = arith.addf %452, %451 : vector<8x32xf32>
    %454 = arith.divf %452, %453 : vector<8x32xf32>
    %455 = vector.extract_strided_slice %438 {offsets = [0, 64], sizes = [8, 32], strides = [1, 1]} : vector<8x128xf32> to vector<8x32xf32>
    %456 = math.tanh %455 : vector<8x32xf32>
    %457 = vector.extract_strided_slice %438 {offsets = [0, 96], sizes = [8, 32], strides = [1, 1]} : vector<8x128xf32> to vector<8x32xf32>
    %458 = arith.negf %457 : vector<8x32xf32>
    %459 = math.exp %458 : vector<8x32xf32>
    %cst_110 = arith.constant 1.000000e+00 : f32
    %460 = vector.broadcast %cst_110 : f32 to vector<8x32xf32>
    %461 = arith.addf %460, %459 : vector<8x32xf32>
    %462 = arith.divf %460, %461 : vector<8x32xf32>
    %463 = arith.mulf %454, %415 : vector<8x32xf32>
    %464 = arith.mulf %448, %456 : vector<8x32xf32>
    %465 = arith.addf %463, %464 : vector<8x32xf32>
    %466 = math.tanh %465 : vector<8x32xf32>
    %467 = arith.mulf %462, %466 : vector<8x32xf32>
    %468 = vector.extract_strided_slice %442 {offsets = [0, 0], sizes = [8, 32], strides = [1, 1]} : vector<8x128xf32> to vector<8x32xf32>
    %469 = arith.negf %468 : vector<8x32xf32>
    %470 = math.exp %469 : vector<8x32xf32>
    %cst_111 = arith.constant 1.000000e+00 : f32
    %471 = vector.broadcast %cst_111 : f32 to vector<8x32xf32>
    %472 = arith.addf %471, %470 : vector<8x32xf32>
    %473 = arith.divf %471, %472 : vector<8x32xf32>
    %474 = vector.extract_strided_slice %442 {offsets = [0, 32], sizes = [8, 32], strides = [1, 1]} : vector<8x128xf32> to vector<8x32xf32>
    %475 = arith.negf %474 : vector<8x32xf32>
    %476 = math.exp %475 : vector<8x32xf32>
    %cst_112 = arith.constant 1.000000e+00 : f32
    %477 = vector.broadcast %cst_112 : f32 to vector<8x32xf32>
    %478 = arith.addf %477, %476 : vector<8x32xf32>
    %479 = arith.divf %477, %478 : vector<8x32xf32>
    %480 = vector.extract_strided_slice %442 {offsets = [0, 64], sizes = [8, 32], strides = [1, 1]} : vector<8x128xf32> to vector<8x32xf32>
    %481 = math.tanh %480 : vector<8x32xf32>
    %482 = vector.extract_strided_slice %442 {offsets = [0, 96], sizes = [8, 32], strides = [1, 1]} : vector<8x128xf32> to vector<8x32xf32>
    %483 = arith.negf %482 : vector<8x32xf32>
    %484 = math.exp %483 : vector<8x32xf32>
    %cst_113 = arith.constant 1.000000e+00 : f32
    %485 = vector.broadcast %cst_113 : f32 to vector<8x32xf32>
    %486 = arith.addf %485, %484 : vector<8x32xf32>
    %487 = arith.divf %485, %486 : vector<8x32xf32>
    %488 = arith.mulf %479, %429 : vector<8x32xf32>
    %489 = arith.mulf %473, %481 : vector<8x32xf32>
    %490 = arith.addf %488, %489 : vector<8x32xf32>
    %491 = math.tanh %490 : vector<8x32xf32>
    %492 = arith.mulf %487, %491 : vector<8x32xf32>
    %493 = arith.index_cast %c4_i32 : i32 to index
    %c0_114 = arith.constant 0 : index
    %c0_115 = arith.constant 0 : index
    %494 = vector.load %arg2[%493, %c0_114, %c0_115] : memref<8x8x1xf32, #tpu.memory_space<vmem>>, vector<1x8x1xf32>
    %495 = vector.shape_cast %494 : vector<1x8x1xf32> to vector<8x1xf32>
    %496 = arith.index_cast %430 : i32 to index
    %c0_116 = arith.constant 0 : index
    %c0_117 = arith.constant 0 : index
    %497 = vector.load %arg2[%496, %c0_116, %c0_117] : memref<8x8x1xf32, #tpu.memory_space<vmem>>, vector<1x8x1xf32>
    %498 = vector.shape_cast %497 : vector<1x8x1xf32> to vector<8x1xf32>
    %499 = vector.broadcast %495 : vector<8x1xf32> to vector<8x32xf32>
    %500 = arith.mulf %499, %467 : vector<8x32xf32>
    %501 = arith.index_cast %432 : i32 to index
    %c0_118 = arith.constant 0 : index
    %502 = vector.load %arg12[%501, %c0_118] : memref<64x32xf32, #tpu.memory_space<vmem>>, vector<8x32xf32>
    tpu.vector_store %arg12[%501, %c0_118], %500 {strides = array<i32>} : memref<64x32xf32, #tpu.memory_space<vmem>>, vector<8x32xf32>,
    %503 = vector.broadcast %498 : vector<8x1xf32> to vector<8x32xf32>
    %504 = arith.mulf %503, %492 : vector<8x32xf32>
    %505 = arith.index_cast %434 : i32 to index
    %c0_119 = arith.constant 0 : index
    %506 = vector.load %arg13[%505, %c0_119] : memref<64x32xf32, #tpu.memory_space<vmem>>, vector<8x32xf32>
    tpu.vector_store %arg13[%505, %c0_119], %504 {strides = array<i32>} : memref<64x32xf32, #tpu.memory_space<vmem>>, vector<8x32xf32>,
    %507 = vector.broadcast %495 : vector<8x1xf32> to vector<8x32xf32>
    %508 = arith.mulf %507, %467 : vector<8x32xf32>
    %cst_120 = arith.constant 1.000000e+00 : f32
    %509 = vector.broadcast %cst_120 : f32 to vector<8x1xf32>
    %510 = arith.subf %509, %495 : vector<8x1xf32>
    %511 = vector.broadcast %510 : vector<8x1xf32> to vector<8x32xf32>
    %512 = arith.mulf %511, %408 : vector<8x32xf32>
    %513 = arith.addf %508, %512 : vector<8x32xf32>
    %514 = vector.broadcast %495 : vector<8x1xf32> to vector<8x32xf32>
    %515 = arith.mulf %514, %465 : vector<8x32xf32>
    %cst_121 = arith.constant 1.000000e+00 : f32
    %516 = vector.broadcast %cst_121 : f32 to vector<8x1xf32>
    %517 = arith.subf %516, %495 : vector<8x1xf32>
    %518 = vector.broadcast %517 : vector<8x1xf32> to vector<8x32xf32>
    %519 = arith.mulf %518, %415 : vector<8x32xf32>
    %520 = arith.addf %515, %519 : vector<8x32xf32>
    %521 = vector.broadcast %498 : vector<8x1xf32> to vector<8x32xf32>
    %522 = arith.mulf %521, %492 : vector<8x32xf32>
    %cst_122 = arith.constant 1.000000e+00 : f32
    %523 = vector.broadcast %cst_122 : f32 to vector<8x1xf32>
    %524 = arith.subf %523, %498 : vector<8x1xf32>
    %525 = vector.broadcast %524 : vector<8x1xf32> to vector<8x32xf32>
    %526 = arith.mulf %525, %422 : vector<8x32xf32>
    %527 = arith.addf %522, %526 : vector<8x32xf32>
    %528 = vector.broadcast %498 : vector<8x1xf32> to vector<8x32xf32>
    %529 = arith.mulf %528, %490 : vector<8x32xf32>
    %cst_123 = arith.constant 1.000000e+00 : f32
    %530 = vector.broadcast %cst_123 : f32 to vector<8x1xf32>
    %531 = arith.subf %530, %498 : vector<8x1xf32>
    %532 = vector.broadcast %531 : vector<8x1xf32> to vector<8x32xf32>
    %533 = arith.mulf %532, %429 : vector<8x32xf32>
    %534 = arith.addf %529, %533 : vector<8x32xf32>
    %c5_i32 = arith.constant 5 : i32
    %c7_i32_124 = arith.constant 7 : i32
    %535 = arith.subi %c7_i32_124, %c5_i32 : i32
    %c8_i32_125 = arith.constant 8 : i32
    %536 = arith.muli %c5_i32, %c8_i32_125 : i32
    %537 = tpu.assume_multiple %536, 8 : i32
    %c8_i32_126 = arith.constant 8 : i32
    %538 = arith.muli %535, %c8_i32_126 : i32
    %539 = tpu.assume_multiple %538, 8 : i32
    %540 = arith.index_cast %537 : i32 to index
    %c0_127 = arith.constant 0 : index
    %541 = vector.load %arg11[%540, %c0_127] : memref<64x256xf32, #tpu.memory_space<vmem>>, vector<8x128xf32>
    %cst_128 = arith.constant dense<0.000000e+00> : vector<8x128xf32>
    %542 = tpu.matmul %513, %7, %cst_128 {dimension_numbers = #tpu.dot_dimension_numbers<[1], [0], [0], [1], [0, 0, 1, 1], [], []>} : vector<8x32xf32>, vector<32x128xf32>, vector<8x128xf32> -> vector<8x128xf32>
    %543 = arith.addf %541, %542 : vector<8x128xf32>
    %544 = arith.index_cast %539 : i32 to index
    %c128_129 = arith.constant 128 : index
    %545 = vector.load %arg11[%544, %c128_129] : memref<64x256xf32, #tpu.memory_space<vmem>>, vector<8x128xf32>
    %cst_130 = arith.constant dense<0.000000e+00> : vector<8x128xf32>
    %546 = tpu.matmul %527, %8, %cst_130 {dimension_numbers = #tpu.dot_dimension_numbers<[1], [0], [0], [1], [0, 0, 1, 1], [], []>} : vector<8x32xf32>, vector<32x128xf32>, vector<8x128xf32> -> vector<8x128xf32>
    %547 = arith.addf %545, %546 : vector<8x128xf32>
    %548 = vector.extract_strided_slice %543 {offsets = [0, 0], sizes = [8, 32], strides = [1, 1]} : vector<8x128xf32> to vector<8x32xf32>
    %549 = arith.negf %548 : vector<8x32xf32>
    %550 = math.exp %549 : vector<8x32xf32>
    %cst_131 = arith.constant 1.000000e+00 : f32
    %551 = vector.broadcast %cst_131 : f32 to vector<8x32xf32>
    %552 = arith.addf %551, %550 : vector<8x32xf32>
    %553 = arith.divf %551, %552 : vector<8x32xf32>
    %554 = vector.extract_strided_slice %543 {offsets = [0, 32], sizes = [8, 32], strides = [1, 1]} : vector<8x128xf32> to vector<8x32xf32>
    %555 = arith.negf %554 : vector<8x32xf32>
    %556 = math.exp %555 : vector<8x32xf32>
    %cst_132 = arith.constant 1.000000e+00 : f32
    %557 = vector.broadcast %cst_132 : f32 to vector<8x32xf32>
    %558 = arith.addf %557, %556 : vector<8x32xf32>
    %559 = arith.divf %557, %558 : vector<8x32xf32>
    %560 = vector.extract_strided_slice %543 {offsets = [0, 64], sizes = [8, 32], strides = [1, 1]} : vector<8x128xf32> to vector<8x32xf32>
    %561 = math.tanh %560 : vector<8x32xf32>
    %562 = vector.extract_strided_slice %543 {offsets = [0, 96], sizes = [8, 32], strides = [1, 1]} : vector<8x128xf32> to vector<8x32xf32>
    %563 = arith.negf %562 : vector<8x32xf32>
    %564 = math.exp %563 : vector<8x32xf32>
    %cst_133 = arith.constant 1.000000e+00 : f32
    %565 = vector.broadcast %cst_133 : f32 to vector<8x32xf32>
    %566 = arith.addf %565, %564 : vector<8x32xf32>
    %567 = arith.divf %565, %566 : vector<8x32xf32>
    %568 = arith.mulf %559, %520 : vector<8x32xf32>
    %569 = arith.mulf %553, %561 : vector<8x32xf32>
    %570 = arith.addf %568, %569 : vector<8x32xf32>
    %571 = math.tanh %570 : vector<8x32xf32>
    %572 = arith.mulf %567, %571 : vector<8x32xf32>
    %573 = vector.extract_strided_slice %547 {offsets = [0, 0], sizes = [8, 32], strides = [1, 1]} : vector<8x128xf32> to vector<8x32xf32>
    %574 = arith.negf %573 : vector<8x32xf32>
    %575 = math.exp %574 : vector<8x32xf32>
    %cst_134 = arith.constant 1.000000e+00 : f32
    %576 = vector.broadcast %cst_134 : f32 to vector<8x32xf32>
    %577 = arith.addf %576, %575 : vector<8x32xf32>
    %578 = arith.divf %576, %577 : vector<8x32xf32>
    %579 = vector.extract_strided_slice %547 {offsets = [0, 32], sizes = [8, 32], strides = [1, 1]} : vector<8x128xf32> to vector<8x32xf32>
    %580 = arith.negf %579 : vector<8x32xf32>
    %581 = math.exp %580 : vector<8x32xf32>
    %cst_135 = arith.constant 1.000000e+00 : f32
    %582 = vector.broadcast %cst_135 : f32 to vector<8x32xf32>
    %583 = arith.addf %582, %581 : vector<8x32xf32>
    %584 = arith.divf %582, %583 : vector<8x32xf32>
    %585 = vector.extract_strided_slice %547 {offsets = [0, 64], sizes = [8, 32], strides = [1, 1]} : vector<8x128xf32> to vector<8x32xf32>
    %586 = math.tanh %585 : vector<8x32xf32>
    %587 = vector.extract_strided_slice %547 {offsets = [0, 96], sizes = [8, 32], strides = [1, 1]} : vector<8x128xf32> to vector<8x32xf32>
    %588 = arith.negf %587 : vector<8x32xf32>
    %589 = math.exp %588 : vector<8x32xf32>
    %cst_136 = arith.constant 1.000000e+00 : f32
    %590 = vector.broadcast %cst_136 : f32 to vector<8x32xf32>
    %591 = arith.addf %590, %589 : vector<8x32xf32>
    %592 = arith.divf %590, %591 : vector<8x32xf32>
    %593 = arith.mulf %584, %534 : vector<8x32xf32>
    %594 = arith.mulf %578, %586 : vector<8x32xf32>
    %595 = arith.addf %593, %594 : vector<8x32xf32>
    %596 = math.tanh %595 : vector<8x32xf32>
    %597 = arith.mulf %592, %596 : vector<8x32xf32>
    %598 = arith.index_cast %c5_i32 : i32 to index
    %c0_137 = arith.constant 0 : index
    %c0_138 = arith.constant 0 : index
    %599 = vector.load %arg2[%598, %c0_137, %c0_138] : memref<8x8x1xf32, #tpu.memory_space<vmem>>, vector<1x8x1xf32>
    %600 = vector.shape_cast %599 : vector<1x8x1xf32> to vector<8x1xf32>
    %601 = arith.index_cast %535 : i32 to index
    %c0_139 = arith.constant 0 : index
    %c0_140 = arith.constant 0 : index
    %602 = vector.load %arg2[%601, %c0_139, %c0_140] : memref<8x8x1xf32, #tpu.memory_space<vmem>>, vector<1x8x1xf32>
    %603 = vector.shape_cast %602 : vector<1x8x1xf32> to vector<8x1xf32>
    %604 = vector.broadcast %600 : vector<8x1xf32> to vector<8x32xf32>
    %605 = arith.mulf %604, %572 : vector<8x32xf32>
    %606 = arith.index_cast %537 : i32 to index
    %c0_141 = arith.constant 0 : index
    %607 = vector.load %arg12[%606, %c0_141] : memref<64x32xf32, #tpu.memory_space<vmem>>, vector<8x32xf32>
    tpu.vector_store %arg12[%606, %c0_141], %605 {strides = array<i32>} : memref<64x32xf32, #tpu.memory_space<vmem>>, vector<8x32xf32>,
    %608 = vector.broadcast %603 : vector<8x1xf32> to vector<8x32xf32>
    %609 = arith.mulf %608, %597 : vector<8x32xf32>
    %610 = arith.index_cast %539 : i32 to index
    %c0_142 = arith.constant 0 : index
    %611 = vector.load %arg13[%610, %c0_142] : memref<64x32xf32, #tpu.memory_space<vmem>>, vector<8x32xf32>
    tpu.vector_store %arg13[%610, %c0_142], %609 {strides = array<i32>} : memref<64x32xf32, #tpu.memory_space<vmem>>, vector<8x32xf32>,
    %612 = vector.broadcast %600 : vector<8x1xf32> to vector<8x32xf32>
    %613 = arith.mulf %612, %572 : vector<8x32xf32>
    %cst_143 = arith.constant 1.000000e+00 : f32
    %614 = vector.broadcast %cst_143 : f32 to vector<8x1xf32>
    %615 = arith.subf %614, %600 : vector<8x1xf32>
    %616 = vector.broadcast %615 : vector<8x1xf32> to vector<8x32xf32>
    %617 = arith.mulf %616, %513 : vector<8x32xf32>
    %618 = arith.addf %613, %617 : vector<8x32xf32>
    %619 = vector.broadcast %600 : vector<8x1xf32> to vector<8x32xf32>
    %620 = arith.mulf %619, %570 : vector<8x32xf32>
    %cst_144 = arith.constant 1.000000e+00 : f32
    %621 = vector.broadcast %cst_144 : f32 to vector<8x1xf32>
    %622 = arith.subf %621, %600 : vector<8x1xf32>
    %623 = vector.broadcast %622 : vector<8x1xf32> to vector<8x32xf32>
    %624 = arith.mulf %623, %520 : vector<8x32xf32>
    %625 = arith.addf %620, %624 : vector<8x32xf32>
    %626 = vector.broadcast %603 : vector<8x1xf32> to vector<8x32xf32>
    %627 = arith.mulf %626, %597 : vector<8x32xf32>
    %cst_145 = arith.constant 1.000000e+00 : f32
    %628 = vector.broadcast %cst_145 : f32 to vector<8x1xf32>
    %629 = arith.subf %628, %603 : vector<8x1xf32>
    %630 = vector.broadcast %629 : vector<8x1xf32> to vector<8x32xf32>
    %631 = arith.mulf %630, %527 : vector<8x32xf32>
    %632 = arith.addf %627, %631 : vector<8x32xf32>
    %633 = vector.broadcast %603 : vector<8x1xf32> to vector<8x32xf32>
    %634 = arith.mulf %633, %595 : vector<8x32xf32>
    %cst_146 = arith.constant 1.000000e+00 : f32
    %635 = vector.broadcast %cst_146 : f32 to vector<8x1xf32>
    %636 = arith.subf %635, %603 : vector<8x1xf32>
    %637 = vector.broadcast %636 : vector<8x1xf32> to vector<8x32xf32>
    %638 = arith.mulf %637, %534 : vector<8x32xf32>
    %639 = arith.addf %634, %638 : vector<8x32xf32>
    %c6_i32 = arith.constant 6 : i32
    %c7_i32_147 = arith.constant 7 : i32
    %640 = arith.subi %c7_i32_147, %c6_i32 : i32
    %c8_i32_148 = arith.constant 8 : i32
    %641 = arith.muli %c6_i32, %c8_i32_148 : i32
    %642 = tpu.assume_multiple %641, 8 : i32
    %c8_i32_149 = arith.constant 8 : i32
    %643 = arith.muli %640, %c8_i32_149 : i32
    %644 = tpu.assume_multiple %643, 8 : i32
    %645 = arith.index_cast %642 : i32 to index
    %c0_150 = arith.constant 0 : index
    %646 = vector.load %arg11[%645, %c0_150] : memref<64x256xf32, #tpu.memory_space<vmem>>, vector<8x128xf32>
    %cst_151 = arith.constant dense<0.000000e+00> : vector<8x128xf32>
    %647 = tpu.matmul %618, %7, %cst_151 {dimension_numbers = #tpu.dot_dimension_numbers<[1], [0], [0], [1], [0, 0, 1, 1], [], []>} : vector<8x32xf32>, vector<32x128xf32>, vector<8x128xf32> -> vector<8x128xf32>
    %648 = arith.addf %646, %647 : vector<8x128xf32>
    %649 = arith.index_cast %644 : i32 to index
    %c128_152 = arith.constant 128 : index
    %650 = vector.load %arg11[%649, %c128_152] : memref<64x256xf32, #tpu.memory_space<vmem>>, vector<8x128xf32>
    %cst_153 = arith.constant dense<0.000000e+00> : vector<8x128xf32>
    %651 = tpu.matmul %632, %8, %cst_153 {dimension_numbers = #tpu.dot_dimension_numbers<[1], [0], [0], [1], [0, 0, 1, 1], [], []>} : vector<8x32xf32>, vector<32x128xf32>, vector<8x128xf32> -> vector<8x128xf32>
    %652 = arith.addf %650, %651 : vector<8x128xf32>
    %653 = vector.extract_strided_slice %648 {offsets = [0, 0], sizes = [8, 32], strides = [1, 1]} : vector<8x128xf32> to vector<8x32xf32>
    %654 = arith.negf %653 : vector<8x32xf32>
    %655 = math.exp %654 : vector<8x32xf32>
    %cst_154 = arith.constant 1.000000e+00 : f32
    %656 = vector.broadcast %cst_154 : f32 to vector<8x32xf32>
    %657 = arith.addf %656, %655 : vector<8x32xf32>
    %658 = arith.divf %656, %657 : vector<8x32xf32>
    %659 = vector.extract_strided_slice %648 {offsets = [0, 32], sizes = [8, 32], strides = [1, 1]} : vector<8x128xf32> to vector<8x32xf32>
    %660 = arith.negf %659 : vector<8x32xf32>
    %661 = math.exp %660 : vector<8x32xf32>
    %cst_155 = arith.constant 1.000000e+00 : f32
    %662 = vector.broadcast %cst_155 : f32 to vector<8x32xf32>
    %663 = arith.addf %662, %661 : vector<8x32xf32>
    %664 = arith.divf %662, %663 : vector<8x32xf32>
    %665 = vector.extract_strided_slice %648 {offsets = [0, 64], sizes = [8, 32], strides = [1, 1]} : vector<8x128xf32> to vector<8x32xf32>
    %666 = math.tanh %665 : vector<8x32xf32>
    %667 = vector.extract_strided_slice %648 {offsets = [0, 96], sizes = [8, 32], strides = [1, 1]} : vector<8x128xf32> to vector<8x32xf32>
    %668 = arith.negf %667 : vector<8x32xf32>
    %669 = math.exp %668 : vector<8x32xf32>
    %cst_156 = arith.constant 1.000000e+00 : f32
    %670 = vector.broadcast %cst_156 : f32 to vector<8x32xf32>
    %671 = arith.addf %670, %669 : vector<8x32xf32>
    %672 = arith.divf %670, %671 : vector<8x32xf32>
    %673 = arith.mulf %664, %625 : vector<8x32xf32>
    %674 = arith.mulf %658, %666 : vector<8x32xf32>
    %675 = arith.addf %673, %674 : vector<8x32xf32>
    %676 = math.tanh %675 : vector<8x32xf32>
    %677 = arith.mulf %672, %676 : vector<8x32xf32>
    %678 = vector.extract_strided_slice %652 {offsets = [0, 0], sizes = [8, 32], strides = [1, 1]} : vector<8x128xf32> to vector<8x32xf32>
    %679 = arith.negf %678 : vector<8x32xf32>
    %680 = math.exp %679 : vector<8x32xf32>
    %cst_157 = arith.constant 1.000000e+00 : f32
    %681 = vector.broadcast %cst_157 : f32 to vector<8x32xf32>
    %682 = arith.addf %681, %680 : vector<8x32xf32>
    %683 = arith.divf %681, %682 : vector<8x32xf32>
    %684 = vector.extract_strided_slice %652 {offsets = [0, 32], sizes = [8, 32], strides = [1, 1]} : vector<8x128xf32> to vector<8x32xf32>
    %685 = arith.negf %684 : vector<8x32xf32>
    %686 = math.exp %685 : vector<8x32xf32>
    %cst_158 = arith.constant 1.000000e+00 : f32
    %687 = vector.broadcast %cst_158 : f32 to vector<8x32xf32>
    %688 = arith.addf %687, %686 : vector<8x32xf32>
    %689 = arith.divf %687, %688 : vector<8x32xf32>
    %690 = vector.extract_strided_slice %652 {offsets = [0, 64], sizes = [8, 32], strides = [1, 1]} : vector<8x128xf32> to vector<8x32xf32>
    %691 = math.tanh %690 : vector<8x32xf32>
    %692 = vector.extract_strided_slice %652 {offsets = [0, 96], sizes = [8, 32], strides = [1, 1]} : vector<8x128xf32> to vector<8x32xf32>
    %693 = arith.negf %692 : vector<8x32xf32>
    %694 = math.exp %693 : vector<8x32xf32>
    %cst_159 = arith.constant 1.000000e+00 : f32
    %695 = vector.broadcast %cst_159 : f32 to vector<8x32xf32>
    %696 = arith.addf %695, %694 : vector<8x32xf32>
    %697 = arith.divf %695, %696 : vector<8x32xf32>
    %698 = arith.mulf %689, %639 : vector<8x32xf32>
    %699 = arith.mulf %683, %691 : vector<8x32xf32>
    %700 = arith.addf %698, %699 : vector<8x32xf32>
    %701 = math.tanh %700 : vector<8x32xf32>
    %702 = arith.mulf %697, %701 : vector<8x32xf32>
    %703 = arith.index_cast %c6_i32 : i32 to index
    %c0_160 = arith.constant 0 : index
    %c0_161 = arith.constant 0 : index
    %704 = vector.load %arg2[%703, %c0_160, %c0_161] : memref<8x8x1xf32, #tpu.memory_space<vmem>>, vector<1x8x1xf32>
    %705 = vector.shape_cast %704 : vector<1x8x1xf32> to vector<8x1xf32>
    %706 = arith.index_cast %640 : i32 to index
    %c0_162 = arith.constant 0 : index
    %c0_163 = arith.constant 0 : index
    %707 = vector.load %arg2[%706, %c0_162, %c0_163] : memref<8x8x1xf32, #tpu.memory_space<vmem>>, vector<1x8x1xf32>
    %708 = vector.shape_cast %707 : vector<1x8x1xf32> to vector<8x1xf32>
    %709 = vector.broadcast %705 : vector<8x1xf32> to vector<8x32xf32>
    %710 = arith.mulf %709, %677 : vector<8x32xf32>
    %711 = arith.index_cast %642 : i32 to index
    %c0_164 = arith.constant 0 : index
    %712 = vector.load %arg12[%711, %c0_164] : memref<64x32xf32, #tpu.memory_space<vmem>>, vector<8x32xf32>
    tpu.vector_store %arg12[%711, %c0_164], %710 {strides = array<i32>} : memref<64x32xf32, #tpu.memory_space<vmem>>, vector<8x32xf32>,
    %713 = vector.broadcast %708 : vector<8x1xf32> to vector<8x32xf32>
    %714 = arith.mulf %713, %702 : vector<8x32xf32>
    %715 = arith.index_cast %644 : i32 to index
    %c0_165 = arith.constant 0 : index
    %716 = vector.load %arg13[%715, %c0_165] : memref<64x32xf32, #tpu.memory_space<vmem>>, vector<8x32xf32>
    tpu.vector_store %arg13[%715, %c0_165], %714 {strides = array<i32>} : memref<64x32xf32, #tpu.memory_space<vmem>>, vector<8x32xf32>,
    %717 = vector.broadcast %705 : vector<8x1xf32> to vector<8x32xf32>
    %718 = arith.mulf %717, %677 : vector<8x32xf32>
    %cst_166 = arith.constant 1.000000e+00 : f32
    %719 = vector.broadcast %cst_166 : f32 to vector<8x1xf32>
    %720 = arith.subf %719, %705 : vector<8x1xf32>
    %721 = vector.broadcast %720 : vector<8x1xf32> to vector<8x32xf32>
    %722 = arith.mulf %721, %618 : vector<8x32xf32>
    %723 = arith.addf %718, %722 : vector<8x32xf32>
    %724 = vector.broadcast %705 : vector<8x1xf32> to vector<8x32xf32>
    %725 = arith.mulf %724, %675 : vector<8x32xf32>
    %cst_167 = arith.constant 1.000000e+00 : f32
    %726 = vector.broadcast %cst_167 : f32 to vector<8x1xf32>
    %727 = arith.subf %726, %705 : vector<8x1xf32>
    %728 = vector.broadcast %727 : vector<8x1xf32> to vector<8x32xf32>
    %729 = arith.mulf %728, %625 : vector<8x32xf32>
    %730 = arith.addf %725, %729 : vector<8x32xf32>
    %731 = vector.broadcast %708 : vector<8x1xf32> to vector<8x32xf32>
    %732 = arith.mulf %731, %702 : vector<8x32xf32>
    %cst_168 = arith.constant 1.000000e+00 : f32
    %733 = vector.broadcast %cst_168 : f32 to vector<8x1xf32>
    %734 = arith.subf %733, %708 : vector<8x1xf32>
    %735 = vector.broadcast %734 : vector<8x1xf32> to vector<8x32xf32>
    %736 = arith.mulf %735, %632 : vector<8x32xf32>
    %737 = arith.addf %732, %736 : vector<8x32xf32>
    %738 = vector.broadcast %708 : vector<8x1xf32> to vector<8x32xf32>
    %739 = arith.mulf %738, %700 : vector<8x32xf32>
    %cst_169 = arith.constant 1.000000e+00 : f32
    %740 = vector.broadcast %cst_169 : f32 to vector<8x1xf32>
    %741 = arith.subf %740, %708 : vector<8x1xf32>
    %742 = vector.broadcast %741 : vector<8x1xf32> to vector<8x32xf32>
    %743 = arith.mulf %742, %639 : vector<8x32xf32>
    %744 = arith.addf %739, %743 : vector<8x32xf32>
    %c7_i32_170 = arith.constant 7 : i32
    %c7_i32_171 = arith.constant 7 : i32
    %745 = arith.subi %c7_i32_171, %c7_i32_170 : i32
    %c8_i32_172 = arith.constant 8 : i32
    %746 = arith.muli %c7_i32_170, %c8_i32_172 : i32
    %747 = tpu.assume_multiple %746, 8 : i32
    %c8_i32_173 = arith.constant 8 : i32
    %748 = arith.muli %745, %c8_i32_173 : i32
    %749 = tpu.assume_multiple %748, 8 : i32
    %750 = arith.index_cast %747 : i32 to index
    %c0_174 = arith.constant 0 : index
    %751 = vector.load %arg11[%750, %c0_174] : memref<64x256xf32, #tpu.memory_space<vmem>>, vector<8x128xf32>
    %cst_175 = arith.constant dense<0.000000e+00> : vector<8x128xf32>
    %752 = tpu.matmul %723, %7, %cst_175 {dimension_numbers = #tpu.dot_dimension_numbers<[1], [0], [0], [1], [0, 0, 1, 1], [], []>} : vector<8x32xf32>, vector<32x128xf32>, vector<8x128xf32> -> vector<8x128xf32>
    %753 = arith.addf %751, %752 : vector<8x128xf32>
    %754 = arith.index_cast %749 : i32 to index
    %c128_176 = arith.constant 128 : index
    %755 = vector.load %arg11[%754, %c128_176] : memref<64x256xf32, #tpu.memory_space<vmem>>, vector<8x128xf32>
    %cst_177 = arith.constant dense<0.000000e+00> : vector<8x128xf32>
    %756 = tpu.matmul %737, %8, %cst_177 {dimension_numbers = #tpu.dot_dimension_numbers<[1], [0], [0], [1], [0, 0, 1, 1], [], []>} : vector<8x32xf32>, vector<32x128xf32>, vector<8x128xf32> -> vector<8x128xf32>
    %757 = arith.addf %755, %756 : vector<8x128xf32>
    %758 = vector.extract_strided_slice %753 {offsets = [0, 0], sizes = [8, 32], strides = [1, 1]} : vector<8x128xf32> to vector<8x32xf32>
    %759 = arith.negf %758 : vector<8x32xf32>
    %760 = math.exp %759 : vector<8x32xf32>
    %cst_178 = arith.constant 1.000000e+00 : f32
    %761 = vector.broadcast %cst_178 : f32 to vector<8x32xf32>
    %762 = arith.addf %761, %760 : vector<8x32xf32>
    %763 = arith.divf %761, %762 : vector<8x32xf32>
    %764 = vector.extract_strided_slice %753 {offsets = [0, 32], sizes = [8, 32], strides = [1, 1]} : vector<8x128xf32> to vector<8x32xf32>
    %765 = arith.negf %764 : vector<8x32xf32>
    %766 = math.exp %765 : vector<8x32xf32>
    %cst_179 = arith.constant 1.000000e+00 : f32
    %767 = vector.broadcast %cst_179 : f32 to vector<8x32xf32>
    %768 = arith.addf %767, %766 : vector<8x32xf32>
    %769 = arith.divf %767, %768 : vector<8x32xf32>
    %770 = vector.extract_strided_slice %753 {offsets = [0, 64], sizes = [8, 32], strides = [1, 1]} : vector<8x128xf32> to vector<8x32xf32>
    %771 = math.tanh %770 : vector<8x32xf32>
    %772 = vector.extract_strided_slice %753 {offsets = [0, 96], sizes = [8, 32], strides = [1, 1]} : vector<8x128xf32> to vector<8x32xf32>
    %773 = arith.negf %772 : vector<8x32xf32>
    %774 = math.exp %773 : vector<8x32xf32>
    %cst_180 = arith.constant 1.000000e+00 : f32
    %775 = vector.broadcast %cst_180 : f32 to vector<8x32xf32>
    %776 = arith.addf %775, %774 : vector<8x32xf32>
    %777 = arith.divf %775, %776 : vector<8x32xf32>
    %778 = arith.mulf %769, %730 : vector<8x32xf32>
    %779 = arith.mulf %763, %771 : vector<8x32xf32>
    %780 = arith.addf %778, %779 : vector<8x32xf32>
    %781 = math.tanh %780 : vector<8x32xf32>
    %782 = arith.mulf %777, %781 : vector<8x32xf32>
    %783 = vector.extract_strided_slice %757 {offsets = [0, 0], sizes = [8, 32], strides = [1, 1]} : vector<8x128xf32> to vector<8x32xf32>
    %784 = arith.negf %783 : vector<8x32xf32>
    %785 = math.exp %784 : vector<8x32xf32>
    %cst_181 = arith.constant 1.000000e+00 : f32
    %786 = vector.broadcast %cst_181 : f32 to vector<8x32xf32>
    %787 = arith.addf %786, %785 : vector<8x32xf32>
    %788 = arith.divf %786, %787 : vector<8x32xf32>
    %789 = vector.extract_strided_slice %757 {offsets = [0, 32], sizes = [8, 32], strides = [1, 1]} : vector<8x128xf32> to vector<8x32xf32>
    %790 = arith.negf %789 : vector<8x32xf32>
    %791 = math.exp %790 : vector<8x32xf32>
    %cst_182 = arith.constant 1.000000e+00 : f32
    %792 = vector.broadcast %cst_182 : f32 to vector<8x32xf32>
    %793 = arith.addf %792, %791 : vector<8x32xf32>
    %794 = arith.divf %792, %793 : vector<8x32xf32>
    %795 = vector.extract_strided_slice %757 {offsets = [0, 64], sizes = [8, 32], strides = [1, 1]} : vector<8x128xf32> to vector<8x32xf32>
    %796 = math.tanh %795 : vector<8x32xf32>
    %797 = vector.extract_strided_slice %757 {offsets = [0, 96], sizes = [8, 32], strides = [1, 1]} : vector<8x128xf32> to vector<8x32xf32>
    %798 = arith.negf %797 : vector<8x32xf32>
    %799 = math.exp %798 : vector<8x32xf32>
    %cst_183 = arith.constant 1.000000e+00 : f32
    %800 = vector.broadcast %cst_183 : f32 to vector<8x32xf32>
    %801 = arith.addf %800, %799 : vector<8x32xf32>
    %802 = arith.divf %800, %801 : vector<8x32xf32>
    %803 = arith.mulf %794, %744 : vector<8x32xf32>
    %804 = arith.mulf %788, %796 : vector<8x32xf32>
    %805 = arith.addf %803, %804 : vector<8x32xf32>
    %806 = math.tanh %805 : vector<8x32xf32>
    %807 = arith.mulf %802, %806 : vector<8x32xf32>
    %808 = arith.index_cast %c7_i32_170 : i32 to index
    %c0_184 = arith.constant 0 : index
    %c0_185 = arith.constant 0 : index
    %809 = vector.load %arg2[%808, %c0_184, %c0_185] : memref<8x8x1xf32, #tpu.memory_space<vmem>>, vector<1x8x1xf32>
    %810 = vector.shape_cast %809 : vector<1x8x1xf32> to vector<8x1xf32>
    %811 = arith.index_cast %745 : i32 to index
    %c0_186 = arith.constant 0 : index
    %c0_187 = arith.constant 0 : index
    %812 = vector.load %arg2[%811, %c0_186, %c0_187] : memref<8x8x1xf32, #tpu.memory_space<vmem>>, vector<1x8x1xf32>
    %813 = vector.shape_cast %812 : vector<1x8x1xf32> to vector<8x1xf32>
    %814 = vector.broadcast %810 : vector<8x1xf32> to vector<8x32xf32>
    %815 = arith.mulf %814, %782 : vector<8x32xf32>
    %816 = arith.index_cast %747 : i32 to index
    %c0_188 = arith.constant 0 : index
    %817 = vector.load %arg12[%816, %c0_188] : memref<64x32xf32, #tpu.memory_space<vmem>>, vector<8x32xf32>
    tpu.vector_store %arg12[%816, %c0_188], %815 {strides = array<i32>} : memref<64x32xf32, #tpu.memory_space<vmem>>, vector<8x32xf32>,
    %818 = vector.broadcast %813 : vector<8x1xf32> to vector<8x32xf32>
    %819 = arith.mulf %818, %807 : vector<8x32xf32>
    %820 = arith.index_cast %749 : i32 to index
    %c0_189 = arith.constant 0 : index
    %821 = vector.load %arg13[%820, %c0_189] : memref<64x32xf32, #tpu.memory_space<vmem>>, vector<8x32xf32>
    tpu.vector_store %arg13[%820, %c0_189], %819 {strides = array<i32>} : memref<64x32xf32, #tpu.memory_space<vmem>>, vector<8x32xf32>,
    %822 = vector.broadcast %810 : vector<8x1xf32> to vector<8x32xf32>
    %823 = arith.mulf %822, %782 : vector<8x32xf32>
    %cst_190 = arith.constant 1.000000e+00 : f32
    %824 = vector.broadcast %cst_190 : f32 to vector<8x1xf32>
    %825 = arith.subf %824, %810 : vector<8x1xf32>
    %826 = vector.broadcast %825 : vector<8x1xf32> to vector<8x32xf32>
    %827 = arith.mulf %826, %723 : vector<8x32xf32>
    %828 = arith.addf %823, %827 : vector<8x32xf32>
    %829 = vector.broadcast %810 : vector<8x1xf32> to vector<8x32xf32>
    %830 = arith.mulf %829, %780 : vector<8x32xf32>
    %cst_191 = arith.constant 1.000000e+00 : f32
    %831 = vector.broadcast %cst_191 : f32 to vector<8x1xf32>
    %832 = arith.subf %831, %810 : vector<8x1xf32>
    %833 = vector.broadcast %832 : vector<8x1xf32> to vector<8x32xf32>
    %834 = arith.mulf %833, %730 : vector<8x32xf32>
    %835 = arith.addf %830, %834 : vector<8x32xf32>
    %836 = vector.broadcast %813 : vector<8x1xf32> to vector<8x32xf32>
    %837 = arith.mulf %836, %807 : vector<8x32xf32>
    %cst_192 = arith.constant 1.000000e+00 : f32
    %838 = vector.broadcast %cst_192 : f32 to vector<8x1xf32>
    %839 = arith.subf %838, %813 : vector<8x1xf32>
    %840 = vector.broadcast %839 : vector<8x1xf32> to vector<8x32xf32>
    %841 = arith.mulf %840, %737 : vector<8x32xf32>
    %842 = arith.addf %837, %841 : vector<8x32xf32>
    %843 = vector.broadcast %813 : vector<8x1xf32> to vector<8x32xf32>
    %844 = arith.mulf %843, %805 : vector<8x32xf32>
    %cst_193 = arith.constant 1.000000e+00 : f32
    %845 = vector.broadcast %cst_193 : f32 to vector<8x1xf32>
    %846 = arith.subf %845, %813 : vector<8x1xf32>
    %847 = vector.broadcast %846 : vector<8x1xf32> to vector<8x32xf32>
    %848 = arith.mulf %847, %744 : vector<8x32xf32>
    %849 = arith.addf %844, %848 : vector<8x32xf32>
    %c8_i32_194 = arith.constant 8 : i32
    %c0_195 = arith.constant 0 : index
    %c0_196 = arith.constant 0 : index
    %850 = vector.load %arg12[%c0_195, %c0_196] : memref<64x32xf32, #tpu.memory_space<vmem>>, vector<64x32xf32>
    %851 = math.tanh %850 : vector<64x32xf32>
    %c0_197 = arith.constant 0 : index
    %c0_198 = arith.constant 0 : index
    %852 = vector.load %arg13[%c0_197, %c0_198] : memref<64x32xf32, #tpu.memory_space<vmem>>, vector<64x32xf32>
    %853 = math.tanh %852 : vector<64x32xf32>
    %c0_199 = arith.constant 0 : index
    %c0_200 = arith.constant 0 : index
    %854 = vector.load %arg7[%c0_199, %c0_200] : memref<32x128xf32, #tpu.memory_space<vmem>>, vector<32x128xf32>
    %cst_201 = arith.constant dense<0.000000e+00> : vector<64x128xf32>
    %855 = tpu.matmul %851, %854, %cst_201 {dimension_numbers = #tpu.dot_dimension_numbers<[1], [0], [0], [1], [0, 0, 1, 1], [], []>} : vector<64x32xf32>, vector<32x128xf32>, vector<64x128xf32> -> vector<64x128xf32>
    %c0_202 = arith.constant 0 : index
    %c0_203 = arith.constant 0 : index
    %856 = vector.load %arg8[%c0_202, %c0_203] : memref<32x128xf32, #tpu.memory_space<vmem>>, vector<32x128xf32>
    %cst_204 = arith.constant dense<0.000000e+00> : vector<64x128xf32>
    %857 = tpu.matmul %853, %856, %cst_204 {dimension_numbers = #tpu.dot_dimension_numbers<[1], [0], [0], [1], [0, 0, 1, 1], [], []>} : vector<64x32xf32>, vector<32x128xf32>, vector<64x128xf32> -> vector<64x128xf32>
    %858 = arith.addf %855, %857 : vector<64x128xf32>
    %c0_205 = arith.constant 0 : index
    %c0_206 = arith.constant 0 : index
    %859 = vector.load %arg9[%c0_205, %c0_206] : memref<1x128xf32, #tpu.memory_space<vmem>>, vector<1x128xf32>
    %860 = vector.broadcast %859 : vector<1x128xf32> to vector<64x128xf32>
    %861 = arith.addf %858, %860 : vector<64x128xf32>
    %c0_207 = arith.constant 0 : index
    %c0_208 = arith.constant 0 : index
    %862 = vector.load %arg10[%c0_207, %c0_208] : memref<64x128xf32, #tpu.memory_space<vmem>>, vector<64x128xf32>
    tpu.vector_store %arg10[%c0_207, %c0_208], %861 {strides = array<i32>} : memref<64x128xf32, #tpu.memory_space<vmem>>, vector<64x128xf32>,
    return
  }
  func.func @transform_0(%arg0: i32) -> (i32, i32) {
    %c0_i32 = arith.constant 0 : i32
    %c0_i32_0 = arith.constant 0 : i32
    %c0_i32_1 = arith.constant 0 : i32
    return %c0_i32, %c0_i32_0 : i32, i32
  }
  func.func @transform_1(%arg0: i32) -> (i32, i32, i32) {
    %c0_i32 = arith.constant 0 : i32
    %c0_i32_0 = arith.constant 0 : i32
    %c0_i32_1 = arith.constant 0 : i32
    %c0_i32_2 = arith.constant 0 : i32
    return %c0_i32, %c0_i32_0, %c0_i32_1 : i32, i32, i32
  }
  func.func @transform_2(%arg0: i32) -> (i32, i32) {
    %c0_i32 = arith.constant 0 : i32
    %c0_i32_0 = arith.constant 0 : i32
    %c0_i32_1 = arith.constant 0 : i32
    return %c0_i32, %c0_i32_0 : i32, i32
  }
  func.func @transform_3(%arg0: i32) -> (i32, i32) {
    %c0_i32 = arith.constant 0 : i32
    %c0_i32_0 = arith.constant 0 : i32
    %c0_i32_1 = arith.constant 0 : i32
    return %c0_i32, %c0_i32_0 : i32, i32
  }
  func.func @transform_4(%arg0: i32) -> (i32, i32) {
    %c0_i32 = arith.constant 0 : i32
    %c0_i32_0 = arith.constant 0 : i32
    %c0_i32_1 = arith.constant 0 : i32
    return %c0_i32, %c0_i32_0 : i32, i32
  }
  func.func @transform_5(%arg0: i32) -> (i32, i32) {
    %c0_i32 = arith.constant 0 : i32
    %c0_i32_0 = arith.constant 0 : i32
    %c0_i32_1 = arith.constant 0 : i32
    return %c0_i32, %c0_i32_0 : i32, i32
  }
  func.func @transform_6(%arg0: i32) -> (i32, i32) {
    %c0_i32 = arith.constant 0 : i32
    %c0_i32_0 = arith.constant 0 : i32
    %c0_i32_1 = arith.constant 0 : i32
    return %c0_i32, %c0_i32_0 : i32, i32
  }
  func.func @transform_7(%arg0: i32) -> (i32, i32) {
    %c0_i32 = arith.constant 0 : i32
    %c0_i32_0 = arith.constant 0 : i32
    %c0_i32_1 = arith.constant 0 : i32
    return %c0_i32, %c0_i32_0 : i32, i32
  }
  func.func @transform_8(%arg0: i32) -> (i32, i32) {
    %c0_i32 = arith.constant 0 : i32
    %c0_i32_0 = arith.constant 0 : i32
    %c0_i32_1 = arith.constant 0 : i32
    return %c0_i32, %c0_i32_0 : i32, i32
  }
  func.func @transform_9(%arg0: i32) -> (i32, i32) {
    %c0_i32 = arith.constant 0 : i32
    %c0_i32_0 = arith.constant 0 : i32
    %c0_i32_1 = arith.constant 0 : i32
    return %c0_i32, %c0_i32_0 : i32, i32
  }
}

</mosaic_0001>

<llo_original>
// kernel: tpu_custom_call.1
$region0: #{tpu_custom_call.1}
  #allocation0 [shape = 'u32[]', space=smem, size = 0x4, offset = 0x4, fixed_abs, tag = 'smem constant byte address 0x4 - core index']
  #allocation1 [shape = 'u32[144,128]{1,0:T(1,128)}', space=vmem, size = 0x12000, scoped, tag = 'internal scratch']
  #allocation2 [shape = 'f32[64,256]{1,0:T(8,128)}', space=vmem, size = 0x10000, scoped, tag = 'scratch operand']
  #allocation3 [shape = 'f32[64,32]{1,0:T(8,128)}', space=vmem, size = 0x8000, scoped, tag = 'scratch operand']
  #allocation4 [shape = 'f32[64,32]{1,0:T(8,128)}', space=vmem, size = 0x8000, scoped, tag = 'scratch operand']
  %s0 = inlined_call_operand.vmem [shape: f32[64,128], index: 0, kind: input, shape index: {}]
  %s1 = inlined_call_operand.vmem [shape: f32[8,8,1], index: 1, kind: input, shape index: {}]
  %s2 = inlined_call_operand.hbm [shape: f32[128,256], index: 2, kind: input, shape index: {}]
  %s3 = inlined_call_operand.vmem [shape: f32[1,256], index: 3, kind: input, shape index: {}]
  %s4 = inlined_call_operand.hbm [shape: f32[32,128], index: 4, kind: input, shape index: {}]
  %s5 = inlined_call_operand.hbm [shape: f32[32,128], index: 5, kind: input, shape index: {}]
  %s6 = inlined_call_operand.hbm [shape: f32[32,128], index: 6, kind: input, shape index: {}]
  %s7 = inlined_call_operand.vmem [shape: f32[32,128], index: 7, kind: input, shape index: {}]
  %s8 = inlined_call_operand.vmem [shape: f32[1,128], index: 8, kind: input, shape index: {}]
  %s9 = inlined_call_operand.hbm [shape: f32[64,128], index: 9, kind: output, shape index: {}]
  %s10 = sld [smem:[#allocation0]]
  $region62: #{tpu_custom_call.1} parent=0
    _
  %s12 = ssub.s32 1, %s10
  %s13 = scalar_select 0, %s12, %s10
  $region1: #{tpu_custom_call.1} parent=0
    #allocation5 [shape = 'u8[131072]{0}', space=vmem, size = 0x20000, scoped, tag = 'input window, operand 2, single buffered']
    #allocation6 [shape = 's32[1]{0}', space=sflag, size = 0x4, scoped, tag = 'scoped memory for tpu_custom_call.1']
    #allocation7 [shape = 's32[1]{0}', space=sflag, size = 0x4, scoped, tag = 'scoped memory for tpu_custom_call.1']
    #allocation8 [shape = 'u8[16384]{0}', space=vmem, size = 0x4000, scoped, tag = 'input window, operand 4, single buffered']
    #allocation9 [shape = 's32[1]{0}', space=sflag, size = 0x4, scoped, tag = 'scoped memory for tpu_custom_call.1']
    #allocation10 [shape = 'u8[16384]{0}', space=vmem, size = 0x4000, scoped, tag = 'input window, operand 5, single buffered']
    #allocation11 [shape = 'u8[16384]{0}', space=vmem, size = 0x4000, scoped, tag = 'input window, operand 6, single buffered']
    #allocation12 [shape = 's32[1]{0}', space=sflag, size = 0x4, scoped, tag = 'scoped memory for tpu_custom_call.1']
    #allocation13 [shape = 'u8[32768]{0}', space=vmem, size = 0x8000, scoped, tag = 'output window, operand 0, single buffered']
    %14 = vsyncpa [#allocation6], 0
    %15 = vsyncpa [#allocation9], 0
    %16 = vsyncpa [#allocation12], 0
    %17 = vsyncpa [#allocation7], 0
    // Predicated region
    $region2: #{tpu_custom_call.1} parent=1 // pred_check
      _
    $region3: #{tpu_custom_call.1} parent=1 // pred_check_branch
      %19 = sbr.rel (0) target = $region5
    $region4: #{tpu_custom_call.1} parent=1 // pred_region
      _
    $region5: #{tpu_custom_call.1} parent=1 // pred_fallthru
      _
    // Predicated region
    $region6: #{tpu_custom_call.1} parent=1 // pred_check
      _
    $region7: #{tpu_custom_call.1} parent=1 // pred_check_branch
      %21 = sbr.rel (0) target = $region9
    $region8: #{tpu_custom_call.1} parent=1 // pred_region
      _
    $region9: #{tpu_custom_call.1} parent=1 // pred_fallthru
      _
    // Predicated region
    $region10: #{tpu_custom_call.1} parent=1 // pred_check
      _
    $region11: #{tpu_custom_call.1} parent=1 // pred_check_branch
      %23 = sbr.rel (0) target = $region13
    $region12: #{tpu_custom_call.1} parent=1 // pred_region
      %s25 = ssub.s32 4096, 4096
      %26 = vsyncadd [#allocation6], %s25
      %s27 = sshll.u32 [#allocation5], 4
      %s28 = int_to_ptr.vmem [resolvable:$true] %s27
      %33 = dma.hbm_to_vmem [thread:$0]  %s2, 4096, %s28, [#allocation6], 256, 256, 16
    $region13: #{tpu_custom_call.1} parent=1 // pred_fallthru
      _
    // Predicated region
    $region14: #{tpu_custom_call.1} parent=1 // pred_check
      _
    $region15: #{tpu_custom_call.1} parent=1 // pred_check_branch
      %35 = sbr.rel (0) target = $region17
    $region16: #{tpu_custom_call.1} parent=1 // pred_region
      _
    $region17: #{tpu_custom_call.1} parent=1 // pred_fallthru
      _
    // Predicated region
    $region18: #{tpu_custom_call.1} parent=1 // pred_check
      _
    $region19: #{tpu_custom_call.1} parent=1 // pred_check_branch
      %37 = sbr.rel (0) target = $region21
    $region20: #{tpu_custom_call.1} parent=1 // pred_region
      %s39 = ssub.s32 512, 512
      %40 = vsyncadd [#allocation9], %s39
      %s41 = sshll.u32 [#allocation8], 4
      %s42 = int_to_ptr.vmem [resolvable:$true] %s41
      %47 = dma.hbm_to_vmem [thread:$0]  %s4, 512, %s42, [#allocation9], 128, 128, 8
    $region21: #{tpu_custom_call.1} parent=1 // pred_fallthru
      _
    // Predicated region
    $region22: #{tpu_custom_call.1} parent=1 // pred_check
      _
    $region23: #{tpu_custom_call.1} parent=1 // pred_check_branch
      %49 = sbr.rel (0) target = $region25
    $region24: #{tpu_custom_call.1} parent=1 // pred_region
      %s51 = ssub.s32 512, 512
      %52 = vsyncadd [#allocation9], %s51
      %s53 = sshll.u32 [#allocation10], 4
      %s54 = int_to_ptr.vmem [resolvable:$true] %s53
      %59 = dma.hbm_to_vmem [thread:$0]  %s5, 512, %s54, [#allocation9], 128, 128, 8
    $region25: #{tpu_custom_call.1} parent=1 // pred_fallthru
      _
    // Predicated region
    $region26: #{tpu_custom_call.1} parent=1 // pred_check
      _
    $region27: #{tpu_custom_call.1} parent=1 // pred_check_branch
      %61 = sbr.rel (0) target = $region29
    $region28: #{tpu_custom_call.1} parent=1 // pred_region
      %s63 = ssub.s32 512, 512
      %64 = vsyncadd [#allocation12], %s63
      %s65 = sshll.u32 [#allocation11], 4
      %s66 = int_to_ptr.vmem [resolvable:$true] %s65
      %71 = dma.hbm_to_vmem [thread:$0]  %s6, 512, %s66, [#allocation12], 128, 128, 8
    $region29: #{tpu_custom_call.1} parent=1 // pred_fallthru
      _
    // Predicated region
    $region30: #{tpu_custom_call.1} parent=1 // pred_check
      _
    $region31: #{tpu_custom_call.1} parent=1 // pred_check_branch
      %73 = sbr.rel (0) target = $region33
    $region32: #{tpu_custom_call.1} parent=1 // pred_region
      _
    $region33: #{tpu_custom_call.1} parent=1 // pred_fallthru
      _
    // Predicated region
    $region34: #{tpu_custom_call.1} parent=1 // pred_check
      _
    $region35: #{tpu_custom_call.1} parent=1 // pred_check_branch
      %75 = sbr.rel (0) target = $region37
    $region36: #{tpu_custom_call.1} parent=1 // pred_region
      _
    $region37: #{tpu_custom_call.1} parent=1 // pred_fallthru
      _
    // Predicated region
    $region38: #{tpu_custom_call.1} parent=1 // pred_check
      _
    $region39: #{tpu_custom_call.1} parent=1 // pred_check_branch
      %77 = sbr.rel (0) target = $region41
    $region40: #{tpu_custom_call.1} parent=1 // pred_region
      %78 = dma.done [#allocation6], 4096
    $region41: #{tpu_custom_call.1} parent=1 // pred_fallthru
      _
    // Predicated region
    $region42: #{tpu_custom_call.1} parent=1 // pred_check
      _
    $region43: #{tpu_custom_call.1} parent=1 // pred_check_branch
      %80 = sbr.rel (0) target = $region45
    $region44: #{tpu_custom_call.1} parent=1 // pred_region
      %81 = dma.done [#allocation9], 512
    $region45: #{tpu_custom_call.1} parent=1 // pred_fallthru
      _
    // Predicated region
    $region46: #{tpu_custom_call.1} parent=1 // pred_check
      _
    $region47: #{tpu_custom_call.1} parent=1 // pred_check_branch
      %83 = sbr.rel (0) target = $region49
    $region48: #{tpu_custom_call.1} parent=1 // pred_region
      %84 = dma.done [#allocation9], 512
    $region49: #{tpu_custom_call.1} parent=1 // pred_fallthru
      _
    // Predicated region
    $region50: #{tpu_custom_call.1} parent=1 // pred_check
      _
    $region51: #{tpu_custom_call.1} parent=1 // pred_check_branch
      %86 = sbr.rel (0) target = $region53
    $region52: #{tpu_custom_call.1} parent=1 // pred_region
      %87 = dma.done [#allocation12], 512
    $region53: #{tpu_custom_call.1} parent=1 // pred_fallthru
      _
    %v88 = vld [vmem:[%s0] sm:$0xff]
    %v89 = vld [vmem:[%s0 + $0x8] sm:$0xff]
    %v90 = vld [vmem:[%s0 + $0x10] sm:$0xff]
    %v91 = vld [vmem:[%s0 + $0x18] sm:$0xff]
    %v92 = vld [vmem:[%s0 + $0x20] sm:$0xff]
    %v93 = vld [vmem:[%s0 + $0x28] sm:$0xff]
    %v94 = vld [vmem:[%s0 + $0x30] sm:$0xff]
    %v95 = vld [vmem:[%s0 + $0x38] sm:$0xff]
    %v96 = vld [vmem:[#allocation5] sm:$0xff]
    %v97 = vld [vmem:[#allocation5 + $0x8] sm:$0xff]
    %v98 = vld [vmem:[#allocation5 + $0x10] sm:$0xff]
    %v99 = vld [vmem:[#allocation5 + $0x18] sm:$0xff]
    %v100 = vld [vmem:[#allocation5 + $0x20] sm:$0xff]
    %v101 = vld [vmem:[#allocation5 + $0x28] sm:$0xff]
    %v102 = vld [vmem:[#allocation5 + $0x30] sm:$0xff]
    %v103 = vld [vmem:[#allocation5 + $0x38] sm:$0xff]
    %v104 = vld [vmem:[#allocation5 + $0x40] sm:$0xff]
    %v105 = vld [vmem:[#allocation5 + $0x48] sm:$0xff]
    %v106 = vld [vmem:[#allocation5 + $0x50] sm:$0xff]
    %v107 = vld [vmem:[#allocation5 + $0x58] sm:$0xff]
    %v108 = vld [vmem:[#allocation5 + $0x60] sm:$0xff]
    %v109 = vld [vmem:[#allocation5 + $0x68] sm:$0xff]
    %v110 = vld [vmem:[#allocation5 + $0x70] sm:$0xff]
    %v111 = vld [vmem:[#allocation5 + $0x78] sm:$0xff]
    %v112 = vld [vmem:[#allocation5 + $0x80] sm:$0xff]
    %v113 = vld [vmem:[#allocation5 + $0x88] sm:$0xff]
    %v114 = vld [vmem:[#allocation5 + $0x90] sm:$0xff]
    %v115 = vld [vmem:[#allocation5 + $0x98] sm:$0xff]
    %v116 = vld [vmem:[#allocation5 + $0xa0] sm:$0xff]
    %v117 = vld [vmem:[#allocation5 + $0xa8] sm:$0xff]
    %v118 = vld [vmem:[#allocation5 + $0xb0] sm:$0xff]
    %v119 = vld [vmem:[#allocation5 + $0xb8] sm:$0xff]
    %v120 = vld [vmem:[#allocation5 + $0xc0] sm:$0xff]
    %v121 = vld [vmem:[#allocation5 + $0xc8] sm:$0xff]
    %v122 = vld [vmem:[#allocation5 + $0xd0] sm:$0xff]
    %v123 = vld [vmem:[#allocation5 + $0xd8] sm:$0xff]
    %v124 = vld [vmem:[#allocation5 + $0xe0] sm:$0xff]
    %v125 = vld [vmem:[#allocation5 + $0xe8] sm:$0xff]
    %v126 = vld [vmem:[#allocation5 + $0xf0] sm:$0xff]
    %v127 = vld [vmem:[#allocation5 + $0xf8] sm:$0xff]
    %v128 = vld [vmem:[%s3] sm:$0x3]
    %v130 = vlaneseq
    %v131 = vshrl.u32 %v130, 7
    %v132 = vsub.s32 0, %v131
    %v133 = vrot.slane %v128, %v132
    %v134 = vlaneseq
    %v135 = vshrl.u32 %v134, 7
    %v136 = vsub.s32 1, %v135
    %v137 = vrot.slane %v128, %v136
    %140 = vmatprep.subr.mxu0 %v97
    %141 = vmatpush1.msra.mxu0 %v96
    %142 = vmatprep.subr.mxu0 %v99
    %143 = vmatpush1.msra.mxu0 %v98
    %144 = vmatprep.subr.mxu0 %v101
    %145 = vmatpush1.msra.mxu0 %v100
    %146 = vmatprep.subr.mxu0 %v103
    %147 = vmatpush1.msra.mxu0 %v102
    %148 = vmatprep.subr.mxu0 %v105
    %149 = vmatpush1.msra.mxu0 %v104
    %150 = vmatprep.subr.mxu0 %v107
    %151 = vmatpush1.msra.mxu0 %v106
    %152 = vmatprep.subr.mxu0 %v109
    %153 = vmatpush1.msra.mxu0 %v108
    %154 = vmatprep.subr.mxu0 %v111
    %155 = vmatpush1.msra.mxu0 %v110
    %156 = vmatprep.subr.mxu0 %v113
    %157 = vmatpush1.msra.mxu0 %v112
    %158 = vmatprep.subr.mxu0 %v115
    %159 = vmatpush1.msra.mxu0 %v114
    %160 = vmatprep.subr.mxu0 %v117
    %161 = vmatpush1.msra.mxu0 %v116
    %162 = vmatprep.subr.mxu0 %v119
    %163 = vmatpush1.msra.mxu0 %v118
    %164 = vmatprep.subr.mxu0 %v121
    %165 = vmatpush1.msra.mxu0 %v120
    %166 = vmatprep.subr.mxu0 %v123
    %167 = vmatpush1.msra.mxu0 %v122
    %168 = vmatprep.subr.mxu0 %v125
    %169 = vmatpush1.msra.mxu0 %v124
    %170 = vmatprep.subr.mxu0 %v127
    %171 = vmatpush1.msra.mxu0 %v126
    %172 = vmatprep.subr.mxu0 0.0
    %173 = vmatpush1.msra.mxu0 0.0
    %174 = vmatprep.subr.mxu0 0.0
    %175 = vmatpush1.msra.mxu0 0.0
    %176 = vmatprep.subr.mxu0 0.0
    %177 = vmatpush1.msra.mxu0 0.0
    %178 = vmatprep.subr.mxu0 0.0
    %179 = vmatpush1.msra.mxu0 0.0
    %180 = vmatprep.subr.mxu0 0.0
    %181 = vmatpush1.msra.mxu0 0.0
    %182 = vmatprep.subr.mxu0 0.0
    %183 = vmatpush1.msra.mxu0 0.0
    %184 = vmatprep.subr.mxu0 0.0
    %185 = vmatpush1.msra.mxu0 0.0
    %186 = vmatprep.subr.mxu0 0.0
    %187 = vmatpush1.msra.mxu0 0.0
    %188 = vmatprep.subr.mxu0 0.0
    %189 = vmatpush1.msra.mxu0 0.0
    %190 = vmatprep.subr.mxu0 0.0
    %191 = vmatpush1.msra.mxu0 0.0
    %192 = vmatprep.subr.mxu0 0.0
    %193 = vmatpush1.msra.mxu0 0.0
    %194 = vmatprep.subr.mxu0 0.0
    %195 = vmatpush1.msra.mxu0 0.0
    %196 = vmatprep.subr.mxu0 0.0
    %197 = vmatpush1.msra.mxu0 0.0
    %198 = vmatprep.subr.mxu0 0.0
    %199 = vmatpush1.msra.mxu0 0.0
    %200 = vmatprep.subr.mxu0 0.0
    %201 = vmatpush1.msra.mxu0 0.0
    %202 = vmatprep.subr.mxu0 0.0
    %203 = vmatpush1.msra.mxu0 0.0
    %204 = vmatprep.mubr.f32.mxu0 0.0
    %205 = vmatmul.mubr.f32.gmra.mrb[0].mxu0 %v88
    %v206 = vpop.f32.mrb[0].mxu0
    %v207 = vadd.f32 %v133, %v206
    %v208 = vpop.f32.mrb[0].mxu0
    %v209 = vadd.f32 %v137, %v208
    %210 = vmatprep.mubr.f32.mxu0 0.0
    %211 = vmatmul.mubr.f32.gmra.mrb[0].mxu0 %v89
    %v212 = vpop.f32.mrb[0].mxu0
    %v213 = vadd.f32 %v133, %v212
    %v214 = vpop.f32.mrb[0].mxu0
    %v215 = vadd.f32 %v137, %v214
    %216 = vmatprep.mubr.f32.mxu0 0.0
    %217 = vmatmul.mubr.f32.gmra.mrb[0].mxu0 %v90
    %v218 = vpop.f32.mrb[0].mxu0
    %v219 = vadd.f32 %v133, %v218
    %v220 = vpop.f32.mrb[0].mxu0
    %v221 = vadd.f32 %v137, %v220
    %222 = vmatprep.mubr.f32.mxu0 0.0
    %223 = vmatmul.mubr.f32.gmra.mrb[0].mxu0 %v91
    %v224 = vpop.f32.mrb[0].mxu0
    %v225 = vadd.f32 %v133, %v224
    %v226 = vpop.f32.mrb[0].mxu0
    %v227 = vadd.f32 %v137, %v226
    %228 = vmatprep.mubr.f32.mxu0 0.0
    %229 = vmatmul.mubr.f32.gmra.mrb[0].mxu0 %v92
    %v230 = vpop.f32.mrb[0].mxu0
    %v231 = vadd.f32 %v133, %v230
    %v232 = vpop.f32.mrb[0].mxu0
    %v233 = vadd.f32 %v137, %v232
    %234 = vmatprep.mubr.f32.mxu0 0.0
    %235 = vmatmul.mubr.f32.gmra.mrb[0].mxu0 %v93
    %v236 = vpop.f32.mrb[0].mxu0
    %v237 = vadd.f32 %v133, %v236
    %v238 = vpop.f32.mrb[0].mxu0
    %v239 = vadd.f32 %v137, %v238
    %240 = vmatprep.mubr.f32.mxu0 0.0
    %241 = vmatmul.mubr.f32.gmra.mrb[0].mxu0 %v94
    %v242 = vpop.f32.mrb[0].mxu0
    %v243 = vadd.f32 %v133, %v242
    %v244 = vpop.f32.mrb[0].mxu0
    %v245 = vadd.f32 %v137, %v244
    %246 = vmatprep.mubr.f32.mxu0 0.0
    %247 = vmatmul.mubr.f32.gmra.mrb[0].mxu0 %v95
    %v248 = vpop.f32.mrb[0].mxu0
    %v249 = vadd.f32 %v133, %v248
    %v250 = vpop.f32.mrb[0].mxu0
    %v251 = vadd.f32 %v137, %v250
    %252 = vdwg.mxu0
    %253 = vst [vmem:[#allocation2] sm:$0xff] %v207
    %254 = vst [vmem:[#allocation2 + $0x8] sm:$0xff] %v209
    %255 = vst [vmem:[#allocation2 + $0x10] sm:$0xff] %v213
    %256 = vst [vmem:[#allocation2 + $0x18] sm:$0xff] %v215
    %257 = vst [vmem:[#allocation2 + $0x20] sm:$0xff] %v219
    %258 = vst [vmem:[#allocation2 + $0x28] sm:$0xff] %v221
    %259 = vst [vmem:[#allocation2 + $0x30] sm:$0xff] %v225
    %260 = vst [vmem:[#allocation2 + $0x38] sm:$0xff] %v227
    %261 = vst [vmem:[#allocation2 + $0x40] sm:$0xff] %v231
    %262 = vst [vmem:[#allocation2 + $0x48] sm:$0xff] %v233
    %263 = vst [vmem:[#allocation2 + $0x50] sm:$0xff] %v237
    %264 = vst [vmem:[#allocation2 + $0x58] sm:$0xff] %v239
    %265 = vst [vmem:[#allocation2 + $0x60] sm:$0xff] %v243
    %266 = vst [vmem:[#allocation2 + $0x68] sm:$0xff] %v245
    %267 = vst [vmem:[#allocation2 + $0x70] sm:$0xff] %v249
    %268 = vst [vmem:[#allocation2 + $0x78] sm:$0xff] %v251
    %v269 = vld [vmem:[#allocation8] sm:$0xff]
    %v270 = vld [vmem:[#allocation8 + $0x8] sm:$0xff]
    %v271 = vld [vmem:[#allocation8 + $0x10] sm:$0xff]
    %v272 = vld [vmem:[#allocation8 + $0x18] sm:$0xff]
    %v273 = vld [vmem:[#allocation10] sm:$0xff]
    %v274 = vld [vmem:[#allocation10 + $0x8] sm:$0xff]
    %v275 = vld [vmem:[#allocation10 + $0x10] sm:$0xff]
    %v276 = vld [vmem:[#allocation10 + $0x18] sm:$0xff]
    %s277 = smul.u32 0, 2
    %s278 = smul.addr %s277, 8
    %s279 = scalar_lea.vmem [#allocation2], %s278
    %v280 = vld [vmem:[%s279] sm:$0xff]
    %vm281 = vcmask 261120
    %v283 = vsel %vm281, 0.0, 0
    %285 = vmatprep.subr.mxu0 0.0
    %286 = vmatpush1.msra.mxu0 %v269
    %287 = vmatprep.subr.mxu0 0.0
    %288 = vmatpush1.msra.mxu0 %v270
    %289 = vmatprep.subr.mxu0 0.0
    %290 = vmatpush1.msra.mxu0 %v271
    %291 = vmatprep.subr.mxu0 0.0
    %292 = vmatpush1.msra.mxu0 %v272
    %293 = vmatprep.subr.mxu0 0.0
    %294 = vmatpush1.msra.mxu0 0.0
    %295 = vmatprep.subr.mxu0 0.0
    %296 = vmatpush1.msra.mxu0 0.0
    %297 = vmatprep.subr.mxu0 0.0
    %298 = vmatpush1.msra.mxu0 0.0
    %299 = vmatprep.subr.mxu0 0.0
    %300 = vmatpush1.msra.mxu0 0.0
    %301 = vmatprep.subr.mxu0 0.0
    %302 = vmatpush1.msra.mxu0 0.0
    %303 = vmatprep.subr.mxu0 0.0
    %304 = vmatpush1.msra.mxu0 0.0
    %305 = vmatprep.subr.mxu0 0.0
    %306 = vmatpush1.msra.mxu0 0.0
    %307 = vmatprep.subr.mxu0 0.0
    %308 = vmatpush1.msra.mxu0 0.0
    %309 = vmatprep.subr.mxu0 0.0
    %310 = vmatpush1.msra.mxu0 0.0
    %311 = vmatprep.subr.mxu0 0.0
    %312 = vmatpush1.msra.mxu0 0.0
    %313 = vmatprep.subr.mxu0 0.0
    %314 = vmatpush1.msra.mxu0 0.0
    %315 = vmatprep.subr.mxu0 0.0
    %316 = vmatpush1.msra.mxu0 0.0
    %317 = vmatprep.subr.mxu0 0.0
    %318 = vmatpush1.msra.mxu0 0.0
    %319 = vmatprep.subr.mxu0 0.0
    %320 = vmatpush1.msra.mxu0 0.0
    %321 = vmatprep.subr.mxu0 0.0
    %322 = vmatpush1.msra.mxu0 0.0
    %323 = vmatprep.subr.mxu0 0.0
    %324 = vmatpush1.msra.mxu0 0.0
    %325 = vmatprep.subr.mxu0 0.0
    %326 = vmatpush1.msra.mxu0 0.0
    %327 = vmatprep.subr.mxu0 0.0
    %328 = vmatpush1.msra.mxu0 0.0
    %329 = vmatprep.subr.mxu0 0.0
    %330 = vmatpush1.msra.mxu0 0.0
    %331 = vmatprep.subr.mxu0 0.0
    %332 = vmatpush1.msra.mxu0 0.0
    %333 = vmatprep.subr.mxu0 0.0
    %334 = vmatpush1.msra.mxu0 0.0
    %335 = vmatprep.subr.mxu0 0.0
    %336 = vmatpush1.msra.mxu0 0.0
    %337 = vmatprep.subr.mxu0 0.0
    %338 = vmatpush1.msra.mxu0 0.0
    %339 = vmatprep.subr.mxu0 0.0
    %340 = vmatpush1.msra.mxu0 0.0
    %341 = vmatprep.subr.mxu0 0.0
    %342 = vmatpush1.msra.mxu0 0.0
    %343 = vmatprep.subr.mxu0 0.0
    %344 = vmatpush1.msra.mxu0 0.0
    %345 = vmatprep.subr.mxu0 0.0
    %346 = vmatpush1.msra.mxu0 0.0
    %347 = vmatprep.subr.mxu0 0.0
    %348 = vmatpush1.msra.mxu0 0.0
    %349 = vmatprep.mubr.f32.mxu0 0.0
    %350 = vmatmul.mubr.f32.gmra.mrb[0].mxu0 %v283
    %v351 = vpop.f32.mrb[0].mxu0
    %v352 = vadd.f32 0.0, %v351
    %v353 = vpop.f32.mrb[0].mxu0
    %354 = vdwg.mxu0
    %v355 = vadd.f32 %v280, %v352
    %s356 = smul.u32 7, 2
    %s357 = smul.addr %s356, 8
    %s358 = scalar_lea.vmem [#allocation2], %s357
    %v359 = vld [vmem:[%s358 + $0x8] sm:$0xff]
    %360 = vmatprep.subr.mxu0 0.0
    %361 = vmatpush1.msra.mxu0 %v273
    %362 = vmatprep.subr.mxu0 0.0
    %363 = vmatpush1.msra.mxu0 %v274
    %364 = vmatprep.subr.mxu0 0.0
    %365 = vmatpush1.msra.mxu0 %v275
    %366 = vmatprep.subr.mxu0 0.0
    %367 = vmatpush1.msra.mxu0 %v276
    %368 = vmatprep.subr.mxu0 0.0
    %369 = vmatpush1.msra.mxu0 0.0
    %370 = vmatprep.subr.mxu0 0.0
    %371 = vmatpush1.msra.mxu0 0.0
    %372 = vmatprep.subr.mxu0 0.0
    %373 = vmatpush1.msra.mxu0 0.0
    %374 = vmatprep.subr.mxu0 0.0
    %375 = vmatpush1.msra.mxu0 0.0
    %376 = vmatprep.subr.mxu0 0.0
    %377 = vmatpush1.msra.mxu0 0.0
    %378 = vmatprep.subr.mxu0 0.0
    %379 = vmatpush1.msra.mxu0 0.0
    %380 = vmatprep.subr.mxu0 0.0
    %381 = vmatpush1.msra.mxu0 0.0
    %382 = vmatprep.subr.mxu0 0.0
    %383 = vmatpush1.msra.mxu0 0.0
    %384 = vmatprep.subr.mxu0 0.0
    %385 = vmatpush1.msra.mxu0 0.0
    %386 = vmatprep.subr.mxu0 0.0
    %387 = vmatpush1.msra.mxu0 0.0
    %388 = vmatprep.subr.mxu0 0.0
    %389 = vmatpush1.msra.mxu0 0.0
    %390 = vmatprep.subr.mxu0 0.0
    %391 = vmatpush1.msra.mxu0 0.0
    %392 = vmatprep.subr.mxu0 0.0
    %393 = vmatpush1.msra.mxu0 0.0
    %394 = vmatprep.subr.mxu0 0.0
    %395 = vmatpush1.msra.mxu0 0.0
    %396 = vmatprep.subr.mxu0 0.0
    %397 = vmatpush1.msra.mxu0 0.0
    %398 = vmatprep.subr.mxu0 0.0
    %399 = vmatpush1.msra.mxu0 0.0
    %400 = vmatprep.subr.mxu0 0.0
    %401 = vmatpush1.msra.mxu0 0.0
    %402 = vmatprep.subr.mxu0 0.0
    %403 = vmatpush1.msra.mxu0 0.0
    %404 = vmatprep.subr.mxu0 0.0
    %405 = vmatpush1.msra.mxu0 0.0
    %406 = vmatprep.subr.mxu0 0.0
    %407 = vmatpush1.msra.mxu0 0.0
    %408 = vmatprep.subr.mxu0 0.0
    %409 = vmatpush1.msra.mxu0 0.0
    %410 = vmatprep.subr.mxu0 0.0
    %411 = vmatpush1.msra.mxu0 0.0
    %412 = vmatprep.subr.mxu0 0.0
    %413 = vmatpush1.msra.mxu0 0.0
    %414 = vmatprep.subr.mxu0 0.0
    %415 = vmatpush1.msra.mxu0 0.0
    %416 = vmatprep.subr.mxu0 0.0
    %417 = vmatpush1.msra.mxu0 0.0
    %418 = vmatprep.subr.mxu0 0.0
    %419 = vmatpush1.msra.mxu0 0.0
    %420 = vmatprep.subr.mxu0 0.0
    %421 = vmatpush1.msra.mxu0 0.0
    %422 = vmatprep.subr.mxu0 0.0
    %423 = vmatpush1.msra.mxu0 0.0
    %424 = vmatprep.mubr.f32.mxu0 0.0
    %425 = vmatmul.mubr.f32.gmra.mrb[0].mxu0 %v283
    %v426 = vpop.f32.mrb[0].mxu0
    %v427 = vadd.f32 0.0, %v426
    %v428 = vpop.f32.mrb[0].mxu0
    %429 = vdwg.mxu0
    %v430 = vadd.f32 %v359, %v427
    %v431 = vxor.u32 %v355, 2147483648
    %v432 = vmul.f32 %v431, 1.442695
    %v433 = vpow.pop %v432
    %v434 = vadd.f32 %v433, 1.0
    %v435 = vrcp.pop %v434
    %v436 = vmul.f32 1.0, %v435
    %v437 = vtanh.pop %v355
    %v438 = vmul.f32 %v436, 0.0
    %440 = vrot.lane.b32.xlu0 %v437, 64
    %v441 = vpop.permute.xlu0 %440
    %v443 = vmul.f32 %v436, %v441
    %445 = vrot.lane.b32.xlu0 %v443, 32
    %v446 = vpop.permute.xlu0 %445
    %v448 = vadd.f32 %v438, %v446
    %v449 = vtanh.pop %v448
    %451 = vrot.lane.b32.xlu0 %v449, 64
    %v452 = vpop.permute.xlu0 %451
    %v454 = vmul.f32 %v436, %v452
    %v455 = vxor.u32 %v430, 2147483648
    %v456 = vmul.f32 %v455, 1.442695
    %v457 = vpow.pop %v456
    %v458 = vadd.f32 %v457, 1.0
    %v459 = vrcp.pop %v458
    %v460 = vmul.f32 1.0, %v459
    %v461 = vtanh.pop %v430
    %v462 = vmul.f32 %v460, 0.0
    %464 = vrot.lane.b32.xlu0 %v461, 64
    %v465 = vpop.permute.xlu0 %464
    %v467 = vmul.f32 %v460, %v465
    %469 = vrot.lane.b32.xlu0 %v467, 32
    %v470 = vpop.permute.xlu0 %469
    %v472 = vadd.f32 %v462, %v470
    %v473 = vtanh.pop %v472
    %475 = vrot.lane.b32.xlu0 %v473, 64
    %v476 = vpop.permute.xlu0 %475
    %v478 = vmul.f32 %v460, %v476
    %v479 = vld [vmem:[%s1] sm:$0xff]
    %s480 = scalar_lea.vmem %s1, 56
    %v481 = vld [vmem:[%s480] sm:$0xff]
    %483 = vset.pattern.permute.xlu0 0
    %484 = vperm.xlu0 %483, %v479
    %v485 = vpop.permute.xlu0 %484
    %v487 = vmul.f32 %v485, %v454
    %489 = vrot.lane.b32.xlu0 %v487, 32
    %v490 = vpop.permute.xlu0 %489
    %492 = vst.msk [vmem:[#allocation3] sm:$0xff] %vm281, %v490
    %494 = vset.pattern.permute.xlu0 0
    %495 = vperm.xlu0 %494, %v481
    %v496 = vpop.permute.xlu0 %495
    %v498 = vmul.f32 %v496, %v478
    %500 = vrot.lane.b32.xlu0 %v498, 32
    %v501 = vpop.permute.xlu0 %500
    %s503 = scalar_lea.vmem [#allocation4], 56
    %504 = vst.msk [vmem:[%s503] sm:$0xff] %vm281, %v501
    %v505 = vsub.f32 1.0, %v479
    %507 = vset.pattern.permute.xlu0 0
    %508 = vperm.xlu0 %507, %v505
    %v509 = vpop.permute.xlu0 %508
    %v511 = vmul.f32 %v509, 0.0
    %v512 = vadd.f32 %v487, %v511
    %v513 = vmul.f32 %v485, %v448
    %v514 = vadd.f32 %v513, %v511
    %v515 = vsub.f32 1.0, %v481
    %517 = vset.pattern.permute.xlu0 0
    %518 = vperm.xlu0 %517, %v515
    %v519 = vpop.permute.xlu0 %518
    %v521 = vmul.f32 %v519, 0.0
    %v522 = vadd.f32 %v498, %v521
    %v523 = vmul.f32 %v496, %v472
    %v524 = vadd.f32 %v523, %v521
    %s525 = smul.u32 1, 2
    %s526 = smul.addr %s525, 8
    %s527 = scalar_lea.vmem [#allocation2], %s526
    %v528 = vld [vmem:[%s527] sm:$0xff]
    %530 = vrot.lane.b32.xlu0 %v512, 32
    %v531 = vpop.permute.xlu0 %530
    %v532 = vsel %vm281, %v531, 0
    %534 = vmatprep.subr.mxu0 0.0
    %535 = vmatpush1.msra.mxu0 %v269
    %536 = vmatprep.subr.mxu0 0.0
    %537 = vmatpush1.msra.mxu0 %v270
    %538 = vmatprep.subr.mxu0 0.0
    %539 = vmatpush1.msra.mxu0 %v271
    %540 = vmatprep.subr.mxu0 0.0
    %541 = vmatpush1.msra.mxu0 %v272
    %542 = vmatprep.subr.mxu0 0.0
    %543 = vmatpush1.msra.mxu0 0.0
    %544 = vmatprep.subr.mxu0 0.0
    %545 = vmatpush1.msra.mxu0 0.0
    %546 = vmatprep.subr.mxu0 0.0
    %547 = vmatpush1.msra.mxu0 0.0
    %548 = vmatprep.subr.mxu0 0.0
    %549 = vmatpush1.msra.mxu0 0.0
    %550 = vmatprep.subr.mxu0 0.0
    %551 = vmatpush1.msra.mxu0 0.0
    %552 = vmatprep.subr.mxu0 0.0
    %553 = vmatpush1.msra.mxu0 0.0
    %554 = vmatprep.subr.mxu0 0.0
    %555 = vmatpush1.msra.mxu0 0.0
    %556 = vmatprep.subr.mxu0 0.0
    %557 = vmatpush1.msra.mxu0 0.0
    %558 = vmatprep.subr.mxu0 0.0
    %559 = vmatpush1.msra.mxu0 0.0
    %560 = vmatprep.subr.mxu0 0.0
    %561 = vmatpush1.msra.mxu0 0.0
    %562 = vmatprep.subr.mxu0 0.0
    %563 = vmatpush1.msra.mxu0 0.0
    %564 = vmatprep.subr.mxu0 0.0
    %565 = vmatpush1.msra.mxu0 0.0
    %566 = vmatprep.subr.mxu0 0.0
    %567 = vmatpush1.msra.mxu0 0.0
    %568 = vmatprep.subr.mxu0 0.0
    %569 = vmatpush1.msra.mxu0 0.0
    %570 = vmatprep.subr.mxu0 0.0
    %571 = vmatpush1.msra.mxu0 0.0
    %572 = vmatprep.subr.mxu0 0.0
    %573 = vmatpush1.msra.mxu0 0.0
    %574 = vmatprep.subr.mxu0 0.0
    %575 = vmatpush1.msra.mxu0 0.0
    %576 = vmatprep.subr.mxu0 0.0
    %577 = vmatpush1.msra.mxu0 0.0
    %578 = vmatprep.subr.mxu0 0.0
    %579 = vmatpush1.msra.mxu0 0.0
    %580 = vmatprep.subr.mxu0 0.0
    %581 = vmatpush1.msra.mxu0 0.0
    %582 = vmatprep.subr.mxu0 0.0
    %583 = vmatpush1.msra.mxu0 0.0
    %584 = vmatprep.subr.mxu0 0.0
    %585 = vmatpush1.msra.mxu0 0.0
    %586 = vmatprep.subr.mxu0 0.0
    %587 = vmatpush1.msra.mxu0 0.0
    %588 = vmatprep.subr.mxu0 0.0
    %589 = vmatpush1.msra.mxu0 0.0
    %590 = vmatprep.subr.mxu0 0.0
    %591 = vmatpush1.msra.mxu0 0.0
    %592 = vmatprep.subr.mxu0 0.0
    %593 = vmatpush1.msra.mxu0 0.0
    %594 = vmatprep.subr.mxu0 0.0
    %595 = vmatpush1.msra.mxu0 0.0
    %596 = vmatprep.subr.mxu0 0.0
    %597 = vmatpush1.msra.mxu0 0.0
    %598 = vmatprep.mubr.f32.mxu0 0.0
    %599 = vmatmul.mubr.f32.gmra.mrb[0].mxu0 %v532
    %v600 = vpop.f32.mrb[0].mxu0
    %v601 = vadd.f32 0.0, %v600
    %v602 = vpop.f32.mrb[0].mxu0
    %603 = vdwg.mxu0
    %v604 = vadd.f32 %v528, %v601
    %s605 = smul.u32 6, 2
    %s606 = smul.addr %s605, 8
    %s607 = scalar_lea.vmem [#allocation2], %s606
    %v608 = vld [vmem:[%s607 + $0x8] sm:$0xff]
    %610 = vrot.lane.b32.xlu0 %v522, 32
    %v611 = vpop.permute.xlu0 %610
    %v612 = vsel %vm281, %v611, 0
    %614 = vmatprep.subr.mxu0 0.0
    %615 = vmatpush1.msra.mxu0 %v273
    %616 = vmatprep.subr.mxu0 0.0
    %617 = vmatpush1.msra.mxu0 %v274
    %618 = vmatprep.subr.mxu0 0.0
    %619 = vmatpush1.msra.mxu0 %v275
    %620 = vmatprep.subr.mxu0 0.0
    %621 = vmatpush1.msra.mxu0 %v276
    %622 = vmatprep.subr.mxu0 0.0
    %623 = vmatpush1.msra.mxu0 0.0
    %624 = vmatprep.subr.mxu0 0.0
    %625 = vmatpush1.msra.mxu0 0.0
    %626 = vmatprep.subr.mxu0 0.0
    %627 = vmatpush1.msra.mxu0 0.0
    %628 = vmatprep.subr.mxu0 0.0
    %629 = vmatpush1.msra.mxu0 0.0
    %630 = vmatprep.subr.mxu0 0.0
    %631 = vmatpush1.msra.mxu0 0.0
    %632 = vmatprep.subr.mxu0 0.0
    %633 = vmatpush1.msra.mxu0 0.0
    %634 = vmatprep.subr.mxu0 0.0
    %635 = vmatpush1.msra.mxu0 0.0
    %636 = vmatprep.subr.mxu0 0.0
    %637 = vmatpush1.msra.mxu0 0.0
    %638 = vmatprep.subr.mxu0 0.0
    %639 = vmatpush1.msra.mxu0 0.0
    %640 = vmatprep.subr.mxu0 0.0
    %641 = vmatpush1.msra.mxu0 0.0
    %642 = vmatprep.subr.mxu0 0.0
    %643 = vmatpush1.msra.mxu0 0.0
    %644 = vmatprep.subr.mxu0 0.0
    %645 = vmatpush1.msra.mxu0 0.0
    %646 = vmatprep.subr.mxu0 0.0
    %647 = vmatpush1.msra.mxu0 0.0
    %648 = vmatprep.subr.mxu0 0.0
    %649 = vmatpush1.msra.mxu0 0.0
    %650 = vmatprep.subr.mxu0 0.0
    %651 = vmatpush1.msra.mxu0 0.0
    %652 = vmatprep.subr.mxu0 0.0
    %653 = vmatpush1.msra.mxu0 0.0
    %654 = vmatprep.subr.mxu0 0.0
    %655 = vmatpush1.msra.mxu0 0.0
    %656 = vmatprep.subr.mxu0 0.0
    %657 = vmatpush1.msra.mxu0 0.0
    %658 = vmatprep.subr.mxu0 0.0
    %659 = vmatpush1.msra.mxu0 0.0
    %660 = vmatprep.subr.mxu0 0.0
    %661 = vmatpush1.msra.mxu0 0.0
    %662 = vmatprep.subr.mxu0 0.0
    %663 = vmatpush1.msra.mxu0 0.0
    %664 = vmatprep.subr.mxu0 0.0
    %665 = vmatpush1.msra.mxu0 0.0
    %666 = vmatprep.subr.mxu0 0.0
    %667 = vmatpush1.msra.mxu0 0.0
    %668 = vmatprep.subr.mxu0 0.0
    %669 = vmatpush1.msra.mxu0 0.0
    %670 = vmatprep.subr.mxu0 0.0
    %671 = vmatpush1.msra.mxu0 0.0
    %672 = vmatprep.subr.mxu0 0.0
    %673 = vmatpush1.msra.mxu0 0.0
    %674 = vmatprep.subr.mxu0 0.0
    %675 = vmatpush1.msra.mxu0 0.0
    %676 = vmatprep.subr.mxu0 0.0
    %677 = vmatpush1.msra.mxu0 0.0
    %678 = vmatprep.mubr.f32.mxu0 0.0
    %679 = vmatmul.mubr.f32.gmra.mrb[0].mxu0 %v612
    %v680 = vpop.f32.mrb[0].mxu0
    %v681 = vadd.f32 0.0, %v680
    %v682 = vpop.f32.mrb[0].mxu0
    %683 = vdwg.mxu0
    %v684 = vadd.f32 %v608, %v681
    %v685 = vxor.u32 %v604, 2147483648
    %v686 = vmul.f32 %v685, 1.442695
    %v687 = vpow.pop %v686
    %v688 = vadd.f32 %v687, 1.0
    %v689 = vrcp.pop %v688
    %v690 = vmul.f32 1.0, %v689
    %v691 = vtanh.pop %v604
    %v692 = vmul.f32 %v690, %v514
    %694 = vrot.lane.b32.xlu0 %v691, 64
    %v695 = vpop.permute.xlu0 %694
    %v697 = vmul.f32 %v690, %v695
    %699 = vrot.lane.b32.xlu0 %v697, 32
    %v700 = vpop.permute.xlu0 %699
    %v702 = vadd.f32 %v692, %v700
    %v703 = vtanh.pop %v702
    %705 = vrot.lane.b32.xlu0 %v703, 64
    %v706 = vpop.permute.xlu0 %705
    %v708 = vmul.f32 %v690, %v706
    %v709 = vxor.u32 %v684, 2147483648
    %v710 = vmul.f32 %v709, 1.442695
    %v711 = vpow.pop %v710
    %v712 = vadd.f32 %v711, 1.0
    %v713 = vrcp.pop %v712
    %v714 = vmul.f32 1.0, %v713
    %v715 = vtanh.pop %v684
    %v716 = vmul.f32 %v714, %v524
    %718 = vrot.lane.b32.xlu0 %v715, 64
    %v719 = vpop.permute.xlu0 %718
    %v721 = vmul.f32 %v714, %v719
    %723 = vrot.lane.b32.xlu0 %v721, 32
    %v724 = vpop.permute.xlu0 %723
    %v726 = vadd.f32 %v716, %v724
    %v727 = vtanh.pop %v726
    %729 = vrot.lane.b32.xlu0 %v727, 64
    %v730 = vpop.permute.xlu0 %729
    %v732 = vmul.f32 %v714, %v730
    %s733 = scalar_lea.vmem %s1, 8
    %v734 = vld [vmem:[%s733] sm:$0xff]
    %s735 = scalar_lea.vmem %s1, 48
    %v736 = vld [vmem:[%s735] sm:$0xff]
    %738 = vset.pattern.permute.xlu0 0
    %739 = vperm.xlu0 %738, %v734
    %v740 = vpop.permute.xlu0 %739
    %v742 = vmul.f32 %v740, %v708
    %744 = vrot.lane.b32.xlu0 %v742, 32
    %v745 = vpop.permute.xlu0 %744
    %s747 = scalar_lea.vmem [#allocation3], 8
    %748 = vst.msk [vmem:[%s747] sm:$0xff] %vm281, %v745
    %750 = vset.pattern.permute.xlu0 0
    %751 = vperm.xlu0 %750, %v736
    %v752 = vpop.permute.xlu0 %751
    %v754 = vmul.f32 %v752, %v732
    %756 = vrot.lane.b32.xlu0 %v754, 32
    %v757 = vpop.permute.xlu0 %756
    %s759 = scalar_lea.vmem [#allocation4], 48
    %760 = vst.msk [vmem:[%s759] sm:$0xff] %vm281, %v757
    %v761 = vsub.f32 1.0, %v734
    %763 = vset.pattern.permute.xlu0 0
    %764 = vperm.xlu0 %763, %v761
    %v765 = vpop.permute.xlu0 %764
    %v767 = vmul.f32 %v765, %v512
    %v768 = vadd.f32 %v742, %v767
    %v769 = vmul.f32 %v740, %v702
    %v770 = vmul.f32 %v765, %v514
    %v771 = vadd.f32 %v769, %v770
    %v772 = vsub.f32 1.0, %v736
    %774 = vset.pattern.permute.xlu0 0
    %775 = vperm.xlu0 %774, %v772
    %v776 = vpop.permute.xlu0 %775
    %v778 = vmul.f32 %v776, %v522
    %v779 = vadd.f32 %v754, %v778
    %v780 = vmul.f32 %v752, %v726
    %v781 = vmul.f32 %v776, %v524
    %v782 = vadd.f32 %v780, %v781
    %s783 = smul.u32 2, 2
    %s784 = smul.addr %s783, 8
    %s785 = scalar_lea.vmem [#allocation2], %s784
    %v786 = vld [vmem:[%s785] sm:$0xff]
    %788 = vrot.lane.b32.xlu0 %v768, 32
    %v789 = vpop.permute.xlu0 %788
    %v790 = vsel %vm281, %v789, 0
    %792 = vmatprep.subr.mxu0 0.0
    %793 = vmatpush1.msra.mxu0 %v269
    %794 = vmatprep.subr.mxu0 0.0
    %795 = vmatpush1.msra.mxu0 %v270
    %796 = vmatprep.subr.mxu0 0.0
    %797 = vmatpush1.msra.mxu0 %v271
    %798 = vmatprep.subr.mxu0 0.0
    %799 = vmatpush1.msra.mxu0 %v272
    %800 = vmatprep.subr.mxu0 0.0
    %801 = vmatpush1.msra.mxu0 0.0
    %802 = vmatprep.subr.mxu0 0.0
    %803 = vmatpush1.msra.mxu0 0.0
    %804 = vmatprep.subr.mxu0 0.0
    %805 = vmatpush1.msra.mxu0 0.0
    %806 = vmatprep.subr.mxu0 0.0
    %807 = vmatpush1.msra.mxu0 0.0
    %808 = vmatprep.subr.mxu0 0.0
    %809 = vmatpush1.msra.mxu0 0.0
    %810 = vmatprep.subr.mxu0 0.0
    %811 = vmatpush1.msra.mxu0 0.0
    %812 = vmatprep.subr.mxu0 0.0
    %813 = vmatpush1.msra.mxu0 0.0
    %814 = vmatprep.subr.mxu0 0.0
    %815 = vmatpush1.msra.mxu0 0.0
    %816 = vmatprep.subr.mxu0 0.0
    %817 = vmatpush1.msra.mxu0 0.0
    %818 = vmatprep.subr.mxu0 0.0
    %819 = vmatpush1.msra.mxu0 0.0
    %820 = vmatprep.subr.mxu0 0.0
    %821 = vmatpush1.msra.mxu0 0.0
    %822 = vmatprep.subr.mxu0 0.0
    %823 = vmatpush1.msra.mxu0 0.0
    %824 = vmatprep.subr.mxu0 0.0
    %825 = vmatpush1.msra.mxu0 0.0
    %826 = vmatprep.subr.mxu0 0.0
    %827 = vmatpush1.msra.mxu0 0.0
    %828 = vmatprep.subr.mxu0 0.0
    %829 = vmatpush1.msra.mxu0 0.0
    %830 = vmatprep.subr.mxu0 0.0
    %831 = vmatpush1.msra.mxu0 0.0
    %832 = vmatprep.subr.mxu0 0.0
    %833 = vmatpush1.msra.mxu0 0.0
    %834 = vmatprep.subr.mxu0 0.0
    %835 = vmatpush1.msra.mxu0 0.0
    %836 = vmatprep.subr.mxu0 0.0
    %837 = vmatpush1.msra.mxu0 0.0
    %838 = vmatprep.subr.mxu0 0.0
    %839 = vmatpush1.msra.mxu0 0.0
    %840 = vmatprep.subr.mxu0 0.0
    %841 = vmatpush1.msra.mxu0 0.0
    %842 = vmatprep.subr.mxu0 0.0
    %843 = vmatpush1.msra.mxu0 0.0
    %844 = vmatprep.subr.mxu0 0.0
    %845 = vmatpush1.msra.mxu0 0.0
    %846 = vmatprep.subr.mxu0 0.0
    %847 = vmatpush1.msra.mxu0 0.0
    %848 = vmatprep.subr.mxu0 0.0
    %849 = vmatpush1.msra.mxu0 0.0
    %850 = vmatprep.subr.mxu0 0.0
    %851 = vmatpush1.msra.mxu0 0.0
    %852 = vmatprep.subr.mxu0 0.0
    %853 = vmatpush1.msra.mxu0 0.0
    %854 = vmatprep.subr.mxu0 0.0
    %855 = vmatpush1.msra.mxu0 0.0
    %856 = vmatprep.mubr.f32.mxu0 0.0
    %857 = vmatmul.mubr.f32.gmra.mrb[0].mxu0 %v790
    %v858 = vpop.f32.mrb[0].mxu0
    %v859 = vadd.f32 0.0, %v858
    %v860 = vpop.f32.mrb[0].mxu0
    %861 = vdwg.mxu0
    %v862 = vadd.f32 %v786, %v859
    %s863 = smul.u32 5, 2
    %s864 = smul.addr %s863, 8
    %s865 = scalar_lea.vmem [#allocation2], %s864
    %v866 = vld [vmem:[%s865 + $0x8] sm:$0xff]
    %868 = vrot.lane.b32.xlu0 %v779, 32
    %v869 = vpop.permute.xlu0 %868
    %v870 = vsel %vm281, %v869, 0
    %872 = vmatprep.subr.mxu0 0.0
    %873 = vmatpush1.msra.mxu0 %v273
    %874 = vmatprep.subr.mxu0 0.0
    %875 = vmatpush1.msra.mxu0 %v274
    %876 = vmatprep.subr.mxu0 0.0
    %877 = vmatpush1.msra.mxu0 %v275
    %878 = vmatprep.subr.mxu0 0.0
    %879 = vmatpush1.msra.mxu0 %v276
    %880 = vmatprep.subr.mxu0 0.0
    %881 = vmatpush1.msra.mxu0 0.0
    %882 = vmatprep.subr.mxu0 0.0
    %883 = vmatpush1.msra.mxu0 0.0
    %884 = vmatprep.subr.mxu0 0.0
    %885 = vmatpush1.msra.mxu0 0.0
    %886 = vmatprep.subr.mxu0 0.0
    %887 = vmatpush1.msra.mxu0 0.0
    %888 = vmatprep.subr.mxu0 0.0
    %889 = vmatpush1.msra.mxu0 0.0
    %890 = vmatprep.subr.mxu0 0.0
    %891 = vmatpush1.msra.mxu0 0.0
    %892 = vmatprep.subr.mxu0 0.0
    %893 = vmatpush1.msra.mxu0 0.0
    %894 = vmatprep.subr.mxu0 0.0
    %895 = vmatpush1.msra.mxu0 0.0
    %896 = vmatprep.subr.mxu0 0.0
    %897 = vmatpush1.msra.mxu0 0.0
    %898 = vmatprep.subr.mxu0 0.0
    %899 = vmatpush1.msra.mxu0 0.0
    %900 = vmatprep.subr.mxu0 0.0
    %901 = vmatpush1.msra.mxu0 0.0
    %902 = vmatprep.subr.mxu0 0.0
    %903 = vmatpush1.msra.mxu0 0.0
    %904 = vmatprep.subr.mxu0 0.0
    %905 = vmatpush1.msra.mxu0 0.0
    %906 = vmatprep.subr.mxu0 0.0
    %907 = vmatpush1.msra.mxu0 0.0
    %908 = vmatprep.subr.mxu0 0.0
    %909 = vmatpush1.msra.mxu0 0.0
    %910 = vmatprep.subr.mxu0 0.0
    %911 = vmatpush1.msra.mxu0 0.0
    %912 = vmatprep.subr.mxu0 0.0
    %913 = vmatpush1.msra.mxu0 0.0
    %914 = vmatprep.subr.mxu0 0.0
    %915 = vmatpush1.msra.mxu0 0.0
    %916 = vmatprep.subr.mxu0 0.0
    %917 = vmatpush1.msra.mxu0 0.0
    %918 = vmatprep.subr.mxu0 0.0
    %919 = vmatpush1.msra.mxu0 0.0
    %920 = vmatprep.subr.mxu0 0.0
    %921 = vmatpush1.msra.mxu0 0.0
    %922 = vmatprep.subr.mxu0 0.0
    %923 = vmatpush1.msra.mxu0 0.0
    %924 = vmatprep.subr.mxu0 0.0
    %925 = vmatpush1.msra.mxu0 0.0
    %926 = vmatprep.subr.mxu0 0.0
    %927 = vmatpush1.msra.mxu0 0.0
    %928 = vmatprep.subr.mxu0 0.0
    %929 = vmatpush1.msra.mxu0 0.0
    %930 = vmatprep.subr.mxu0 0.0
    %931 = vmatpush1.msra.mxu0 0.0
    %932 = vmatprep.subr.mxu0 0.0
    %933 = vmatpush1.msra.mxu0 0.0
    %934 = vmatprep.subr.mxu0 0.0
    %935 = vmatpush1.msra.mxu0 0.0
    %936 = vmatprep.mubr.f32.mxu0 0.0
    %937 = vmatmul.mubr.f32.gmra.mrb[0].mxu0 %v870
    %v938 = vpop.f32.mrb[0].mxu0
    %v939 = vadd.f32 0.0, %v938
    %v940 = vpop.f32.mrb[0].mxu0
    %941 = vdwg.mxu0
    %v942 = vadd.f32 %v866, %v939
    %v943 = vxor.u32 %v862, 2147483648
    %v944 = vmul.f32 %v943, 1.442695
    %v945 = vpow.pop %v944
    %v946 = vadd.f32 %v945, 1.0
    %v947 = vrcp.pop %v946
    %v948 = vmul.f32 1.0, %v947
    %v949 = vtanh.pop %v862
    %v950 = vmul.f32 %v948, %v771
    %952 = vrot.lane.b32.xlu0 %v949, 64
    %v953 = vpop.permute.xlu0 %952
    %v955 = vmul.f32 %v948, %v953
    %957 = vrot.lane.b32.xlu0 %v955, 32
    %v958 = vpop.permute.xlu0 %957
    %v960 = vadd.f32 %v950, %v958
    %v961 = vtanh.pop %v960
    %963 = vrot.lane.b32.xlu0 %v961, 64
    %v964 = vpop.permute.xlu0 %963
    %v966 = vmul.f32 %v948, %v964
    %v967 = vxor.u32 %v942, 2147483648
    %v968 = vmul.f32 %v967, 1.442695
    %v969 = vpow.pop %v968
    %v970 = vadd.f32 %v969, 1.0
    %v971 = vrcp.pop %v970
    %v972 = vmul.f32 1.0, %v971
    %v973 = vtanh.pop %v942
    %v974 = vmul.f32 %v972, %v782
    %976 = vrot.lane.b32.xlu0 %v973, 64
    %v977 = vpop.permute.xlu0 %976
    %v979 = vmul.f32 %v972, %v977
    %981 = vrot.lane.b32.xlu0 %v979, 32
    %v982 = vpop.permute.xlu0 %981
    %v984 = vadd.f32 %v974, %v982
    %v985 = vtanh.pop %v984
    %987 = vrot.lane.b32.xlu0 %v985, 64
    %v988 = vpop.permute.xlu0 %987
    %v990 = vmul.f32 %v972, %v988
    %s991 = scalar_lea.vmem %s1, 16
    %v992 = vld [vmem:[%s991] sm:$0xff]
    %s993 = scalar_lea.vmem %s1, 40
    %v994 = vld [vmem:[%s993] sm:$0xff]
    %996 = vset.pattern.permute.xlu0 0
    %997 = vperm.xlu0 %996, %v992
    %v998 = vpop.permute.xlu0 %997
    %v1000 = vmul.f32 %v998, %v966
    %1002 = vrot.lane.b32.xlu0 %v1000, 32
    %v1003 = vpop.permute.xlu0 %1002
    %s1005 = scalar_lea.vmem [#allocation3], 16
    %1006 = vst.msk [vmem:[%s1005] sm:$0xff] %vm281, %v1003
    %1008 = vset.pattern.permute.xlu0 0
    %1009 = vperm.xlu0 %1008, %v994
    %v1010 = vpop.permute.xlu0 %1009
    %v1012 = vmul.f32 %v1010, %v990
    %1014 = vrot.lane.b32.xlu0 %v1012, 32
    %v1015 = vpop.permute.xlu0 %1014
    %s1017 = scalar_lea.vmem [#allocation4], 40
    %1018 = vst.msk [vmem:[%s1017] sm:$0xff] %vm281, %v1015
    %v1019 = vsub.f32 1.0, %v992
    %1021 = vset.pattern.permute.xlu0 0
    %1022 = vperm.xlu0 %1021, %v1019
    %v1023 = vpop.permute.xlu0 %1022
    %v1025 = vmul.f32 %v1023, %v768
    %v1026 = vadd.f32 %v1000, %v1025
    %v1027 = vmul.f32 %v998, %v960
    %v1028 = vmul.f32 %v1023, %v771
    %v1029 = vadd.f32 %v1027, %v1028
    %v1030 = vsub.f32 1.0, %v994
    %1032 = vset.pattern.permute.xlu0 0
    %1033 = vperm.xlu0 %1032, %v1030
    %v1034 = vpop.permute.xlu0 %1033
    %v1036 = vmul.f32 %v1034, %v779
    %v1037 = vadd.f32 %v1012, %v1036
    %v1038 = vmul.f32 %v1010, %v984
    %v1039 = vmul.f32 %v1034, %v782
    %v1040 = vadd.f32 %v1038, %v1039
    %s1041 = smul.u32 3, 2
    %s1042 = smul.addr %s1041, 8
    %s1043 = scalar_lea.vmem [#allocation2], %s1042
    %v1044 = vld [vmem:[%s1043] sm:$0xff]
    %1046 = vrot.lane.b32.xlu0 %v1026, 32
    %v1047 = vpop.permute.xlu0 %1046
    %v1048 = vsel %vm281, %v1047, 0
    %1050 = vmatprep.subr.mxu0 0.0
    %1051 = vmatpush1.msra.mxu0 %v269
    %1052 = vmatprep.subr.mxu0 0.0
    %1053 = vmatpush1.msra.mxu0 %v270
    %1054 = vmatprep.subr.mxu0 0.0
    %1055 = vmatpush1.msra.mxu0 %v271
    %1056 = vmatprep.subr.mxu0 0.0
    %1057 = vmatpush1.msra.mxu0 %v272
    %1058 = vmatprep.subr.mxu0 0.0
    %1059 = vmatpush1.msra.mxu0 0.0
    %1060 = vmatprep.subr.mxu0 0.0
    %1061 = vmatpush1.msra.mxu0 0.0
    %1062 = vmatprep.subr.mxu0 0.0
    %1063 = vmatpush1.msra.mxu0 0.0
    %1064 = vmatprep.subr.mxu0 0.0
    %1065 = vmatpush1.msra.mxu0 0.0
    %1066 = vmatprep.subr.mxu0 0.0
    %1067 = vmatpush1.msra.mxu0 0.0
    %1068 = vmatprep.subr.mxu0 0.0
    %1069 = vmatpush1.msra.mxu0 0.0
    %1070 = vmatprep.subr.mxu0 0.0
    %1071 = vmatpush1.msra.mxu0 0.0
    %1072 = vmatprep.subr.mxu0 0.0
    %1073 = vmatpush1.msra.mxu0 0.0
    %1074 = vmatprep.subr.mxu0 0.0
    %1075 = vmatpush1.msra.mxu0 0.0
    %1076 = vmatprep.subr.mxu0 0.0
    %1077 = vmatpush1.msra.mxu0 0.0
    %1078 = vmatprep.subr.mxu0 0.0
    %1079 = vmatpush1.msra.mxu0 0.0
    %1080 = vmatprep.subr.mxu0 0.0
    %1081 = vmatpush1.msra.mxu0 0.0
    %1082 = vmatprep.subr.mxu0 0.0
    %1083 = vmatpush1.msra.mxu0 0.0
    %1084 = vmatprep.subr.mxu0 0.0
    %1085 = vmatpush1.msra.mxu0 0.0
    %1086 = vmatprep.subr.mxu0 0.0
    %1087 = vmatpush1.msra.mxu0 0.0
    %1088 = vmatprep.subr.mxu0 0.0
    %1089 = vmatpush1.msra.mxu0 0.0
    %1090 = vmatprep.subr.mxu0 0.0
    %1091 = vmatpush1.msra.mxu0 0.0
    %1092 = vmatprep.subr.mxu0 0.0
    %1093 = vmatpush1.msra.mxu0 0.0
    %1094 = vmatprep.subr.mxu0 0.0
    %1095 = vmatpush1.msra.mxu0 0.0
    %1096 = vmatprep.subr.mxu0 0.0
    %1097 = vmatpush1.msra.mxu0 0.0
    %1098 = vmatprep.subr.mxu0 0.0
    %1099 = vmatpush1.msra.mxu0 0.0
    %1100 = vmatprep.subr.mxu0 0.0
    %1101 = vmatpush1.msra.mxu0 0.0
    %1102 = vmatprep.subr.mxu0 0.0
    %1103 = vmatpush1.msra.mxu0 0.0
    %1104 = vmatprep.subr.mxu0 0.0
    %1105 = vmatpush1.msra.mxu0 0.0
    %1106 = vmatprep.subr.mxu0 0.0
    %1107 = vmatpush1.msra.mxu0 0.0
    %1108 = vmatprep.subr.mxu0 0.0
    %1109 = vmatpush1.msra.mxu0 0.0
    %1110 = vmatprep.subr.mxu0 0.0
    %1111 = vmatpush1.msra.mxu0 0.0
    %1112 = vmatprep.subr.mxu0 0.0
    %1113 = vmatpush1.msra.mxu0 0.0
    %1114 = vmatprep.mubr.f32.mxu0 0.0
    %1115 = vmatmul.mubr.f32.gmra.mrb[0].mxu0 %v1048
    %v1116 = vpop.f32.mrb[0].mxu0
    %v1117 = vadd.f32 0.0, %v1116
    %v1118 = vpop.f32.mrb[0].mxu0
    %1119 = vdwg.mxu0
    %v1120 = vadd.f32 %v1044, %v1117
    %s1121 = smul.u32 4, 2
    %s1122 = smul.addr %s1121, 8
    %s1123 = scalar_lea.vmem [#allocation2], %s1122
    %v1124 = vld [vmem:[%s1123 + $0x8] sm:$0xff]
    %1126 = vrot.lane.b32.xlu0 %v1037, 32
    %v1127 = vpop.permute.xlu0 %1126
    %v1128 = vsel %vm281, %v1127, 0
    %1130 = vmatprep.subr.mxu0 0.0
    %1131 = vmatpush1.msra.mxu0 %v273
    %1132 = vmatprep.subr.mxu0 0.0
    %1133 = vmatpush1.msra.mxu0 %v274
    %1134 = vmatprep.subr.mxu0 0.0
    %1135 = vmatpush1.msra.mxu0 %v275
    %1136 = vmatprep.subr.mxu0 0.0
    %1137 = vmatpush1.msra.mxu0 %v276
    %1138 = vmatprep.subr.mxu0 0.0
    %1139 = vmatpush1.msra.mxu0 0.0
    %1140 = vmatprep.subr.mxu0 0.0
    %1141 = vmatpush1.msra.mxu0 0.0
    %1142 = vmatprep.subr.mxu0 0.0
    %1143 = vmatpush1.msra.mxu0 0.0
    %1144 = vmatprep.subr.mxu0 0.0
    %1145 = vmatpush1.msra.mxu0 0.0
    %1146 = vmatprep.subr.mxu0 0.0
    %1147 = vmatpush1.msra.mxu0 0.0
    %1148 = vmatprep.subr.mxu0 0.0
    %1149 = vmatpush1.msra.mxu0 0.0
    %1150 = vmatprep.subr.mxu0 0.0
    %1151 = vmatpush1.msra.mxu0 0.0
    %1152 = vmatprep.subr.mxu0 0.0
    %1153 = vmatpush1.msra.mxu0 0.0
    %1154 = vmatprep.subr.mxu0 0.0
    %1155 = vmatpush1.msra.mxu0 0.0
    %1156 = vmatprep.subr.mxu0 0.0
    %1157 = vmatpush1.msra.mxu0 0.0
    %1158 = vmatprep.subr.mxu0 0.0
    %1159 = vmatpush1.msra.mxu0 0.0
    %1160 = vmatprep.subr.mxu0 0.0
    %1161 = vmatpush1.msra.mxu0 0.0
    %1162 = vmatprep.subr.mxu0 0.0
    %1163 = vmatpush1.msra.mxu0 0.0
    %1164 = vmatprep.subr.mxu0 0.0
    %1165 = vmatpush1.msra.mxu0 0.0
    %1166 = vmatprep.subr.mxu0 0.0
    %1167 = vmatpush1.msra.mxu0 0.0
    %1168 = vmatprep.subr.mxu0 0.0
    %1169 = vmatpush1.msra.mxu0 0.0
    %1170 = vmatprep.subr.mxu0 0.0
    %1171 = vmatpush1.msra.mxu0 0.0
    %1172 = vmatprep.subr.mxu0 0.0
    %1173 = vmatpush1.msra.mxu0 0.0
    %1174 = vmatprep.subr.mxu0 0.0
    %1175 = vmatpush1.msra.mxu0 0.0
    %1176 = vmatprep.subr.mxu0 0.0
    %1177 = vmatpush1.msra.mxu0 0.0
    %1178 = vmatprep.subr.mxu0 0.0
    %1179 = vmatpush1.msra.mxu0 0.0
    %1180 = vmatprep.subr.mxu0 0.0
    %1181 = vmatpush1.msra.mxu0 0.0
    %1182 = vmatprep.subr.mxu0 0.0
    %1183 = vmatpush1.msra.mxu0 0.0
    %1184 = vmatprep.subr.mxu0 0.0
    %1185 = vmatpush1.msra.mxu0 0.0
    %1186 = vmatprep.subr.mxu0 0.0
    %1187 = vmatpush1.msra.mxu0 0.0
    %1188 = vmatprep.subr.mxu0 0.0
    %1189 = vmatpush1.msra.mxu0 0.0
    %1190 = vmatprep.subr.mxu0 0.0
    %1191 = vmatpush1.msra.mxu0 0.0
    %1192 = vmatprep.subr.mxu0 0.0
    %1193 = vmatpush1.msra.mxu0 0.0
    %1194 = vmatprep.mubr.f32.mxu0 0.0
    %1195 = vmatmul.mubr.f32.gmra.mrb[0].mxu0 %v1128
    %v1196 = vpop.f32.mrb[0].mxu0
    %v1197 = vadd.f32 0.0, %v1196
    %v1198 = vpop.f32.mrb[0].mxu0
    %1199 = vdwg.mxu0
    %v1200 = vadd.f32 %v1124, %v1197
    %v1201 = vxor.u32 %v1120, 2147483648
    %v1202 = vmul.f32 %v1201, 1.442695
    %v1203 = vpow.pop %v1202
    %v1204 = vadd.f32 %v1203, 1.0
    %v1205 = vrcp.pop %v1204
    %v1206 = vmul.f32 1.0, %v1205
    %v1207 = vtanh.pop %v1120
    %v1208 = vmul.f32 %v1206, %v1029
    %1210 = vrot.lane.b32.xlu0 %v1207, 64
    %v1211 = vpop.permute.xlu0 %1210
    %v1213 = vmul.f32 %v1206, %v1211
    %1215 = vrot.lane.b32.xlu0 %v1213, 32
    %v1216 = vpop.permute.xlu0 %1215
    %v1218 = vadd.f32 %v1208, %v1216
    %v1219 = vtanh.pop %v1218
    %1221 = vrot.lane.b32.xlu0 %v1219, 64
    %v1222 = vpop.permute.xlu0 %1221
    %v1224 = vmul.f32 %v1206, %v1222
    %v1225 = vxor.u32 %v1200, 2147483648
    %v1226 = vmul.f32 %v1225, 1.442695
    %v1227 = vpow.pop %v1226
    %v1228 = vadd.f32 %v1227, 1.0
    %v1229 = vrcp.pop %v1228
    %v1230 = vmul.f32 1.0, %v1229
    %v1231 = vtanh.pop %v1200
    %v1232 = vmul.f32 %v1230, %v1040
    %1234 = vrot.lane.b32.xlu0 %v1231, 64
    %v1235 = vpop.permute.xlu0 %1234
    %v1237 = vmul.f32 %v1230, %v1235
    %1239 = vrot.lane.b32.xlu0 %v1237, 32
    %v1240 = vpop.permute.xlu0 %1239
    %v1242 = vadd.f32 %v1232, %v1240
    %v1243 = vtanh.pop %v1242
    %1245 = vrot.lane.b32.xlu0 %v1243, 64
    %v1246 = vpop.permute.xlu0 %1245
    %v1248 = vmul.f32 %v1230, %v1246
    %s1249 = scalar_lea.vmem %s1, 24
    %v1250 = vld [vmem:[%s1249] sm:$0xff]
    %s1251 = scalar_lea.vmem %s1, 32
    %v1252 = vld [vmem:[%s1251] sm:$0xff]
    %1254 = vset.pattern.permute.xlu0 0
    %1255 = vperm.xlu0 %1254, %v1250
    %v1256 = vpop.permute.xlu0 %1255
    %v1258 = vmul.f32 %v1256, %v1224
    %1260 = vrot.lane.b32.xlu0 %v1258, 32
    %v1261 = vpop.permute.xlu0 %1260
    %s1263 = scalar_lea.vmem [#allocation3], 24
    %1264 = vst.msk [vmem:[%s1263] sm:$0xff] %vm281, %v1261
    %1266 = vset.pattern.permute.xlu0 0
    %1267 = vperm.xlu0 %1266, %v1252
    %v1268 = vpop.permute.xlu0 %1267
    %v1270 = vmul.f32 %v1268, %v1248
    %1272 = vrot.lane.b32.xlu0 %v1270, 32
    %v1273 = vpop.permute.xlu0 %1272
    %s1275 = scalar_lea.vmem [#allocation4], 32
    %1276 = vst.msk [vmem:[%s1275] sm:$0xff] %vm281, %v1273
    %v1277 = vsub.f32 1.0, %v1250
    %1279 = vset.pattern.permute.xlu0 0
    %1280 = vperm.xlu0 %1279, %v1277
    %v1281 = vpop.permute.xlu0 %1280
    %v1283 = vmul.f32 %v1281, %v1026
    %v1284 = vadd.f32 %v1258, %v1283
    %v1285 = vmul.f32 %v1256, %v1218
    %v1286 = vmul.f32 %v1281, %v1029
    %v1287 = vadd.f32 %v1285, %v1286
    %v1288 = vsub.f32 1.0, %v1252
    %1290 = vset.pattern.permute.xlu0 0
    %1291 = vperm.xlu0 %1290, %v1288
    %v1292 = vpop.permute.xlu0 %1291
    %v1294 = vmul.f32 %v1292, %v1037
    %v1295 = vadd.f32 %v1270, %v1294
    %v1296 = vmul.f32 %v1268, %v1242
    %v1297 = vmul.f32 %v1292, %v1040
    %v1298 = vadd.f32 %v1296, %v1297
    %v1299 = vld [vmem:[%s1123] sm:$0xff]
    %1301 = vrot.lane.b32.xlu0 %v1284, 32
    %v1302 = vpop.permute.xlu0 %1301
    %v1303 = vsel %vm281, %v1302, 0
    %1305 = vmatprep.subr.mxu0 0.0
    %1306 = vmatpush1.msra.mxu0 %v269
    %1307 = vmatprep.subr.mxu0 0.0
    %1308 = vmatpush1.msra.mxu0 %v270
    %1309 = vmatprep.subr.mxu0 0.0
    %1310 = vmatpush1.msra.mxu0 %v271
    %1311 = vmatprep.subr.mxu0 0.0
    %1312 = vmatpush1.msra.mxu0 %v272
    %1313 = vmatprep.subr.mxu0 0.0
    %1314 = vmatpush1.msra.mxu0 0.0
    %1315 = vmatprep.subr.mxu0 0.0
    %1316 = vmatpush1.msra.mxu0 0.0
    %1317 = vmatprep.subr.mxu0 0.0
    %1318 = vmatpush1.msra.mxu0 0.0
    %1319 = vmatprep.subr.mxu0 0.0
    %1320 = vmatpush1.msra.mxu0 0.0
    %1321 = vmatprep.subr.mxu0 0.0
    %1322 = vmatpush1.msra.mxu0 0.0
    %1323 = vmatprep.subr.mxu0 0.0
    %1324 = vmatpush1.msra.mxu0 0.0
    %1325 = vmatprep.subr.mxu0 0.0
    %1326 = vmatpush1.msra.mxu0 0.0
    %1327 = vmatprep.subr.mxu0 0.0
    %1328 = vmatpush1.msra.mxu0 0.0
    %1329 = vmatprep.subr.mxu0 0.0
    %1330 = vmatpush1.msra.mxu0 0.0
    %1331 = vmatprep.subr.mxu0 0.0
    %1332 = vmatpush1.msra.mxu0 0.0
    %1333 = vmatprep.subr.mxu0 0.0
    %1334 = vmatpush1.msra.mxu0 0.0
    %1335 = vmatprep.subr.mxu0 0.0
    %1336 = vmatpush1.msra.mxu0 0.0
    %1337 = vmatprep.subr.mxu0 0.0
    %1338 = vmatpush1.msra.mxu0 0.0
    %1339 = vmatprep.subr.mxu0 0.0
    %1340 = vmatpush1.msra.mxu0 0.0
    %1341 = vmatprep.subr.mxu0 0.0
    %1342 = vmatpush1.msra.mxu0 0.0
    %1343 = vmatprep.subr.mxu0 0.0
    %1344 = vmatpush1.msra.mxu0 0.0
    %1345 = vmatprep.subr.mxu0 0.0
    %1346 = vmatpush1.msra.mxu0 0.0
    %1347 = vmatprep.subr.mxu0 0.0
    %1348 = vmatpush1.msra.mxu0 0.0
    %1349 = vmatprep.subr.mxu0 0.0
    %1350 = vmatpush1.msra.mxu0 0.0
    %1351 = vmatprep.subr.mxu0 0.0
    %1352 = vmatpush1.msra.mxu0 0.0
    %1353 = vmatprep.subr.mxu0 0.0
    %1354 = vmatpush1.msra.mxu0 0.0
    %1355 = vmatprep.subr.mxu0 0.0
    %1356 = vmatpush1.msra.mxu0 0.0
    %1357 = vmatprep.subr.mxu0 0.0
    %1358 = vmatpush1.msra.mxu0 0.0
    %1359 = vmatprep.subr.mxu0 0.0
    %1360 = vmatpush1.msra.mxu0 0.0
    %1361 = vmatprep.subr.mxu0 0.0
    %1362 = vmatpush1.msra.mxu0 0.0
    %1363 = vmatprep.subr.mxu0 0.0
    %1364 = vmatpush1.msra.mxu0 0.0
    %1365 = vmatprep.subr.mxu0 0.0
    %1366 = vmatpush1.msra.mxu0 0.0
    %1367 = vmatprep.subr.mxu0 0.0
    %1368 = vmatpush1.msra.mxu0 0.0
    %1369 = vmatprep.mubr.f32.mxu0 0.0
    %1370 = vmatmul.mubr.f32.gmra.mrb[0].mxu0 %v1303
    %v1371 = vpop.f32.mrb[0].mxu0
    %v1372 = vadd.f32 0.0, %v1371
    %v1373 = vpop.f32.mrb[0].mxu0
    %1374 = vdwg.mxu0
    %v1375 = vadd.f32 %v1299, %v1372
    %v1376 = vld [vmem:[%s1043 + $0x8] sm:$0xff]
    %1378 = vrot.lane.b32.xlu0 %v1295, 32
    %v1379 = vpop.permute.xlu0 %1378
    %v1380 = vsel %vm281, %v1379, 0
    %1382 = vmatprep.subr.mxu0 0.0
    %1383 = vmatpush1.msra.mxu0 %v273
    %1384 = vmatprep.subr.mxu0 0.0
    %1385 = vmatpush1.msra.mxu0 %v274
    %1386 = vmatprep.subr.mxu0 0.0
    %1387 = vmatpush1.msra.mxu0 %v275
    %1388 = vmatprep.subr.mxu0 0.0
    %1389 = vmatpush1.msra.mxu0 %v276
    %1390 = vmatprep.subr.mxu0 0.0
    %1391 = vmatpush1.msra.mxu0 0.0
    %1392 = vmatprep.subr.mxu0 0.0
    %1393 = vmatpush1.msra.mxu0 0.0
    %1394 = vmatprep.subr.mxu0 0.0
    %1395 = vmatpush1.msra.mxu0 0.0
    %1396 = vmatprep.subr.mxu0 0.0
    %1397 = vmatpush1.msra.mxu0 0.0
    %1398 = vmatprep.subr.mxu0 0.0
    %1399 = vmatpush1.msra.mxu0 0.0
    %1400 = vmatprep.subr.mxu0 0.0
    %1401 = vmatpush1.msra.mxu0 0.0
    %1402 = vmatprep.subr.mxu0 0.0
    %1403 = vmatpush1.msra.mxu0 0.0
    %1404 = vmatprep.subr.mxu0 0.0
    %1405 = vmatpush1.msra.mxu0 0.0
    %1406 = vmatprep.subr.mxu0 0.0
    %1407 = vmatpush1.msra.mxu0 0.0
    %1408 = vmatprep.subr.mxu0 0.0
    %1409 = vmatpush1.msra.mxu0 0.0
    %1410 = vmatprep.subr.mxu0 0.0
    %1411 = vmatpush1.msra.mxu0 0.0
    %1412 = vmatprep.subr.mxu0 0.0
    %1413 = vmatpush1.msra.mxu0 0.0
    %1414 = vmatprep.subr.mxu0 0.0
    %1415 = vmatpush1.msra.mxu0 0.0
    %1416 = vmatprep.subr.mxu0 0.0
    %1417 = vmatpush1.msra.mxu0 0.0
    %1418 = vmatprep.subr.mxu0 0.0
    %1419 = vmatpush1.msra.mxu0 0.0
    %1420 = vmatprep.subr.mxu0 0.0
    %1421 = vmatpush1.msra.mxu0 0.0
    %1422 = vmatprep.subr.mxu0 0.0
    %1423 = vmatpush1.msra.mxu0 0.0
    %1424 = vmatprep.subr.mxu0 0.0
    %1425 = vmatpush1.msra.mxu0 0.0
    %1426 = vmatprep.subr.mxu0 0.0
    %1427 = vmatpush1.msra.mxu0 0.0
    %1428 = vmatprep.subr.mxu0 0.0
    %1429 = vmatpush1.msra.mxu0 0.0
    %1430 = vmatprep.subr.mxu0 0.0
    %1431 = vmatpush1.msra.mxu0 0.0
    %1432 = vmatprep.subr.mxu0 0.0
    %1433 = vmatpush1.msra.mxu0 0.0
    %1434 = vmatprep.subr.mxu0 0.0
    %1435 = vmatpush1.msra.mxu0 0.0
    %1436 = vmatprep.subr.mxu0 0.0
    %1437 = vmatpush1.msra.mxu0 0.0
    %1438 = vmatprep.subr.mxu0 0.0
    %1439 = vmatpush1.msra.mxu0 0.0
    %1440 = vmatprep.subr.mxu0 0.0
    %1441 = vmatpush1.msra.mxu0 0.0
    %1442 = vmatprep.subr.mxu0 0.0
    %1443 = vmatpush1.msra.mxu0 0.0
    %1444 = vmatprep.subr.mxu0 0.0
    %1445 = vmatpush1.msra.mxu0 0.0
    %1446 = vmatprep.mubr.f32.mxu0 0.0
    %1447 = vmatmul.mubr.f32.gmra.mrb[0].mxu0 %v1380
    %v1448 = vpop.f32.mrb[0].mxu0
    %v1449 = vadd.f32 0.0, %v1448
    %v1450 = vpop.f32.mrb[0].mxu0
    %1451 = vdwg.mxu0
    %v1452 = vadd.f32 %v1376, %v1449
    %v1453 = vxor.u32 %v1375, 2147483648
    %v1454 = vmul.f32 %v1453, 1.442695
    %v1455 = vpow.pop %v1454
    %v1456 = vadd.f32 %v1455, 1.0
    %v1457 = vrcp.pop %v1456
    %v1458 = vmul.f32 1.0, %v1457
    %v1459 = vtanh.pop %v1375
    %v1460 = vmul.f32 %v1458, %v1287
    %1462 = vrot.lane.b32.xlu0 %v1459, 64
    %v1463 = vpop.permute.xlu0 %1462
    %v1465 = vmul.f32 %v1458, %v1463
    %1467 = vrot.lane.b32.xlu0 %v1465, 32
    %v1468 = vpop.permute.xlu0 %1467
    %v1470 = vadd.f32 %v1460, %v1468
    %v1471 = vtanh.pop %v1470
    %1473 = vrot.lane.b32.xlu0 %v1471, 64
    %v1474 = vpop.permute.xlu0 %1473
    %v1476 = vmul.f32 %v1458, %v1474
    %v1477 = vxor.u32 %v1452, 2147483648
    %v1478 = vmul.f32 %v1477, 1.442695
    %v1479 = vpow.pop %v1478
    %v1480 = vadd.f32 %v1479, 1.0
    %v1481 = vrcp.pop %v1480
    %v1482 = vmul.f32 1.0, %v1481
    %v1483 = vtanh.pop %v1452
    %v1484 = vmul.f32 %v1482, %v1298
    %1486 = vrot.lane.b32.xlu0 %v1483, 64
    %v1487 = vpop.permute.xlu0 %1486
    %v1489 = vmul.f32 %v1482, %v1487
    %1491 = vrot.lane.b32.xlu0 %v1489, 32
    %v1492 = vpop.permute.xlu0 %1491
    %v1494 = vadd.f32 %v1484, %v1492
    %v1495 = vtanh.pop %v1494
    %1497 = vrot.lane.b32.xlu0 %v1495, 64
    %v1498 = vpop.permute.xlu0 %1497
    %v1500 = vmul.f32 %v1482, %v1498
    %v1501 = vld [vmem:[%s1251] sm:$0xff]
    %v1502 = vld [vmem:[%s1249] sm:$0xff]
    %1504 = vset.pattern.permute.xlu0 0
    %1505 = vperm.xlu0 %1504, %v1501
    %v1506 = vpop.permute.xlu0 %1505
    %v1508 = vmul.f32 %v1506, %v1476
    %1510 = vrot.lane.b32.xlu0 %v1508, 32
    %v1511 = vpop.permute.xlu0 %1510
    %s1513 = scalar_lea.vmem [#allocation3], 32
    %1514 = vst.msk [vmem:[%s1513] sm:$0xff] %vm281, %v1511
    %1516 = vset.pattern.permute.xlu0 0
    %1517 = vperm.xlu0 %1516, %v1502
    %v1518 = vpop.permute.xlu0 %1517
    %v1520 = vmul.f32 %v1518, %v1500
    %1522 = vrot.lane.b32.xlu0 %v1520, 32
    %v1523 = vpop.permute.xlu0 %1522
    %s1525 = scalar_lea.vmem [#allocation4], 24
    %1526 = vst.msk [vmem:[%s1525] sm:$0xff] %vm281, %v1523
    %v1527 = vsub.f32 1.0, %v1501
    %1529 = vset.pattern.permute.xlu0 0
    %1530 = vperm.xlu0 %1529, %v1527
    %v1531 = vpop.permute.xlu0 %1530
    %v1533 = vmul.f32 %v1531, %v1284
    %v1534 = vadd.f32 %v1508, %v1533
    %v1535 = vmul.f32 %v1506, %v1470
    %v1536 = vmul.f32 %v1531, %v1287
    %v1537 = vadd.f32 %v1535, %v1536
    %v1538 = vsub.f32 1.0, %v1502
    %1540 = vset.pattern.permute.xlu0 0
    %1541 = vperm.xlu0 %1540, %v1538
    %v1542 = vpop.permute.xlu0 %1541
    %v1544 = vmul.f32 %v1542, %v1295
    %v1545 = vadd.f32 %v1520, %v1544
    %v1546 = vmul.f32 %v1518, %v1494
    %v1547 = vmul.f32 %v1542, %v1298
    %v1548 = vadd.f32 %v1546, %v1547
    %v1549 = vld [vmem:[%s865] sm:$0xff]
    %1551 = vrot.lane.b32.xlu0 %v1534, 32
    %v1552 = vpop.permute.xlu0 %1551
    %v1553 = vsel %vm281, %v1552, 0
    %1555 = vmatprep.subr.mxu0 0.0
    %1556 = vmatpush1.msra.mxu0 %v269
    %1557 = vmatprep.subr.mxu0 0.0
    %1558 = vmatpush1.msra.mxu0 %v270
    %1559 = vmatprep.subr.mxu0 0.0
    %1560 = vmatpush1.msra.mxu0 %v271
    %1561 = vmatprep.subr.mxu0 0.0
    %1562 = vmatpush1.msra.mxu0 %v272
    %1563 = vmatprep.subr.mxu0 0.0
    %1564 = vmatpush1.msra.mxu0 0.0
    %1565 = vmatprep.subr.mxu0 0.0
    %1566 = vmatpush1.msra.mxu0 0.0
    %1567 = vmatprep.subr.mxu0 0.0
    %1568 = vmatpush1.msra.mxu0 0.0
    %1569 = vmatprep.subr.mxu0 0.0
    %1570 = vmatpush1.msra.mxu0 0.0
    %1571 = vmatprep.subr.mxu0 0.0
    %1572 = vmatpush1.msra.mxu0 0.0
    %1573 = vmatprep.subr.mxu0 0.0
    %1574 = vmatpush1.msra.mxu0 0.0
    %1575 = vmatprep.subr.mxu0 0.0
    %1576 = vmatpush1.msra.mxu0 0.0
    %1577 = vmatprep.subr.mxu0 0.0
    %1578 = vmatpush1.msra.mxu0 0.0
    %1579 = vmatprep.subr.mxu0 0.0
    %1580 = vmatpush1.msra.mxu0 0.0
    %1581 = vmatprep.subr.mxu0 0.0
    %1582 = vmatpush1.msra.mxu0 0.0
    %1583 = vmatprep.subr.mxu0 0.0
    %1584 = vmatpush1.msra.mxu0 0.0
    %1585 = vmatprep.subr.mxu0 0.0
    %1586 = vmatpush1.msra.mxu0 0.0
    %1587 = vmatprep.subr.mxu0 0.0
    %1588 = vmatpush1.msra.mxu0 0.0
    %1589 = vmatprep.subr.mxu0 0.0
    %1590 = vmatpush1.msra.mxu0 0.0
    %1591 = vmatprep.subr.mxu0 0.0
    %1592 = vmatpush1.msra.mxu0 0.0
    %1593 = vmatprep.subr.mxu0 0.0
    %1594 = vmatpush1.msra.mxu0 0.0
    %1595 = vmatprep.subr.mxu0 0.0
    %1596 = vmatpush1.msra.mxu0 0.0
    %1597 = vmatprep.subr.mxu0 0.0
    %1598 = vmatpush1.msra.mxu0 0.0
    %1599 = vmatprep.subr.mxu0 0.0
    %1600 = vmatpush1.msra.mxu0 0.0
    %1601 = vmatprep.subr.mxu0 0.0
    %1602 = vmatpush1.msra.mxu0 0.0
    %1603 = vmatprep.subr.mxu0 0.0
    %1604 = vmatpush1.msra.mxu0 0.0
    %1605 = vmatprep.subr.mxu0 0.0
    %1606 = vmatpush1.msra.mxu0 0.0
    %1607 = vmatprep.subr.mxu0 0.0
    %1608 = vmatpush1.msra.mxu0 0.0
    %1609 = vmatprep.subr.mxu0 0.0
    %1610 = vmatpush1.msra.mxu0 0.0
    %1611 = vmatprep.subr.mxu0 0.0
    %1612 = vmatpush1.msra.mxu0 0.0
    %1613 = vmatprep.subr.mxu0 0.0
    %1614 = vmatpush1.msra.mxu0 0.0
    %1615 = vmatprep.subr.mxu0 0.0
    %1616 = vmatpush1.msra.mxu0 0.0
    %1617 = vmatprep.subr.mxu0 0.0
    %1618 = vmatpush1.msra.mxu0 0.0
    %1619 = vmatprep.mubr.f32.mxu0 0.0
    %1620 = vmatmul.mubr.f32.gmra.mrb[0].mxu0 %v1553
    %v1621 = vpop.f32.mrb[0].mxu0
    %v1622 = vadd.f32 0.0, %v1621
    %v1623 = vpop.f32.mrb[0].mxu0
    %1624 = vdwg.mxu0
    %v1625 = vadd.f32 %v1549, %v1622
    %v1626 = vld [vmem:[%s785 + $0x8] sm:$0xff]
    %1628 = vrot.lane.b32.xlu0 %v1545, 32
    %v1629 = vpop.permute.xlu0 %1628
    %v1630 = vsel %vm281, %v1629, 0
    %1632 = vmatprep.subr.mxu0 0.0
    %1633 = vmatpush1.msra.mxu0 %v273
    %1634 = vmatprep.subr.mxu0 0.0
    %1635 = vmatpush1.msra.mxu0 %v274
    %1636 = vmatprep.subr.mxu0 0.0
    %1637 = vmatpush1.msra.mxu0 %v275
    %1638 = vmatprep.subr.mxu0 0.0
    %1639 = vmatpush1.msra.mxu0 %v276
    %1640 = vmatprep.subr.mxu0 0.0
    %1641 = vmatpush1.msra.mxu0 0.0
    %1642 = vmatprep.subr.mxu0 0.0
    %1643 = vmatpush1.msra.mxu0 0.0
    %1644 = vmatprep.subr.mxu0 0.0
    %1645 = vmatpush1.msra.mxu0 0.0
    %1646 = vmatprep.subr.mxu0 0.0
    %1647 = vmatpush1.msra.mxu0 0.0
    %1648 = vmatprep.subr.mxu0 0.0
    %1649 = vmatpush1.msra.mxu0 0.0
    %1650 = vmatprep.subr.mxu0 0.0
    %1651 = vmatpush1.msra.mxu0 0.0
    %1652 = vmatprep.subr.mxu0 0.0
    %1653 = vmatpush1.msra.mxu0 0.0
    %1654 = vmatprep.subr.mxu0 0.0
    %1655 = vmatpush1.msra.mxu0 0.0
    %1656 = vmatprep.subr.mxu0 0.0
    %1657 = vmatpush1.msra.mxu0 0.0
    %1658 = vmatprep.subr.mxu0 0.0
    %1659 = vmatpush1.msra.mxu0 0.0
    %1660 = vmatprep.subr.mxu0 0.0
    %1661 = vmatpush1.msra.mxu0 0.0
    %1662 = vmatprep.subr.mxu0 0.0
    %1663 = vmatpush1.msra.mxu0 0.0
    %1664 = vmatprep.subr.mxu0 0.0
    %1665 = vmatpush1.msra.mxu0 0.0
    %1666 = vmatprep.subr.mxu0 0.0
    %1667 = vmatpush1.msra.mxu0 0.0
    %1668 = vmatprep.subr.mxu0 0.0
    %1669 = vmatpush1.msra.mxu0 0.0
    %1670 = vmatprep.subr.mxu0 0.0
    %1671 = vmatpush1.msra.mxu0 0.0
    %1672 = vmatprep.subr.mxu0 0.0
    %1673 = vmatpush1.msra.mxu0 0.0
    %1674 = vmatprep.subr.mxu0 0.0
    %1675 = vmatpush1.msra.mxu0 0.0
    %1676 = vmatprep.subr.mxu0 0.0
    %1677 = vmatpush1.msra.mxu0 0.0
    %1678 = vmatprep.subr.mxu0 0.0
    %1679 = vmatpush1.msra.mxu0 0.0
    %1680 = vmatprep.subr.mxu0 0.0
    %1681 = vmatpush1.msra.mxu0 0.0
    %1682 = vmatprep.subr.mxu0 0.0
    %1683 = vmatpush1.msra.mxu0 0.0
    %1684 = vmatprep.subr.mxu0 0.0
    %1685 = vmatpush1.msra.mxu0 0.0
    %1686 = vmatprep.subr.mxu0 0.0
    %1687 = vmatpush1.msra.mxu0 0.0
    %1688 = vmatprep.subr.mxu0 0.0
    %1689 = vmatpush1.msra.mxu0 0.0
    %1690 = vmatprep.subr.mxu0 0.0
    %1691 = vmatpush1.msra.mxu0 0.0
    %1692 = vmatprep.subr.mxu0 0.0
    %1693 = vmatpush1.msra.mxu0 0.0
    %1694 = vmatprep.subr.mxu0 0.0
    %1695 = vmatpush1.msra.mxu0 0.0
    %1696 = vmatprep.mubr.f32.mxu0 0.0
    %1697 = vmatmul.mubr.f32.gmra.mrb[0].mxu0 %v1630
    %v1698 = vpop.f32.mrb[0].mxu0
    %v1699 = vadd.f32 0.0, %v1698
    %v1700 = vpop.f32.mrb[0].mxu0
    %1701 = vdwg.mxu0
    %v1702 = vadd.f32 %v1626, %v1699
    %v1703 = vxor.u32 %v1625, 2147483648
    %v1704 = vmul.f32 %v1703, 1.442695
    %v1705 = vpow.pop %v1704
    %v1706 = vadd.f32 %v1705, 1.0
    %v1707 = vrcp.pop %v1706
    %v1708 = vmul.f32 1.0, %v1707
    %v1709 = vtanh.pop %v1625
    %v1710 = vmul.f32 %v1708, %v1537
    %1712 = vrot.lane.b32.xlu0 %v1709, 64
    %v1713 = vpop.permute.xlu0 %1712
    %v1715 = vmul.f32 %v1708, %v1713
    %1717 = vrot.lane.b32.xlu0 %v1715, 32
    %v1718 = vpop.permute.xlu0 %1717
    %v1720 = vadd.f32 %v1710, %v1718
    %v1721 = vtanh.pop %v1720
    %1723 = vrot.lane.b32.xlu0 %v1721, 64
    %v1724 = vpop.permute.xlu0 %1723
    %v1726 = vmul.f32 %v1708, %v1724
    %v1727 = vxor.u32 %v1702, 2147483648
    %v1728 = vmul.f32 %v1727, 1.442695
    %v1729 = vpow.pop %v1728
    %v1730 = vadd.f32 %v1729, 1.0
    %v1731 = vrcp.pop %v1730
    %v1732 = vmul.f32 1.0, %v1731
    %v1733 = vtanh.pop %v1702
    %v1734 = vmul.f32 %v1732, %v1548
    %1736 = vrot.lane.b32.xlu0 %v1733, 64
    %v1737 = vpop.permute.xlu0 %1736
    %v1739 = vmul.f32 %v1732, %v1737
    %1741 = vrot.lane.b32.xlu0 %v1739, 32
    %v1742 = vpop.permute.xlu0 %1741
    %v1744 = vadd.f32 %v1734, %v1742
    %v1745 = vtanh.pop %v1744
    %1747 = vrot.lane.b32.xlu0 %v1745, 64
    %v1748 = vpop.permute.xlu0 %1747
    %v1750 = vmul.f32 %v1732, %v1748
    %v1751 = vld [vmem:[%s993] sm:$0xff]
    %v1752 = vld [vmem:[%s991] sm:$0xff]
    %1754 = vset.pattern.permute.xlu0 0
    %1755 = vperm.xlu0 %1754, %v1751
    %v1756 = vpop.permute.xlu0 %1755
    %v1758 = vmul.f32 %v1756, %v1726
    %1760 = vrot.lane.b32.xlu0 %v1758, 32
    %v1761 = vpop.permute.xlu0 %1760
    %s1763 = scalar_lea.vmem [#allocation3], 40
    %1764 = vst.msk [vmem:[%s1763] sm:$0xff] %vm281, %v1761
    %1766 = vset.pattern.permute.xlu0 0
    %1767 = vperm.xlu0 %1766, %v1752
    %v1768 = vpop.permute.xlu0 %1767
    %v1770 = vmul.f32 %v1768, %v1750
    %1772 = vrot.lane.b32.xlu0 %v1770, 32
    %v1773 = vpop.permute.xlu0 %1772
    %s1775 = scalar_lea.vmem [#allocation4], 16
    %1776 = vst.msk [vmem:[%s1775] sm:$0xff] %vm281, %v1773
    %v1777 = vsub.f32 1.0, %v1751
    %1779 = vset.pattern.permute.xlu0 0
    %1780 = vperm.xlu0 %1779, %v1777
    %v1781 = vpop.permute.xlu0 %1780
    %v1783 = vmul.f32 %v1781, %v1534
    %v1784 = vadd.f32 %v1758, %v1783
    %v1785 = vmul.f32 %v1756, %v1720
    %v1786 = vmul.f32 %v1781, %v1537
    %v1787 = vadd.f32 %v1785, %v1786
    %v1788 = vsub.f32 1.0, %v1752
    %1790 = vset.pattern.permute.xlu0 0
    %1791 = vperm.xlu0 %1790, %v1788
    %v1792 = vpop.permute.xlu0 %1791
    %v1794 = vmul.f32 %v1792, %v1545
    %v1795 = vadd.f32 %v1770, %v1794
    %v1796 = vmul.f32 %v1768, %v1744
    %v1797 = vmul.f32 %v1792, %v1548
    %v1798 = vadd.f32 %v1796, %v1797
    %v1799 = vld [vmem:[%s607] sm:$0xff]
    %1801 = vrot.lane.b32.xlu0 %v1784, 32
    %v1802 = vpop.permute.xlu0 %1801
    %v1803 = vsel %vm281, %v1802, 0
    %1805 = vmatprep.subr.mxu0 0.0
    %1806 = vmatpush1.msra.mxu0 %v269
    %1807 = vmatprep.subr.mxu0 0.0
    %1808 = vmatpush1.msra.mxu0 %v270
    %1809 = vmatprep.subr.mxu0 0.0
    %1810 = vmatpush1.msra.mxu0 %v271
    %1811 = vmatprep.subr.mxu0 0.0
    %1812 = vmatpush1.msra.mxu0 %v272
    %1813 = vmatprep.subr.mxu0 0.0
    %1814 = vmatpush1.msra.mxu0 0.0
    %1815 = vmatprep.subr.mxu0 0.0
    %1816 = vmatpush1.msra.mxu0 0.0
    %1817 = vmatprep.subr.mxu0 0.0
    %1818 = vmatpush1.msra.mxu0 0.0
    %1819 = vmatprep.subr.mxu0 0.0
    %1820 = vmatpush1.msra.mxu0 0.0
    %1821 = vmatprep.subr.mxu0 0.0
    %1822 = vmatpush1.msra.mxu0 0.0
    %1823 = vmatprep.subr.mxu0 0.0
    %1824 = vmatpush1.msra.mxu0 0.0
    %1825 = vmatprep.subr.mxu0 0.0
    %1826 = vmatpush1.msra.mxu0 0.0
    %1827 = vmatprep.subr.mxu0 0.0
    %1828 = vmatpush1.msra.mxu0 0.0
    %1829 = vmatprep.subr.mxu0 0.0
    %1830 = vmatpush1.msra.mxu0 0.0
    %1831 = vmatprep.subr.mxu0 0.0
    %1832 = vmatpush1.msra.mxu0 0.0
    %1833 = vmatprep.subr.mxu0 0.0
    %1834 = vmatpush1.msra.mxu0 0.0
    %1835 = vmatprep.subr.mxu0 0.0
    %1836 = vmatpush1.msra.mxu0 0.0
    %1837 = vmatprep.subr.mxu0 0.0
    %1838 = vmatpush1.msra.mxu0 0.0
    %1839 = vmatprep.subr.mxu0 0.0
    %1840 = vmatpush1.msra.mxu0 0.0
    %1841 = vmatprep.subr.mxu0 0.0
    %1842 = vmatpush1.msra.mxu0 0.0
    %1843 = vmatprep.subr.mxu0 0.0
    %1844 = vmatpush1.msra.mxu0 0.0
    %1845 = vmatprep.subr.mxu0 0.0
    %1846 = vmatpush1.msra.mxu0 0.0
    %1847 = vmatprep.subr.mxu0 0.0
    %1848 = vmatpush1.msra.mxu0 0.0
    %1849 = vmatprep.subr.mxu0 0.0
    %1850 = vmatpush1.msra.mxu0 0.0
    %1851 = vmatprep.subr.mxu0 0.0
    %1852 = vmatpush1.msra.mxu0 0.0
    %1853 = vmatprep.subr.mxu0 0.0
    %1854 = vmatpush1.msra.mxu0 0.0
    %1855 = vmatprep.subr.mxu0 0.0
    %1856 = vmatpush1.msra.mxu0 0.0
    %1857 = vmatprep.subr.mxu0 0.0
    %1858 = vmatpush1.msra.mxu0 0.0
    %1859 = vmatprep.subr.mxu0 0.0
    %1860 = vmatpush1.msra.mxu0 0.0
    %1861 = vmatprep.subr.mxu0 0.0
    %1862 = vmatpush1.msra.mxu0 0.0
    %1863 = vmatprep.subr.mxu0 0.0
    %1864 = vmatpush1.msra.mxu0 0.0
    %1865 = vmatprep.subr.mxu0 0.0
    %1866 = vmatpush1.msra.mxu0 0.0
    %1867 = vmatprep.subr.mxu0 0.0
    %1868 = vmatpush1.msra.mxu0 0.0
    %1869 = vmatprep.mubr.f32.mxu0 0.0
    %1870 = vmatmul.mubr.f32.gmra.mrb[0].mxu0 %v1803
    %v1871 = vpop.f32.mrb[0].mxu0
    %v1872 = vadd.f32 0.0, %v1871
    %v1873 = vpop.f32.mrb[0].mxu0
    %1874 = vdwg.mxu0
    %v1875 = vadd.f32 %v1799, %v1872
    %v1876 = vld [vmem:[%s527 + $0x8] sm:$0xff]
    %1878 = vrot.lane.b32.xlu0 %v1795, 32
    %v1879 = vpop.permute.xlu0 %1878
    %v1880 = vsel %vm281, %v1879, 0
    %1882 = vmatprep.subr.mxu0 0.0
    %1883 = vmatpush1.msra.mxu0 %v273
    %1884 = vmatprep.subr.mxu0 0.0
    %1885 = vmatpush1.msra.mxu0 %v274
    %1886 = vmatprep.subr.mxu0 0.0
    %1887 = vmatpush1.msra.mxu0 %v275
    %1888 = vmatprep.subr.mxu0 0.0
    %1889 = vmatpush1.msra.mxu0 %v276
    %1890 = vmatprep.subr.mxu0 0.0
    %1891 = vmatpush1.msra.mxu0 0.0
    %1892 = vmatprep.subr.mxu0 0.0
    %1893 = vmatpush1.msra.mxu0 0.0
    %1894 = vmatprep.subr.mxu0 0.0
    %1895 = vmatpush1.msra.mxu0 0.0
    %1896 = vmatprep.subr.mxu0 0.0
    %1897 = vmatpush1.msra.mxu0 0.0
    %1898 = vmatprep.subr.mxu0 0.0
    %1899 = vmatpush1.msra.mxu0 0.0
    %1900 = vmatprep.subr.mxu0 0.0
    %1901 = vmatpush1.msra.mxu0 0.0
    %1902 = vmatprep.subr.mxu0 0.0
    %1903 = vmatpush1.msra.mxu0 0.0
    %1904 = vmatprep.subr.mxu0 0.0
    %1905 = vmatpush1.msra.mxu0 0.0
    %1906 = vmatprep.subr.mxu0 0.0
    %1907 = vmatpush1.msra.mxu0 0.0
    %1908 = vmatprep.subr.mxu0 0.0
    %1909 = vmatpush1.msra.mxu0 0.0
    %1910 = vmatprep.subr.mxu0 0.0
    %1911 = vmatpush1.msra.mxu0 0.0
    %1912 = vmatprep.subr.mxu0 0.0
    %1913 = vmatpush1.msra.mxu0 0.0
    %1914 = vmatprep.subr.mxu0 0.0
    %1915 = vmatpush1.msra.mxu0 0.0
    %1916 = vmatprep.subr.mxu0 0.0
    %1917 = vmatpush1.msra.mxu0 0.0
    %1918 = vmatprep.subr.mxu0 0.0
    %1919 = vmatpush1.msra.mxu0 0.0
    %1920 = vmatprep.subr.mxu0 0.0
    %1921 = vmatpush1.msra.mxu0 0.0
    %1922 = vmatprep.subr.mxu0 0.0
    %1923 = vmatpush1.msra.mxu0 0.0
    %1924 = vmatprep.subr.mxu0 0.0
    %1925 = vmatpush1.msra.mxu0 0.0
    %1926 = vmatprep.subr.mxu0 0.0
    %1927 = vmatpush1.msra.mxu0 0.0
    %1928 = vmatprep.subr.mxu0 0.0
    %1929 = vmatpush1.msra.mxu0 0.0
    %1930 = vmatprep.subr.mxu0 0.0
    %1931 = vmatpush1.msra.mxu0 0.0
    %1932 = vmatprep.subr.mxu0 0.0
    %1933 = vmatpush1.msra.mxu0 0.0
    %1934 = vmatprep.subr.mxu0 0.0
    %1935 = vmatpush1.msra.mxu0 0.0
    %1936 = vmatprep.subr.mxu0 0.0
    %1937 = vmatpush1.msra.mxu0 0.0
    %1938 = vmatprep.subr.mxu0 0.0
    %1939 = vmatpush1.msra.mxu0 0.0
    %1940 = vmatprep.subr.mxu0 0.0
    %1941 = vmatpush1.msra.mxu0 0.0
    %1942 = vmatprep.subr.mxu0 0.0
    %1943 = vmatpush1.msra.mxu0 0.0
    %1944 = vmatprep.subr.mxu0 0.0
    %1945 = vmatpush1.msra.mxu0 0.0
    %1946 = vmatprep.mubr.f32.mxu0 0.0
    %1947 = vmatmul.mubr.f32.gmra.mrb[0].mxu0 %v1880
    %v1948 = vpop.f32.mrb[0].mxu0
    %v1949 = vadd.f32 0.0, %v1948
    %v1950 = vpop.f32.mrb[0].mxu0
    %1951 = vdwg.mxu0
    %v1952 = vadd.f32 %v1876, %v1949
    %v1953 = vxor.u32 %v1875, 2147483648
    %v1954 = vmul.f32 %v1953, 1.442695
    %v1955 = vpow.pop %v1954
    %v1956 = vadd.f32 %v1955, 1.0
    %v1957 = vrcp.pop %v1956
    %v1958 = vmul.f32 1.0, %v1957
    %v1959 = vtanh.pop %v1875
    %v1960 = vmul.f32 %v1958, %v1787
    %1962 = vrot.lane.b32.xlu0 %v1959, 64
    %v1963 = vpop.permute.xlu0 %1962
    %v1965 = vmul.f32 %v1958, %v1963
    %1967 = vrot.lane.b32.xlu0 %v1965, 32
    %v1968 = vpop.permute.xlu0 %1967
    %v1970 = vadd.f32 %v1960, %v1968
    %v1971 = vtanh.pop %v1970
    %1973 = vrot.lane.b32.xlu0 %v1971, 64
    %v1974 = vpop.permute.xlu0 %1973
    %v1976 = vmul.f32 %v1958, %v1974
    %v1977 = vxor.u32 %v1952, 2147483648
    %v1978 = vmul.f32 %v1977, 1.442695
    %v1979 = vpow.pop %v1978
    %v1980 = vadd.f32 %v1979, 1.0
    %v1981 = vrcp.pop %v1980
    %v1982 = vmul.f32 1.0, %v1981
    %v1983 = vtanh.pop %v1952
    %v1984 = vmul.f32 %v1982, %v1798
    %1986 = vrot.lane.b32.xlu0 %v1983, 64
    %v1987 = vpop.permute.xlu0 %1986
    %v1989 = vmul.f32 %v1982, %v1987
    %1991 = vrot.lane.b32.xlu0 %v1989, 32
    %v1992 = vpop.permute.xlu0 %1991
    %v1994 = vadd.f32 %v1984, %v1992
    %v1995 = vtanh.pop %v1994
    %1997 = vrot.lane.b32.xlu0 %v1995, 64
    %v1998 = vpop.permute.xlu0 %1997
    %v2000 = vmul.f32 %v1982, %v1998
    %v2001 = vld [vmem:[%s735] sm:$0xff]
    %v2002 = vld [vmem:[%s733] sm:$0xff]
    %2004 = vset.pattern.permute.xlu0 0
    %2005 = vperm.xlu0 %2004, %v2001
    %v2006 = vpop.permute.xlu0 %2005
    %v2008 = vmul.f32 %v2006, %v1976
    %2010 = vrot.lane.b32.xlu0 %v2008, 32
    %v2011 = vpop.permute.xlu0 %2010
    %s2013 = scalar_lea.vmem [#allocation3], 48
    %2014 = vst.msk [vmem:[%s2013] sm:$0xff] %vm281, %v2011
    %2016 = vset.pattern.permute.xlu0 0
    %2017 = vperm.xlu0 %2016, %v2002
    %v2018 = vpop.permute.xlu0 %2017
    %v2020 = vmul.f32 %v2018, %v2000
    %2022 = vrot.lane.b32.xlu0 %v2020, 32
    %v2023 = vpop.permute.xlu0 %2022
    %s2025 = scalar_lea.vmem [#allocation4], 8
    %2026 = vst.msk [vmem:[%s2025] sm:$0xff] %vm281, %v2023
    %v2027 = vsub.f32 1.0, %v2001
    %2029 = vset.pattern.permute.xlu0 0
    %2030 = vperm.xlu0 %2029, %v2027
    %v2031 = vpop.permute.xlu0 %2030
    %v2033 = vmul.f32 %v2031, %v1784
    %v2034 = vadd.f32 %v2008, %v2033
    %v2035 = vmul.f32 %v2006, %v1970
    %v2036 = vmul.f32 %v2031, %v1787
    %v2037 = vadd.f32 %v2035, %v2036
    %v2038 = vsub.f32 1.0, %v2002
    %2040 = vset.pattern.permute.xlu0 0
    %2041 = vperm.xlu0 %2040, %v2038
    %v2042 = vpop.permute.xlu0 %2041
    %v2044 = vmul.f32 %v2042, %v1795
    %v2045 = vadd.f32 %v2020, %v2044
    %v2046 = vmul.f32 %v2018, %v1994
    %v2047 = vmul.f32 %v2042, %v1798
    %v2048 = vadd.f32 %v2046, %v2047
    %v2049 = vld [vmem:[%s358] sm:$0xff]
    %2051 = vrot.lane.b32.xlu0 %v2034, 32
    %v2052 = vpop.permute.xlu0 %2051
    %v2053 = vsel %vm281, %v2052, 0
    %2055 = vmatprep.subr.mxu0 0.0
    %2056 = vmatpush1.msra.mxu0 %v269
    %2057 = vmatprep.subr.mxu0 0.0
    %2058 = vmatpush1.msra.mxu0 %v270
    %2059 = vmatprep.subr.mxu0 0.0
    %2060 = vmatpush1.msra.mxu0 %v271
    %2061 = vmatprep.subr.mxu0 0.0
    %2062 = vmatpush1.msra.mxu0 %v272
    %2063 = vmatprep.subr.mxu0 0.0
    %2064 = vmatpush1.msra.mxu0 0.0
    %2065 = vmatprep.subr.mxu0 0.0
    %2066 = vmatpush1.msra.mxu0 0.0
    %2067 = vmatprep.subr.mxu0 0.0
    %2068 = vmatpush1.msra.mxu0 0.0
    %2069 = vmatprep.subr.mxu0 0.0
    %2070 = vmatpush1.msra.mxu0 0.0
    %2071 = vmatprep.subr.mxu0 0.0
    %2072 = vmatpush1.msra.mxu0 0.0
    %2073 = vmatprep.subr.mxu0 0.0
    %2074 = vmatpush1.msra.mxu0 0.0
    %2075 = vmatprep.subr.mxu0 0.0
    %2076 = vmatpush1.msra.mxu0 0.0
    %2077 = vmatprep.subr.mxu0 0.0
    %2078 = vmatpush1.msra.mxu0 0.0
    %2079 = vmatprep.subr.mxu0 0.0
    %2080 = vmatpush1.msra.mxu0 0.0
    %2081 = vmatprep.subr.mxu0 0.0
    %2082 = vmatpush1.msra.mxu0 0.0
    %2083 = vmatprep.subr.mxu0 0.0
    %2084 = vmatpush1.msra.mxu0 0.0
    %2085 = vmatprep.subr.mxu0 0.0
    %2086 = vmatpush1.msra.mxu0 0.0
    %2087 = vmatprep.subr.mxu0 0.0
    %2088 = vmatpush1.msra.mxu0 0.0
    %2089 = vmatprep.subr.mxu0 0.0
    %2090 = vmatpush1.msra.mxu0 0.0
    %2091 = vmatprep.subr.mxu0 0.0
    %2092 = vmatpush1.msra.mxu0 0.0
    %2093 = vmatprep.subr.mxu0 0.0
    %2094 = vmatpush1.msra.mxu0 0.0
    %2095 = vmatprep.subr.mxu0 0.0
    %2096 = vmatpush1.msra.mxu0 0.0
    %2097 = vmatprep.subr.mxu0 0.0
    %2098 = vmatpush1.msra.mxu0 0.0
    %2099 = vmatprep.subr.mxu0 0.0
    %2100 = vmatpush1.msra.mxu0 0.0
    %2101 = vmatprep.subr.mxu0 0.0
    %2102 = vmatpush1.msra.mxu0 0.0
    %2103 = vmatprep.subr.mxu0 0.0
    %2104 = vmatpush1.msra.mxu0 0.0
    %2105 = vmatprep.subr.mxu0 0.0
    %2106 = vmatpush1.msra.mxu0 0.0
    %2107 = vmatprep.subr.mxu0 0.0
    %2108 = vmatpush1.msra.mxu0 0.0
    %2109 = vmatprep.subr.mxu0 0.0
    %2110 = vmatpush1.msra.mxu0 0.0
    %2111 = vmatprep.subr.mxu0 0.0
    %2112 = vmatpush1.msra.mxu0 0.0
    %2113 = vmatprep.subr.mxu0 0.0
    %2114 = vmatpush1.msra.mxu0 0.0
    %2115 = vmatprep.subr.mxu0 0.0
    %2116 = vmatpush1.msra.mxu0 0.0
    %2117 = vmatprep.subr.mxu0 0.0
    %2118 = vmatpush1.msra.mxu0 0.0
    %2119 = vmatprep.mubr.f32.mxu0 0.0
    %2120 = vmatmul.mubr.f32.gmra.mrb[0].mxu0 %v2053
    %v2121 = vpop.f32.mrb[0].mxu0
    %v2122 = vadd.f32 0.0, %v2121
    %v2123 = vpop.f32.mrb[0].mxu0
    %2124 = vdwg.mxu0
    %v2125 = vadd.f32 %v2049, %v2122
    %v2126 = vld [vmem:[%s279 + $0x8] sm:$0xff]
    %2128 = vrot.lane.b32.xlu0 %v2045, 32
    %v2129 = vpop.permute.xlu0 %2128
    %v2130 = vsel %vm281, %v2129, 0
    %2132 = vmatprep.subr.mxu0 0.0
    %2133 = vmatpush1.msra.mxu0 %v273
    %2134 = vmatprep.subr.mxu0 0.0
    %2135 = vmatpush1.msra.mxu0 %v274
    %2136 = vmatprep.subr.mxu0 0.0
    %2137 = vmatpush1.msra.mxu0 %v275
    %2138 = vmatprep.subr.mxu0 0.0
    %2139 = vmatpush1.msra.mxu0 %v276
    %2140 = vmatprep.subr.mxu0 0.0
    %2141 = vmatpush1.msra.mxu0 0.0
    %2142 = vmatprep.subr.mxu0 0.0
    %2143 = vmatpush1.msra.mxu0 0.0
    %2144 = vmatprep.subr.mxu0 0.0
    %2145 = vmatpush1.msra.mxu0 0.0
    %2146 = vmatprep.subr.mxu0 0.0
    %2147 = vmatpush1.msra.mxu0 0.0
    %2148 = vmatprep.subr.mxu0 0.0
    %2149 = vmatpush1.msra.mxu0 0.0
    %2150 = vmatprep.subr.mxu0 0.0
    %2151 = vmatpush1.msra.mxu0 0.0
    %2152 = vmatprep.subr.mxu0 0.0
    %2153 = vmatpush1.msra.mxu0 0.0
    %2154 = vmatprep.subr.mxu0 0.0
    %2155 = vmatpush1.msra.mxu0 0.0
    %2156 = vmatprep.subr.mxu0 0.0
    %2157 = vmatpush1.msra.mxu0 0.0
    %2158 = vmatprep.subr.mxu0 0.0
    %2159 = vmatpush1.msra.mxu0 0.0
    %2160 = vmatprep.subr.mxu0 0.0
    %2161 = vmatpush1.msra.mxu0 0.0
    %2162 = vmatprep.subr.mxu0 0.0
    %2163 = vmatpush1.msra.mxu0 0.0
    %2164 = vmatprep.subr.mxu0 0.0
    %2165 = vmatpush1.msra.mxu0 0.0
    %2166 = vmatprep.subr.mxu0 0.0
    %2167 = vmatpush1.msra.mxu0 0.0
    %2168 = vmatprep.subr.mxu0 0.0
    %2169 = vmatpush1.msra.mxu0 0.0
    %2170 = vmatprep.subr.mxu0 0.0
    %2171 = vmatpush1.msra.mxu0 0.0
    %2172 = vmatprep.subr.mxu0 0.0
    %2173 = vmatpush1.msra.mxu0 0.0
    %2174 = vmatprep.subr.mxu0 0.0
    %2175 = vmatpush1.msra.mxu0 0.0
    %2176 = vmatprep.subr.mxu0 0.0
    %2177 = vmatpush1.msra.mxu0 0.0
    %2178 = vmatprep.subr.mxu0 0.0
    %2179 = vmatpush1.msra.mxu0 0.0
    %2180 = vmatprep.subr.mxu0 0.0
    %2181 = vmatpush1.msra.mxu0 0.0
    %2182 = vmatprep.subr.mxu0 0.0
    %2183 = vmatpush1.msra.mxu0 0.0
    %2184 = vmatprep.subr.mxu0 0.0
    %2185 = vmatpush1.msra.mxu0 0.0
    %2186 = vmatprep.subr.mxu0 0.0
    %2187 = vmatpush1.msra.mxu0 0.0
    %2188 = vmatprep.subr.mxu0 0.0
    %2189 = vmatpush1.msra.mxu0 0.0
    %2190 = vmatprep.subr.mxu0 0.0
    %2191 = vmatpush1.msra.mxu0 0.0
    %2192 = vmatprep.subr.mxu0 0.0
    %2193 = vmatpush1.msra.mxu0 0.0
    %2194 = vmatprep.subr.mxu0 0.0
    %2195 = vmatpush1.msra.mxu0 0.0
    %2196 = vmatprep.mubr.f32.mxu0 0.0
    %2197 = vmatmul.mubr.f32.gmra.mrb[0].mxu0 %v2130
    %v2198 = vpop.f32.mrb[0].mxu0
    %v2199 = vadd.f32 0.0, %v2198
    %v2200 = vpop.f32.mrb[0].mxu0
    %2201 = vdwg.mxu0
    %v2202 = vadd.f32 %v2126, %v2199
    %v2203 = vxor.u32 %v2125, 2147483648
    %v2204 = vmul.f32 %v2203, 1.442695
    %v2205 = vpow.pop %v2204
    %v2206 = vadd.f32 %v2205, 1.0
    %v2207 = vrcp.pop %v2206
    %v2208 = vmul.f32 1.0, %v2207
    %v2209 = vtanh.pop %v2125
    %v2210 = vmul.f32 %v2208, %v2037
    %2212 = vrot.lane.b32.xlu0 %v2209, 64
    %v2213 = vpop.permute.xlu0 %2212
    %v2215 = vmul.f32 %v2208, %v2213
    %2217 = vrot.lane.b32.xlu0 %v2215, 32
    %v2218 = vpop.permute.xlu0 %2217
    %v2220 = vadd.f32 %v2210, %v2218
    %v2221 = vtanh.pop %v2220
    %2223 = vrot.lane.b32.xlu0 %v2221, 64
    %v2224 = vpop.permute.xlu0 %2223
    %v2226 = vmul.f32 %v2208, %v2224
    %v2227 = vxor.u32 %v2202, 2147483648
    %v2228 = vmul.f32 %v2227, 1.442695
    %v2229 = vpow.pop %v2228
    %v2230 = vadd.f32 %v2229, 1.0
    %v2231 = vrcp.pop %v2230
    %v2232 = vmul.f32 1.0, %v2231
    %v2233 = vtanh.pop %v2202
    %v2234 = vmul.f32 %v2232, %v2048
    %2236 = vrot.lane.b32.xlu0 %v2233, 64
    %v2237 = vpop.permute.xlu0 %2236
    %v2239 = vmul.f32 %v2232, %v2237
    %2241 = vrot.lane.b32.xlu0 %v2239, 32
    %v2242 = vpop.permute.xlu0 %2241
    %v2244 = vadd.f32 %v2234, %v2242
    %v2245 = vtanh.pop %v2244
    %2247 = vrot.lane.b32.xlu0 %v2245, 64
    %v2248 = vpop.permute.xlu0 %2247
    %v2250 = vmul.f32 %v2232, %v2248
    %v2251 = vld [vmem:[%s480] sm:$0xff]
    %v2252 = vld [vmem:[%s1] sm:$0xff]
    %2254 = vset.pattern.permute.xlu0 0
    %2255 = vperm.xlu0 %2254, %v2251
    %v2256 = vpop.permute.xlu0 %2255
    %v2258 = vmul.f32 %v2256, %v2226
    %2260 = vrot.lane.b32.xlu0 %v2258, 32
    %v2261 = vpop.permute.xlu0 %2260
    %s2263 = scalar_lea.vmem [#allocation3], 56
    %2264 = vst.msk [vmem:[%s2263] sm:$0xff] %vm281, %v2261
    %2266 = vset.pattern.permute.xlu0 0
    %2267 = vperm.xlu0 %2266, %v2252
    %v2268 = vpop.permute.xlu0 %2267
    %v2270 = vmul.f32 %v2268, %v2250
    %2272 = vrot.lane.b32.xlu0 %v2270, 32
    %v2273 = vpop.permute.xlu0 %2272
    %2275 = vst.msk [vmem:[#allocation4] sm:$0xff] %vm281, %v2273
    %v2276 = vld [vmem:[#allocation3] sm:$0xff]
    %v2277 = vld [vmem:[#allocation3 + $0x8] sm:$0xff]
    %v2278 = vld [vmem:[#allocation3 + $0x10] sm:$0xff]
    %v2279 = vld [vmem:[#allocation3 + $0x18] sm:$0xff]
    %v2280 = vld [vmem:[#allocation3 + $0x20] sm:$0xff]
    %v2281 = vld [vmem:[#allocation3 + $0x28] sm:$0xff]
    %v2282 = vld [vmem:[#allocation3 + $0x30] sm:$0xff]
    %v2283 = vld [vmem:[#allocation3 + $0x38] sm:$0xff]
    %v2284 = vtanh.pop %v2276
    %v2285 = vtanh.pop %v2277
    %v2286 = vtanh.pop %v2278
    %v2287 = vtanh.pop %v2279
    %v2288 = vtanh.pop %v2280
    %v2289 = vtanh.pop %v2281
    %v2290 = vtanh.pop %v2282
    %v2291 = vtanh.pop %v2283
    %v2292 = vld [vmem:[#allocation4] sm:$0xff]
    %v2293 = vld [vmem:[#allocation4 + $0x8] sm:$0xff]
    %v2294 = vld [vmem:[#allocation4 + $0x10] sm:$0xff]
    %v2295 = vld [vmem:[#allocation4 + $0x18] sm:$0xff]
    %v2296 = vld [vmem:[#allocation4 + $0x20] sm:$0xff]
    %v2297 = vld [vmem:[#allocation4 + $0x28] sm:$0xff]
    %v2298 = vld [vmem:[#allocation4 + $0x30] sm:$0xff]
    %v2299 = vld [vmem:[#allocation4 + $0x38] sm:$0xff]
    %v2300 = vtanh.pop %v2292
    %v2301 = vtanh.pop %v2293
    %v2302 = vtanh.pop %v2294
    %v2303 = vtanh.pop %v2295
    %v2304 = vtanh.pop %v2296
    %v2305 = vtanh.pop %v2297
    %v2306 = vtanh.pop %v2298
    %v2307 = vtanh.pop %v2299
    %v2308 = vld [vmem:[#allocation11] sm:$0xff]
    %v2309 = vld [vmem:[#allocation11 + $0x8] sm:$0xff]
    %v2310 = vld [vmem:[#allocation11 + $0x10] sm:$0xff]
    %v2311 = vld [vmem:[#allocation11 + $0x18] sm:$0xff]
    %v2312 = vld [vmem:[%s7] sm:$0xff]
    %v2313 = vld [vmem:[%s7 + $0x8] sm:$0xff]
    %v2314 = vld [vmem:[%s7 + $0x10] sm:$0xff]
    %v2315 = vld [vmem:[%s7 + $0x18] sm:$0xff]
    %v2317 = vsel %vm281, %v2300, 0
    %v2320 = vsel %vm281, %v2301, 0
    %v2323 = vsel %vm281, %v2302, 0
    %v2326 = vsel %vm281, %v2303, 0
    %v2329 = vsel %vm281, %v2304, 0
    %v2332 = vsel %vm281, %v2305, 0
    %v2335 = vsel %vm281, %v2306, 0
    %v2338 = vsel %vm281, %v2307, 0
    %2340 = vmatprep.subr.mxu0 0.0
    %2341 = vmatpush1.msra.mxu0 %v2312
    %2342 = vmatprep.subr.mxu0 0.0
    %2343 = vmatpush1.msra.mxu0 %v2313
    %2344 = vmatprep.subr.mxu0 0.0
    %2345 = vmatpush1.msra.mxu0 %v2314
    %2346 = vmatprep.subr.mxu0 0.0
    %2347 = vmatpush1.msra.mxu0 %v2315
    %2348 = vmatprep.subr.mxu0 0.0
    %2349 = vmatpush1.msra.mxu0 0.0
    %2350 = vmatprep.subr.mxu0 0.0
    %2351 = vmatpush1.msra.mxu0 0.0
    %2352 = vmatprep.subr.mxu0 0.0
    %2353 = vmatpush1.msra.mxu0 0.0
    %2354 = vmatprep.subr.mxu0 0.0
    %2355 = vmatpush1.msra.mxu0 0.0
    %2356 = vmatprep.subr.mxu0 0.0
    %2357 = vmatpush1.msra.mxu0 0.0
    %2358 = vmatprep.subr.mxu0 0.0
    %2359 = vmatpush1.msra.mxu0 0.0
    %2360 = vmatprep.subr.mxu0 0.0
    %2361 = vmatpush1.msra.mxu0 0.0
    %2362 = vmatprep.subr.mxu0 0.0
    %2363 = vmatpush1.msra.mxu0 0.0
    %2364 = vmatprep.subr.mxu0 0.0
    %2365 = vmatpush1.msra.mxu0 0.0
    %2366 = vmatprep.subr.mxu0 0.0
    %2367 = vmatpush1.msra.mxu0 0.0
    %2368 = vmatprep.subr.mxu0 0.0
    %2369 = vmatpush1.msra.mxu0 0.0
    %2370 = vmatprep.subr.mxu0 0.0
    %2371 = vmatpush1.msra.mxu0 0.0
    %2372 = vmatprep.subr.mxu0 0.0
    %2373 = vmatpush1.msra.mxu0 0.0
    %2374 = vmatprep.subr.mxu0 0.0
    %2375 = vmatpush1.msra.mxu0 0.0
    %2376 = vmatprep.subr.mxu0 0.0
    %2377 = vmatpush1.msra.mxu0 0.0
    %2378 = vmatprep.subr.mxu0 0.0
    %2379 = vmatpush1.msra.mxu0 0.0
    %2380 = vmatprep.subr.mxu0 0.0
    %2381 = vmatpush1.msra.mxu0 0.0
    %2382 = vmatprep.subr.mxu0 0.0
    %2383 = vmatpush1.msra.mxu0 0.0
    %2384 = vmatprep.subr.mxu0 0.0
    %2385 = vmatpush1.msra.mxu0 0.0
    %2386 = vmatprep.subr.mxu0 0.0
    %2387 = vmatpush1.msra.mxu0 0.0
    %2388 = vmatprep.subr.mxu0 0.0
    %2389 = vmatpush1.msra.mxu0 0.0
    %2390 = vmatprep.subr.mxu0 0.0
    %2391 = vmatpush1.msra.mxu0 0.0
    %2392 = vmatprep.subr.mxu0 0.0
    %2393 = vmatpush1.msra.mxu0 0.0
    %2394 = vmatprep.subr.mxu0 0.0
    %2395 = vmatpush1.msra.mxu0 0.0
    %2396 = vmatprep.subr.mxu0 0.0
    %2397 = vmatpush1.msra.mxu0 0.0
    %2398 = vmatprep.subr.mxu0 0.0
    %2399 = vmatpush1.msra.mxu0 0.0
    %2400 = vmatprep.subr.mxu0 0.0
    %2401 = vmatpush1.msra.mxu0 0.0
    %2402 = vmatprep.subr.mxu0 0.0
    %2403 = vmatpush1.msra.mxu0 0.0
    %2404 = vmatprep.mubr.f32.mxu0 0.0
    %2405 = vmatmul.mubr.f32.gmra.mrb[0].mxu0 %v2317
    %v2406 = vpop.f32.mrb[0].mxu0
    %v2407 = vadd.f32 0.0, %v2406
    %v2408 = vpop.f32.mrb[0].mxu0
    %2409 = vmatprep.mubr.f32.mxu0 0.0
    %2410 = vmatmul.mubr.f32.gmra.mrb[0].mxu0 %v2320
    %v2411 = vpop.f32.mrb[0].mxu0
    %v2412 = vadd.f32 0.0, %v2411
    %v2413 = vpop.f32.mrb[0].mxu0
    %2414 = vmatprep.mubr.f32.mxu0 0.0
    %2415 = vmatmul.mubr.f32.gmra.mrb[0].mxu0 %v2323
    %v2416 = vpop.f32.mrb[0].mxu0
    %v2417 = vadd.f32 0.0, %v2416
    %v2418 = vpop.f32.mrb[0].mxu0
    %2419 = vmatprep.mubr.f32.mxu0 0.0
    %2420 = vmatmul.mubr.f32.gmra.mrb[0].mxu0 %v2326
    %v2421 = vpop.f32.mrb[0].mxu0
    %v2422 = vadd.f32 0.0, %v2421
    %v2423 = vpop.f32.mrb[0].mxu0
    %2424 = vmatprep.mubr.f32.mxu0 0.0
    %2425 = vmatmul.mubr.f32.gmra.mrb[0].mxu0 %v2329
    %v2426 = vpop.f32.mrb[0].mxu0
    %v2427 = vadd.f32 0.0, %v2426
    %v2428 = vpop.f32.mrb[0].mxu0
    %2429 = vmatprep.mubr.f32.mxu0 0.0
    %2430 = vmatmul.mubr.f32.gmra.mrb[0].mxu0 %v2332
    %v2431 = vpop.f32.mrb[0].mxu0
    %v2432 = vadd.f32 0.0, %v2431
    %v2433 = vpop.f32.mrb[0].mxu0
    %2434 = vmatprep.mubr.f32.mxu0 0.0
    %2435 = vmatmul.mubr.f32.gmra.mrb[0].mxu0 %v2335
    %v2436 = vpop.f32.mrb[0].mxu0
    %v2437 = vadd.f32 0.0, %v2436
    %v2438 = vpop.f32.mrb[0].mxu0
    %2439 = vmatprep.mubr.f32.mxu0 0.0
    %2440 = vmatmul.mubr.f32.gmra.mrb[0].mxu0 %v2338
    %v2441 = vpop.f32.mrb[0].mxu0
    %v2442 = vadd.f32 0.0, %v2441
    %v2443 = vpop.f32.mrb[0].mxu0
    %2444 = vdwg.mxu0
    %v2446 = vsel %vm281, %v2284, 0
    %v2449 = vsel %vm281, %v2285, 0
    %v2452 = vsel %vm281, %v2286, 0
    %v2455 = vsel %vm281, %v2287, 0
    %v2458 = vsel %vm281, %v2288, 0
    %v2461 = vsel %vm281, %v2289, 0
    %v2464 = vsel %vm281, %v2290, 0
    %v2467 = vsel %vm281, %v2291, 0
    %2469 = vmatprep.subr.mxu0 0.0
    %2470 = vmatpush1.msra.mxu0 %v2308
    %2471 = vmatprep.subr.mxu0 0.0
    %2472 = vmatpush1.msra.mxu0 %v2309
    %2473 = vmatprep.subr.mxu0 0.0
    %2474 = vmatpush1.msra.mxu0 %v2310
    %2475 = vmatprep.subr.mxu0 0.0
    %2476 = vmatpush1.msra.mxu0 %v2311
    %2477 = vmatprep.subr.mxu0 0.0
    %2478 = vmatpush1.msra.mxu0 0.0
    %2479 = vmatprep.subr.mxu0 0.0
    %2480 = vmatpush1.msra.mxu0 0.0
    %2481 = vmatprep.subr.mxu0 0.0
    %2482 = vmatpush1.msra.mxu0 0.0
    %2483 = vmatprep.subr.mxu0 0.0
    %2484 = vmatpush1.msra.mxu0 0.0
    %2485 = vmatprep.subr.mxu0 0.0
    %2486 = vmatpush1.msra.mxu0 0.0
    %2487 = vmatprep.subr.mxu0 0.0
    %2488 = vmatpush1.msra.mxu0 0.0
    %2489 = vmatprep.subr.mxu0 0.0
    %2490 = vmatpush1.msra.mxu0 0.0
    %2491 = vmatprep.subr.mxu0 0.0
    %2492 = vmatpush1.msra.mxu0 0.0
    %2493 = vmatprep.subr.mxu0 0.0
    %2494 = vmatpush1.msra.mxu0 0.0
    %2495 = vmatprep.subr.mxu0 0.0
    %2496 = vmatpush1.msra.mxu0 0.0
    %2497 = vmatprep.subr.mxu0 0.0
    %2498 = vmatpush1.msra.mxu0 0.0
    %2499 = vmatprep.subr.mxu0 0.0
    %2500 = vmatpush1.msra.mxu0 0.0
    %2501 = vmatprep.subr.mxu0 0.0
    %2502 = vmatpush1.msra.mxu0 0.0
    %2503 = vmatprep.subr.mxu0 0.0
    %2504 = vmatpush1.msra.mxu0 0.0
    %2505 = vmatprep.subr.mxu0 0.0
    %2506 = vmatpush1.msra.mxu0 0.0
    %2507 = vmatprep.subr.mxu0 0.0
    %2508 = vmatpush1.msra.mxu0 0.0
    %2509 = vmatprep.subr.mxu0 0.0
    %2510 = vmatpush1.msra.mxu0 0.0
    %2511 = vmatprep.subr.mxu0 0.0
    %2512 = vmatpush1.msra.mxu0 0.0
    %2513 = vmatprep.subr.mxu0 0.0
    %2514 = vmatpush1.msra.mxu0 0.0
    %2515 = vmatprep.subr.mxu0 0.0
    %2516 = vmatpush1.msra.mxu0 0.0
    %2517 = vmatprep.subr.mxu0 0.0
    %2518 = vmatpush1.msra.mxu0 0.0
    %2519 = vmatprep.subr.mxu0 0.0
    %2520 = vmatpush1.msra.mxu0 0.0
    %2521 = vmatprep.subr.mxu0 0.0
    %2522 = vmatpush1.msra.mxu0 0.0
    %2523 = vmatprep.subr.mxu0 0.0
    %2524 = vmatpush1.msra.mxu0 0.0
    %2525 = vmatprep.subr.mxu0 0.0
    %2526 = vmatpush1.msra.mxu0 0.0
    %2527 = vmatprep.subr.mxu0 0.0
    %2528 = vmatpush1.msra.mxu0 0.0
    %2529 = vmatprep.subr.mxu0 0.0
    %2530 = vmatpush1.msra.mxu0 0.0
    %2531 = vmatprep.subr.mxu0 0.0
    %2532 = vmatpush1.msra.mxu0 0.0
    %2533 = vmatprep.mubr.f32.mxu0 0.0
    %2534 = vmatmul.mubr.f32.gmra.mrb[0].mxu0 %v2446
    %v2535 = vpop.f32.mrb[0].mxu0
    %v2536 = vadd.f32 %v2407, %v2535
    %v2537 = vpop.f32.mrb[0].mxu0
    %2538 = vmatprep.mubr.f32.mxu0 0.0
    %2539 = vmatmul.mubr.f32.gmra.mrb[0].mxu0 %v2449
    %v2540 = vpop.f32.mrb[0].mxu0
    %v2541 = vadd.f32 %v2412, %v2540
    %v2542 = vpop.f32.mrb[0].mxu0
    %2543 = vmatprep.mubr.f32.mxu0 0.0
    %2544 = vmatmul.mubr.f32.gmra.mrb[0].mxu0 %v2452
    %v2545 = vpop.f32.mrb[0].mxu0
    %v2546 = vadd.f32 %v2417, %v2545
    %v2547 = vpop.f32.mrb[0].mxu0
    %2548 = vmatprep.mubr.f32.mxu0 0.0
    %2549 = vmatmul.mubr.f32.gmra.mrb[0].mxu0 %v2455
    %v2550 = vpop.f32.mrb[0].mxu0
    %v2551 = vadd.f32 %v2422, %v2550
    %v2552 = vpop.f32.mrb[0].mxu0
    %2553 = vmatprep.mubr.f32.mxu0 0.0
    %2554 = vmatmul.mubr.f32.gmra.mrb[0].mxu0 %v2458
    %v2555 = vpop.f32.mrb[0].mxu0
    %v2556 = vadd.f32 %v2427, %v2555
    %v2557 = vpop.f32.mrb[0].mxu0
    %2558 = vmatprep.mubr.f32.mxu0 0.0
    %2559 = vmatmul.mubr.f32.gmra.mrb[0].mxu0 %v2461
    %v2560 = vpop.f32.mrb[0].mxu0
    %v2561 = vadd.f32 %v2432, %v2560
    %v2562 = vpop.f32.mrb[0].mxu0
    %2563 = vmatprep.mubr.f32.mxu0 0.0
    %2564 = vmatmul.mubr.f32.gmra.mrb[0].mxu0 %v2464
    %v2565 = vpop.f32.mrb[0].mxu0
    %v2566 = vadd.f32 %v2437, %v2565
    %v2567 = vpop.f32.mrb[0].mxu0
    %2568 = vmatprep.mubr.f32.mxu0 0.0
    %2569 = vmatmul.mubr.f32.gmra.mrb[0].mxu0 %v2467
    %v2570 = vpop.f32.mrb[0].mxu0
    %v2571 = vadd.f32 %v2442, %v2570
    %v2572 = vpop.f32.mrb[0].mxu0
    %2573 = vdwg.mxu0
    %v2574 = vld [vmem:[%s8] sm:$0x1]
    %v2576 = vlaneseq
    %v2577 = vshrl.u32 %v2576, 7
    %v2578 = vsub.s32 0, %v2577
    %v2579 = vrot.slane %v2574, %v2578
    %v2581 = vadd.f32 %v2536, %v2579
    %v2582 = vadd.f32 %v2541, %v2579
    %v2583 = vadd.f32 %v2546, %v2579
    %v2584 = vadd.f32 %v2551, %v2579
    %v2585 = vadd.f32 %v2556, %v2579
    %v2586 = vadd.f32 %v2561, %v2579
    %v2587 = vadd.f32 %v2566, %v2579
    %v2588 = vadd.f32 %v2571, %v2579
    %2589 = vst [vmem:[#allocation13] sm:$0xff] %v2581
    %2590 = vst [vmem:[#allocation13 + $0x8] sm:$0xff] %v2582
    %2591 = vst [vmem:[#allocation13 + $0x10] sm:$0xff] %v2583
    %2592 = vst [vmem:[#allocation13 + $0x18] sm:$0xff] %v2584
    %2593 = vst [vmem:[#allocation13 + $0x20] sm:$0xff] %v2585
    %2594 = vst [vmem:[#allocation13 + $0x28] sm:$0xff] %v2586
    %2595 = vst [vmem:[#allocation13 + $0x30] sm:$0xff] %v2587
    %2596 = vst [vmem:[#allocation13 + $0x38] sm:$0xff] %v2588
    // Predicated region
    $region54: #{tpu_custom_call.1} parent=1 // pred_check
      _
    $region55: #{tpu_custom_call.1} parent=1 // pred_check_branch
      %2598 = sbr.rel (0) target = $region57
    $region56: #{tpu_custom_call.1} parent=1 // pred_region
      %s2600 = ssub.s32 1024, 1024
      %2601 = vsyncadd [#allocation7], %s2600
      %s2602 = sshll.u32 [#allocation13], 4
      %s2603 = int_to_ptr.vmem [resolvable:$true] %s2602
      %2608 = dma.vmem_to_hbm [thread:$0]  %s2603, 1024, %s9, [#allocation7], 128, 128, 8
    $region57: #{tpu_custom_call.1} parent=1 // pred_fallthru
      _
    // Predicated region
    $region58: #{tpu_custom_call.1} parent=1 // pred_check
      _
    $region59: #{tpu_custom_call.1} parent=1 // pred_check_branch
      %2610 = sbr.rel (0) target = $region61
    $region60: #{tpu_custom_call.1} parent=1 // pred_region
      %2611 = dma.done [#allocation7], 1024
    $region61: #{tpu_custom_call.1} parent=1 // pred_fallthru
      _
    %2612 = vsyncpa [#allocation6], 1
    %2613 = vsyncpa [#allocation9], 1
    %2614 = vsyncpa [#allocation12], 1
    %2615 = vsyncpa [#allocation7], 1

</llo_original>
